<compile_context>
chip_gen: v6e
topology: v6e:2x2x1
jax: 0.10.0
libtpu: 0.0.40
codegen_flags: <defaults>
</compile_context>

<pallas_src>
import math
from functools import partial

import jax
import jax.numpy as jnp
from jax.experimental import pallas as pl
from jax.experimental.pallas import tpu as pltpu


# Order in which parameter arrays are passed to the kernel.
PARAM_ORDER = [
    "sa_wq", "sa_bq", "sa_wk", "sa_bk", "sa_wv", "sa_bv", "sa_wo", "sa_bo",
    "ca_wq", "ca_bq", "ca_wk", "ca_bk", "ca_wv", "ca_bv", "ca_wo", "ca_bo",
    "ff_w1", "ff_b1", "ff_w2", "ff_b2",
    "g1", "b1", "g2", "b2", "g3", "b3",
]
NUM_PARAMS = len(PARAM_ORDER)

# Large finite negative: identical softmax result as -inf for any row with >=1 unmasked
# entry; fully-masked rows give uniform weights instead of NaN (documented divergence
# from the PyTorch reference, which produces NaN for such rows).
_NEG_BIG = -1e30


def _decoder_layer_kernel(num_heads, d_k, bblk, causal_tgt, compute_dtype, *refs):
    """One grid step processes `bblk` batch elements entirely in VMEM."""
    f32 = jnp.float32
    cdt = compute_dtype

    if causal_tgt:
        x_ref, enc_ref, smask_ref = refs[:3]
        tmask_ref = None
        rest = refs[3:]
    else:
        x_ref, enc_ref, smask_ref, tmask_ref = refs[:4]
        rest = refs[4:]
    (sa_wq, sa_bq, sa_wk, sa_bk, sa_wv, sa_bv, sa_wo, sa_bo,
     ca_wq, ca_bq, ca_wk, ca_bk, ca_wv, ca_bv, ca_wo, ca_bo,
     ff_w1, ff_b1, ff_w2, ff_b2,
     g1, b1, g2, b2, g3, b3, out_ref) = rest

    Sq = x_ref.shape[1]
    Skv = enc_ref.shape[1]
    D = num_heads * d_k

    def linear(x_c, w_ref, b_ref):
        # x_c already cast to the matmul dtype; accumulate in f32 on the MXU.
        return jnp.dot(x_c, w_ref[...], preferred_element_type=f32) + b_ref[...]

    def layernorm(x, g_ref, beta_ref):
        mu = jnp.mean(x, axis=-1, keepdims=True)
        var = jnp.mean((x - mu) ** 2, axis=-1, keepdims=True)
        return (x - mu) * jax.lax.rsqrt(var + 1e-5) * g_ref[...] + beta_ref[...]

    if causal_tgt:
        # Generate the causal keep-mask in-kernel: no O(Sq^2) mask DMA per batch element.
        rows = jax.lax.broadcasted_iota(jnp.int32, (Sq, Sq), 0)
        cols = jax.lax.broadcasted_iota(jnp.int32, (Sq, Sq), 1)
        causal_keep = cols <= rows

    def mha(xq, xkv, wq, bq, wk, bk, wv, bv, wo, bo, keeps, skv_len):
        # xq: (bblk*Sq, D) f32; xkv: (bblk*skv_len, D) f32; keeps[bi]: (Sq, skv_len) bool.
        xq_c = xq.astype(cdt)                              # hoisted cast (once per stage)
        xkv_c = xq_c if xkv is xq else xkv.astype(cdt)
        Q = linear(xq_c, wq, bq)                           # scale already folded into wq/bq
        K = linear(xkv_c, wk, bk)
        V = linear(xkv_c, wv, bv)

        ctxs = []
        for bi in range(bblk):                             # short static per-element loop
            Qh = jnp.transpose(
                Q[bi * Sq:(bi + 1) * Sq].reshape(Sq, num_heads, d_k), (1, 0, 2)).astype(cdt)
            Kh = jnp.transpose(
                K[bi * skv_len:(bi + 1) * skv_len].reshape(skv_len, num_heads, d_k),
                (1, 0, 2)).astype(cdt)
            Vh = jnp.transpose(
                V[bi * skv_len:(bi + 1) * skv_len].reshape(skv_len, num_heads, d_k),
                (1, 0, 2)).astype(cdt)

            # Batched-head einsums; bf16 operands -> native MXU path, f32 accumulation.
            s = jnp.einsum("hqd,hkd->hqk", Qh, Kh, preferred_element_type=f32)
            s = jnp.where(keeps[bi][None, :, :], s, _NEG_BIG)

            m = jnp.max(s, axis=-1, keepdims=True)
            p = jnp.exp(s - m)
            w = p / jnp.sum(p, axis=-1, keepdims=True)      # exact softmax normalization

            o = jnp.einsum("hqk,hkd->hqd", w.astype(cdt), Vh, preferred_element_type=f32)
            ctxs.append(jnp.transpose(o, (1, 0, 2)).reshape(Sq, D))

        ctx = ctxs[0] if bblk == 1 else jnp.concatenate(ctxs, axis=0)
        return linear(ctx.astype(cdt), wo, bo)              # (bblk*Sq, D) f32

    # Flatten the batch block for all position-wise ops (bigger MXU M tiles).
    x = x_ref[...].reshape(bblk * Sq, D)
    enc = enc_ref[...].reshape(bblk * Skv, D)
    if causal_tgt:
        tkeeps = [causal_keep] * bblk
    else:
        tkeeps = [tmask_ref[bi, 0] != 0 for bi in range(bblk)]
    skeeps = [smask_ref[bi, 0] != 0 for bi in range(bblk)]

    # self-attention + residual + norm1
    sa = mha(x, x, sa_wq, sa_bq, sa_wk, sa_bk, sa_wv, sa_bv, sa_wo, sa_bo, tkeeps, Sq)
    x = layernorm(x + sa, g1, b1)

    # cross-attention + residual + norm2
    ca = mha(x, enc, ca_wq, ca_bq, ca_wk, ca_bk, ca_wv, ca_bv, ca_wo, ca_bo, skeeps, Skv)
    x = layernorm(x + ca, g2, b2)

    # position-wise feed-forward + residual + norm3
    h = jnp.maximum(linear(x.astype(cdt), ff_w1, ff_b1), 0.0)
    ff = linear(h.astype(cdt), ff_w2, ff_b2)
    x = layernorm(x + ff, g3, b3)

    out_ref[...] = x.reshape(bblk, Sq, D)


def decoder_layer(x, enc_output, src_mask, tgt_mask, params, *, num_heads,
                  compute_dtype=jnp.float32, causal_tgt=False, batch_block=None):
    B, Sq, D = x.shape
    _, Skv, _ = enc_output.shape
    assert D % num_heads == 0
    d_k = D // num_heads

    # Block several batch elements per grid step when each one is small.
    if batch_block is None:
        batch_block = 1
        for cand in range(B, 0, -1):
            if B % cand == 0 and cand * max(Sq, Skv) <= 512:
                batch_block = cand
                break
    assert B % batch_block == 0

    # Fold 1/sqrt(d_k) into the Q projections (free; removes a full VPU pass over the
    # (H, Sq, Skv) score tensor inside the kernel).
    scale = 1.0 / math.sqrt(d_k)
    prepared = dict(params)
    for pfx in ("sa", "ca"):
        prepared[f"{pfx}_wq"] = params[f"{pfx}_wq"] * scale
        prepared[f"{pfx}_bq"] = params[f"{pfx}_bq"] * scale

    # Matmul weights stored in the compute dtype (bf16 -> native MXU + half the weight
    # DMA); biases / LN params stay f32.
    def prep(name):
        p = prepared[name]
        return p.astype(compute_dtype) if "_w" in name else p.astype(jnp.float32)

    param_list = [prep(k) for k in PARAM_ORDER]

    # Only zero vs non-zero matters (masked_fill(mask == 0)): ship masks as int8.
    smask_i8 = (src_mask != 0).astype(jnp.int8)

    inputs = [x.astype(jnp.float32), enc_output.astype(jnp.float32), smask_i8]
    data_specs = [
        pl.BlockSpec((batch_block, Sq, D), lambda b: (b, 0, 0)),
        pl.BlockSpec((batch_block, Skv, D), lambda b: (b, 0, 0)),
        pl.BlockSpec((batch_block, 1, Sq, Skv), lambda b: (b, 0, 0, 0)),
    ]
    if not causal_tgt:
        inputs.append((tgt_mask != 0).astype(jnp.int8))
        data_specs.append(pl.BlockSpec((batch_block, 1, Sq, Sq), lambda b: (b, 0, 0, 0)))

    def rep_spec(shape):
        idx = lambda b, _n=len(shape): (0,) * _n
        try:
            # Constant block index across the grid -> single-buffer (halves weight VMEM).
            return pl.BlockSpec(shape, idx, pipeline_mode=pl.Buffered(1))
        except Exception:  # older jax without pipeline_mode / Buffered
            return pl.BlockSpec(shape, idx)

    in_specs = data_specs + [rep_spec(tuple(p.shape)) for p in param_list]

    # Scoped-VMEM limit sized to the real working set (weights single-buffered + one grid
    # step double-buffered + activation workspace), 2x headroom, clamped to stay sane on
    # v5e/v6e scoped defaults; keep <=64 MiB in mind for v7x physical VMEM.
    def nbytes(a):
        return a.size * a.dtype.itemsize
    d_ff = params["ff_w1"].shape[1]
    param_bytes = sum(nbytes(p) for p in param_list)
    step_bytes = 2 * 4 * batch_block * (Sq * D + Skv * D + Sq * D)          # x, enc, out
    step_bytes += 2 * batch_block * (Sq * Skv + (0 if causal_tgt else Sq * Sq))  # int8 masks
    work_bytes = 4 * batch_block * (num_heads * Sq * max(Sq, Skv) * 2 + Sq * (6 * D + 2 * d_ff))
    vmem_limit = int(min(96 * 2 ** 20,
                         max(32 * 2 ** 20, 2 * (param_bytes + step_bytes + work_bytes))))

    kernel = partial(_decoder_layer_kernel, num_heads, d_k, batch_block, causal_tgt,
                     compute_dtype)

    return pl.pallas_call(
        kernel,
        out_shape=jax.ShapeDtypeStruct((B, Sq, D), jnp.float32),
        grid=(B // batch_block,),
        in_specs=in_specs,
        out_specs=pl.BlockSpec((batch_block, Sq, D), lambda b: (b, 0, 0)),
        compiler_params=pltpu.CompilerParams(
            # Batch blocks are independent -> shard across TensorCores (v7x megacore).
            dimension_semantics=("parallel",),
            vmem_limit_bytes=vmem_limit,
        ),
    )(*inputs, *param_list)


def init_params(key, d_model, d_ff):
    """Deterministic synthetic parameters (weights (in, out), biases (1, out))."""
    params = {}
    keys = iter(jax.random.split(key, 64))

    def lin(din, dout):
        kw, kb = next(keys), next(keys)
        w = jax.random.normal(kw, (din, dout), jnp.float32) * (1.0 / math.sqrt(din))
        b = jax.random.normal(kb, (1, dout), jnp.float32) * 0.02
        return w, b

    for p in ["sa", "ca"]:
        for s in ["q", "k", "v", "o"]:
            w, b = lin(d_model, d_model)
            params[f"{p}_w{s}"] = w
            params[f"{p}_b{s}"] = b
    params["ff_w1"], params["ff_b1"] = lin(d_model, d_ff)
    params["ff_w2"], params["ff_b2"] = lin(d_ff, d_model)
    for i in (1, 2, 3):
        params[f"g{i}"] = 1.0 + 0.1 * jax.random.normal(next(keys), (1, d_model), jnp.float32)
        params[f"b{i}"] = 0.1 * jax.random.normal(next(keys), (1, d_model), jnp.float32)
    return params


def ref_decoder_layer(x, enc, src_mask, tgt_mask, p, *, num_heads):
    """Pure-JAX reference mirroring the PyTorch forward (eval mode)."""
    d_model = x.shape[-1]
    d_k = d_model // num_heads

    def linear(t, w, b):
        return t @ w + b[0]

    def split(t):
        B, S, _ = t.shape
        return t.reshape(B, S, num_heads, d_k).transpose(0, 2, 1, 3)

    def mha(xq, xkv, wq, bq, wk, bk, wv, bv, wo, bo, mask):
        Q, K, V = split(linear(xq, wq, bq)), split(linear(xkv, wk, bk)), split(linear(xkv, wv, bv))
        s = jnp.einsum("bhqd,bhkd->bhqk", Q, K) / math.sqrt(d_k)
        s = jnp.where(mask == 0.0, -jnp.inf, s)
        w = jax.nn.softmax(s, axis=-1)
        o = jnp.einsum("bhqk,bhkd->bhqd", w, V)
        B, H, Sq, Dk = o.shape
        o = o.transpose(0, 2, 1, 3).reshape(B, Sq, H * Dk)
        return linear(o, wo, bo)

    def ln(t, g, b):
        mu = t.mean(-1, keepdims=True)
        var = ((t - mu) ** 2).mean(-1, keepdims=True)
        return (t - mu) / jnp.sqrt(var + 1e-5) * g[0] + b[0]

    h = mha(x, x, p["sa_wq"], p["sa_bq"], p["sa_wk"], p["sa_bk"],
            p["sa_wv"], p["sa_bv"], p["sa_wo"], p["sa_bo"], tgt_mask)
    x = ln(x + h, p["g1"], p["b1"])
    h = mha(x, enc, p["ca_wq"], p["ca_bq"], p["ca_wk"], p["ca_bk"],
            p["ca_wv"], p["ca_bv"], p["ca_wo"], p["ca_bo"], src_mask)
    x = ln(x + h, p["g2"], p["b2"])
    f = linear(jax.nn.relu(linear(x, p["ff_w1"], p["ff_b1"])), p["ff_w2"], p["ff_b2"])
    x = ln(x + f, p["g3"], p["b3"])
    return x


if __name__ == "__main__":
    B, Sq, Skv = 2, 8, 16
    d_model, num_heads, d_ff = 32, 4, 64

    key = jax.random.PRNGKey(0)
    k_x, k_enc, k_p = jax.random.split(key, 3)

    x = jax.random.normal(k_x, (B, Sq, d_model), jnp.float32)
    enc_output = jax.random.normal(k_enc, (B, Skv, d_model), jnp.float32)

    # Causal target mask (B, 1, Sq, Sq); source mask masks the last 2 kv positions.
    tgt_mask = jnp.broadcast_to(jnp.tril(jnp.ones((Sq, Sq), jnp.float32)),
                                (B, 1, Sq, Sq))
    src_mask = jnp.ones((B, 1, Sq, Skv), jnp.float32).at[:, :, :, Skv - 2:].set(0.0)

    params = init_params(k_p, d_model, d_ff)

    with jax.default_matmul_precision("highest"):
        ref = jax.block_until_ready(
            ref_decoder_layer(x, enc_output, src_mask, tgt_mask, params, num_heads=num_heads))

    # Path 1: f32 compute, general (DMA'd) tgt mask, one batch element per grid step.
    # Tolerances cover TPU DEFAULT matmul precision (bf16 MXU passes) that the XLA
    # reference or kernel may use on-device.
    out = decoder_layer(x, enc_output, src_mask, tgt_mask, params, num_heads=num_heads,
                        compute_dtype=jnp.float32, causal_tgt=False, batch_block=1)
    out = jax.block_until_ready(out)
    assert out.shape == (B, Sq, d_model)
    assert bool(jnp.all(jnp.isfinite(out))), "non-finite output (f32 path)"
    assert jnp.allclose(out, ref, atol=1e-1, rtol=1e-1), "Pallas f32 kernel mismatch vs reference"
    assert float(jnp.mean(jnp.abs(out - ref))) < 5e-2, "Pallas f32 kernel mean error too large"

    # Path 2: perf configuration -- bf16 MXU operands + bf16 weight storage, causal tgt
    # mask generated in-kernel, both batch elements blocked into one grid step.
    out_perf = decoder_layer(x, enc_output, src_mask, tgt_mask, params, num_heads=num_heads,
                             compute_dtype=jnp.bfloat16, causal_tgt=True)
    out_perf = jax.block_until_ready(out_perf)
    assert out_perf.shape == (B, Sq, d_model)
    assert bool(jnp.all(jnp.isfinite(out_perf))), "non-finite output (bf16 path)"
    assert float(jnp.mean(jnp.abs(out_perf - ref))) < 7.5e-2, "Pallas bf16 kernel mean error too large"
    assert jnp.allclose(out_perf, ref, atol=2.5e-1, rtol=2.5e-1), "Pallas bf16 kernel mismatch vs reference"

    print("KERNEL_OK")
</pallas_src>

<mosaic_0001>
module attributes {stable_mosaic.version = 11 : i64} {
  func.func @_decoder_layer_kernel(%arg0: i32, %arg1: memref<1x8x32xf32, #tpu.memory_space<vmem>>, %arg2: memref<1x16x32xf32, #tpu.memory_space<vmem>>, %arg3: memref<1x1x8x16xi8, #tpu.memory_space<vmem>>, %arg4: memref<1x1x8x8xi8, #tpu.memory_space<vmem>>, %arg5: memref<32x32xf32, #tpu.memory_space<vmem>>, %arg6: memref<1x32xf32, #tpu.memory_space<vmem>>, %arg7: memref<32x32xf32, #tpu.memory_space<vmem>>, %arg8: memref<1x32xf32, #tpu.memory_space<vmem>>, %arg9: memref<32x32xf32, #tpu.memory_space<vmem>>, %arg10: memref<1x32xf32, #tpu.memory_space<vmem>>, %arg11: memref<32x32xf32, #tpu.memory_space<vmem>>, %arg12: memref<1x32xf32, #tpu.memory_space<vmem>>, %arg13: memref<32x32xf32, #tpu.memory_space<vmem>>, %arg14: memref<1x32xf32, #tpu.memory_space<vmem>>, %arg15: memref<32x32xf32, #tpu.memory_space<vmem>>, %arg16: memref<1x32xf32, #tpu.memory_space<vmem>>, %arg17: memref<32x32xf32, #tpu.memory_space<vmem>>, %arg18: memref<1x32xf32, #tpu.memory_space<vmem>>, %arg19: memref<32x32xf32, #tpu.memory_space<vmem>>, %arg20: memref<1x32xf32, #tpu.memory_space<vmem>>, %arg21: memref<32x64xf32, #tpu.memory_space<vmem>>, %arg22: memref<1x64xf32, #tpu.memory_space<vmem>>, %arg23: memref<64x32xf32, #tpu.memory_space<vmem>>, %arg24: memref<1x32xf32, #tpu.memory_space<vmem>>, %arg25: memref<1x32xf32, #tpu.memory_space<vmem>>, %arg26: memref<1x32xf32, #tpu.memory_space<vmem>>, %arg27: memref<1x32xf32, #tpu.memory_space<vmem>>, %arg28: memref<1x32xf32, #tpu.memory_space<vmem>>, %arg29: memref<1x32xf32, #tpu.memory_space<vmem>>, %arg30: memref<1x32xf32, #tpu.memory_space<vmem>>, %arg31: memref<1x8x32xf32, #tpu.memory_space<vmem>>) attributes {dimension_semantics = [#tpu.dimension_semantics<parallel>], iteration_bounds = array<i64: 2>, scalar_prefetch = 0 : i64, scratch_operands = 0 : i64, tpu.core_type = #tpu.core_type<tc>, window_params = [{transform_indices = @transform_0, window_bounds = array<i64: 1, 8, 32>}, {transform_indices = @transform_1, window_bounds = array<i64: 1, 16, 32>}, {transform_indices = @transform_2, window_bounds = array<i64: 1, 1, 8, 16>}, {transform_indices = @transform_3, window_bounds = array<i64: 1, 1, 8, 8>}, {pipeline_mode = #tpu.pipeline_mode<synchronous>, transform_indices = @transform_4, window_bounds = array<i64: 32, 32>}, {pipeline_mode = #tpu.pipeline_mode<synchronous>, transform_indices = @transform_5, window_bounds = array<i64: 1, 32>}, {pipeline_mode = #tpu.pipeline_mode<synchronous>, transform_indices = @transform_6, window_bounds = array<i64: 32, 32>}, {pipeline_mode = #tpu.pipeline_mode<synchronous>, transform_indices = @transform_7, window_bounds = array<i64: 1, 32>}, {pipeline_mode = #tpu.pipeline_mode<synchronous>, transform_indices = @transform_8, window_bounds = array<i64: 32, 32>}, {pipeline_mode = #tpu.pipeline_mode<synchronous>, transform_indices = @transform_9, window_bounds = array<i64: 1, 32>}, {pipeline_mode = #tpu.pipeline_mode<synchronous>, transform_indices = @transform_10, window_bounds = array<i64: 32, 32>}, {pipeline_mode = #tpu.pipeline_mode<synchronous>, transform_indices = @transform_11, window_bounds = array<i64: 1, 32>}, {pipeline_mode = #tpu.pipeline_mode<synchronous>, transform_indices = @transform_12, window_bounds = array<i64: 32, 32>}, {pipeline_mode = #tpu.pipeline_mode<synchronous>, transform_indices = @transform_13, window_bounds = array<i64: 1, 32>}, {pipeline_mode = #tpu.pipeline_mode<synchronous>, transform_indices = @transform_14, window_bounds = array<i64: 32, 32>}, {pipeline_mode = #tpu.pipeline_mode<synchronous>, transform_indices = @transform_15, window_bounds = array<i64: 1, 32>}, {pipeline_mode = #tpu.pipeline_mode<synchronous>, transform_indices = @transform_16, window_bounds = array<i64: 32, 32>}, {pipeline_mode = #tpu.pipeline_mode<synchronous>, transform_indices = @transform_17, window_bounds = array<i64: 1, 32>}, {pipeline_mode = #tpu.pipeline_mode<synchronous>, transform_indices = @transform_18, window_bounds = array<i64: 32, 32>}, {pipeline_mode = #tpu.pipeline_mode<synchronous>, transform_indices = @transform_19, window_bounds = array<i64: 1, 32>}, {pipeline_mode = #tpu.pipeline_mode<synchronous>, transform_indices = @transform_20, window_bounds = array<i64: 32, 64>}, {pipeline_mode = #tpu.pipeline_mode<synchronous>, transform_indices = @transform_21, window_bounds = array<i64: 1, 64>}, {pipeline_mode = #tpu.pipeline_mode<synchronous>, transform_indices = @transform_22, window_bounds = array<i64: 64, 32>}, {pipeline_mode = #tpu.pipeline_mode<synchronous>, transform_indices = @transform_23, window_bounds = array<i64: 1, 32>}, {pipeline_mode = #tpu.pipeline_mode<synchronous>, transform_indices = @transform_24, window_bounds = array<i64: 1, 32>}, {pipeline_mode = #tpu.pipeline_mode<synchronous>, transform_indices = @transform_25, window_bounds = array<i64: 1, 32>}, {pipeline_mode = #tpu.pipeline_mode<synchronous>, transform_indices = @transform_26, window_bounds = array<i64: 1, 32>}, {pipeline_mode = #tpu.pipeline_mode<synchronous>, transform_indices = @transform_27, window_bounds = array<i64: 1, 32>}, {pipeline_mode = #tpu.pipeline_mode<synchronous>, transform_indices = @transform_28, window_bounds = array<i64: 1, 32>}, {pipeline_mode = #tpu.pipeline_mode<synchronous>, transform_indices = @transform_29, window_bounds = array<i64: 1, 32>}, {transform_indices = @transform_30, window_bounds = array<i64: 1, 8, 32>}]} {
    %c0 = arith.constant 0 : index
    %c0_0 = arith.constant 0 : index
    %c0_1 = arith.constant 0 : index
    %0 = vector.load %arg1[%c0, %c0_0, %c0_1] : memref<1x8x32xf32, #tpu.memory_space<vmem>>, vector<1x8x32xf32>
    %1 = vector.shape_cast %0 : vector<1x8x32xf32> to vector<8x32xf32>
    %c0_2 = arith.constant 0 : index
    %c0_3 = arith.constant 0 : index
    %c0_4 = arith.constant 0 : index
    %2 = vector.load %arg2[%c0_2, %c0_3, %c0_4] : memref<1x16x32xf32, #tpu.memory_space<vmem>>, vector<1x16x32xf32>
    %3 = vector.shape_cast %2 : vector<1x16x32xf32> to vector<16x32xf32>
    %c0_5 = arith.constant 0 : index
    %c0_6 = arith.constant 0 : index
    %c0_7 = arith.constant 0 : index
    %c0_8 = arith.constant 0 : index
    %4 = vector.load %arg4[%c0_5, %c0_6, %c0_7, %c0_8] : memref<1x1x8x8xi8, #tpu.memory_space<vmem>>, vector<1x1x8x8xi8>
    %5 = vector.shape_cast %4 : vector<1x1x8x8xi8> to vector<8x8xi8>
    %c0_i8 = arith.constant 0 : i8
    %6 = vector.broadcast %c0_i8 : i8 to vector<8x8xi8>
    %7 = arith.cmpi ne, %5, %6 : vector<8x8xi8>
    %c0_9 = arith.constant 0 : index
    %c0_10 = arith.constant 0 : index
    %c0_11 = arith.constant 0 : index
    %c0_12 = arith.constant 0 : index
    %8 = vector.load %arg3[%c0_9, %c0_10, %c0_11, %c0_12] : memref<1x1x8x16xi8, #tpu.memory_space<vmem>>, vector<1x1x8x16xi8>
    %9 = vector.shape_cast %8 : vector<1x1x8x16xi8> to vector<8x16xi8>
    %c0_i8_13 = arith.constant 0 : i8
    %10 = vector.broadcast %c0_i8_13 : i8 to vector<8x16xi8>
    %11 = arith.cmpi ne, %9, %10 : vector<8x16xi8>
    %c0_14 = arith.constant 0 : index
    %c0_15 = arith.constant 0 : index
    %12 = vector.load %arg5[%c0_14, %c0_15] : memref<32x32xf32, #tpu.memory_space<vmem>>, vector<32x32xf32>
    %cst = arith.constant dense<0.000000e+00> : vector<8x32xf32>
    %13 = tpu.matmul %1, %12, %cst {dimension_numbers = #tpu.dot_dimension_numbers<[1], [0], [0], [1], [0, 0, 1, 1], [], []>} : vector<8x32xf32>, vector<32x32xf32>, vector<8x32xf32> -> vector<8x32xf32>
    %c0_16 = arith.constant 0 : index
    %c0_17 = arith.constant 0 : index
    %14 = vector.load %arg6[%c0_16, %c0_17] : memref<1x32xf32, #tpu.memory_space<vmem>>, vector<1x32xf32>
    %15 = vector.broadcast %14 : vector<1x32xf32> to vector<8x32xf32>
    %16 = arith.addf %13, %15 : vector<8x32xf32>
    %c0_18 = arith.constant 0 : index
    %c0_19 = arith.constant 0 : index
    %17 = vector.load %arg7[%c0_18, %c0_19] : memref<32x32xf32, #tpu.memory_space<vmem>>, vector<32x32xf32>
    %cst_20 = arith.constant dense<0.000000e+00> : vector<8x32xf32>
    %18 = tpu.matmul %1, %17, %cst_20 {dimension_numbers = #tpu.dot_dimension_numbers<[1], [0], [0], [1], [0, 0, 1, 1], [], []>} : vector<8x32xf32>, vector<32x32xf32>, vector<8x32xf32> -> vector<8x32xf32>
    %c0_21 = arith.constant 0 : index
    %c0_22 = arith.constant 0 : index
    %19 = vector.load %arg8[%c0_21, %c0_22] : memref<1x32xf32, #tpu.memory_space<vmem>>, vector<1x32xf32>
    %20 = vector.broadcast %19 : vector<1x32xf32> to vector<8x32xf32>
    %21 = arith.addf %18, %20 : vector<8x32xf32>
    %c0_23 = arith.constant 0 : index
    %c0_24 = arith.constant 0 : index
    %22 = vector.load %arg9[%c0_23, %c0_24] : memref<32x32xf32, #tpu.memory_space<vmem>>, vector<32x32xf32>
    %cst_25 = arith.constant dense<0.000000e+00> : vector<8x32xf32>
    %23 = tpu.matmul %1, %22, %cst_25 {dimension_numbers = #tpu.dot_dimension_numbers<[1], [0], [0], [1], [0, 0, 1, 1], [], []>} : vector<8x32xf32>, vector<32x32xf32>, vector<8x32xf32> -> vector<8x32xf32>
    %c0_26 = arith.constant 0 : index
    %c0_27 = arith.constant 0 : index
    %24 = vector.load %arg10[%c0_26, %c0_27] : memref<1x32xf32, #tpu.memory_space<vmem>>, vector<1x32xf32>
    %25 = vector.broadcast %24 : vector<1x32xf32> to vector<8x32xf32>
    %26 = arith.addf %23, %25 : vector<8x32xf32>
    %27 = vector.shape_cast %16 : vector<8x32xf32> to vector<8x4x8xf32>
    %28 = tpu.transpose %27, [1, 0, 2] : vector<8x4x8xf32> -> vector<4x8x8xf32>
    %29 = vector.shape_cast %21 : vector<8x32xf32> to vector<8x4x8xf32>
    %30 = tpu.transpose %29, [1, 0, 2] : vector<8x4x8xf32> -> vector<4x8x8xf32>
    %31 = vector.shape_cast %26 : vector<8x32xf32> to vector<8x4x8xf32>
    %32 = tpu.transpose %31, [1, 0, 2] : vector<8x4x8xf32> -> vector<4x8x8xf32>
    "tpu.trace_start"() <{level = 10 : i32, message = "hqd,hkd->hqk"}> : () -> ()
    %cst_28 = arith.constant dense<0.000000e+00> : vector<4x8x8xf32>
    %33 = tpu.matmul %28, %30, %cst_28 {dimension_numbers = #tpu.dot_dimension_numbers<[2], [2], [1], [1], [0, 0, 0, 1, 1, 1], [0], [0]>} : vector<4x8x8xf32>, vector<4x8x8xf32>, vector<4x8x8xf32> -> vector<4x8x8xf32>
    "tpu.trace_stop"() : () -> ()
    %34 = vector.shape_cast %7 : vector<8x8xi1> to vector<1x8x8xi1>
    %cst_29 = arith.constant -1.000000e+30 : f32
    %35 = vector.shape_cast %34 : vector<1x8x8xi1> to vector<1x8x8xi1>
    %36 = vector.broadcast %35 : vector<1x8x8xi1> to vector<4x8x8xi1>
    %37 = vector.broadcast %cst_29 : f32 to vector<4x8x8xf32>
    %38 = arith.select %36, %33, %37 : vector<4x8x8xi1>, vector<4x8x8xf32>
    %cst_30 = arith.constant dense<0xFF800000> : vector<4x8xf32>
    %39 = vector.multi_reduction <maximumf>, %38, %cst_30 [2] : vector<4x8x8xf32> to vector<4x8xf32>
    %40 = vector.shape_cast %39 : vector<4x8xf32> to vector<4x8x1xf32>
    %41 = vector.broadcast %40 : vector<4x8x1xf32> to vector<4x8x8xf32>
    %42 = arith.subf %38, %41 : vector<4x8x8xf32>
    %43 = math.exp %42 : vector<4x8x8xf32>
    %cst_31 = arith.constant dense<0.000000e+00> : vector<4x8xf32>
    %44 = vector.multi_reduction <add>, %43, %cst_31 [2] : vector<4x8x8xf32> to vector<4x8xf32>
    %45 = vector.shape_cast %44 : vector<4x8xf32> to vector<4x8x1xf32>
    %46 = vector.broadcast %45 : vector<4x8x1xf32> to vector<4x8x8xf32>
    %47 = arith.divf %43, %46 : vector<4x8x8xf32>
    "tpu.trace_start"() <{level = 10 : i32, message = "hqk,hkd->hqd"}> : () -> ()
    %cst_32 = arith.constant dense<0.000000e+00> : vector<4x8x8xf32>
    %48 = tpu.matmul %47, %32, %cst_32 {dimension_numbers = #tpu.dot_dimension_numbers<[2], [1], [1], [2], [0, 0, 0, 1, 1, 2], [0], [0]>} : vector<4x8x8xf32>, vector<4x8x8xf32>, vector<4x8x8xf32> -> vector<4x8x8xf32>
    "tpu.trace_stop"() : () -> ()
    %49 = tpu.transpose %48, [1, 0, 2] : vector<4x8x8xf32> -> vector<8x4x8xf32>
    %50 = vector.shape_cast %49 : vector<8x4x8xf32> to vector<8x32xf32>
    %c0_33 = arith.constant 0 : index
    %c0_34 = arith.constant 0 : index
    %51 = vector.load %arg11[%c0_33, %c0_34] : memref<32x32xf32, #tpu.memory_space<vmem>>, vector<32x32xf32>
    %cst_35 = arith.constant dense<0.000000e+00> : vector<8x32xf32>
    %52 = tpu.matmul %50, %51, %cst_35 {dimension_numbers = #tpu.dot_dimension_numbers<[1], [0], [0], [1], [0, 0, 1, 1], [], []>} : vector<8x32xf32>, vector<32x32xf32>, vector<8x32xf32> -> vector<8x32xf32>
    %c0_36 = arith.constant 0 : index
    %c0_37 = arith.constant 0 : index
    %53 = vector.load %arg12[%c0_36, %c0_37] : memref<1x32xf32, #tpu.memory_space<vmem>>, vector<1x32xf32>
    %54 = vector.broadcast %53 : vector<1x32xf32> to vector<8x32xf32>
    %55 = arith.addf %52, %54 : vector<8x32xf32>
    %56 = arith.addf %1, %55 : vector<8x32xf32>
    %cst_38 = arith.constant dense<0.000000e+00> : vector<8xf32>
    %57 = vector.multi_reduction <add>, %56, %cst_38 [1] : vector<8x32xf32> to vector<8xf32>
    %58 = vector.shape_cast %57 : vector<8xf32> to vector<8x1xf32>
    %cst_39 = arith.constant 3.200000e+01 : f32
    %59 = vector.broadcast %cst_39 : f32 to vector<8x1xf32>
    %60 = arith.divf %58, %59 : vector<8x1xf32>
    %61 = vector.broadcast %60 : vector<8x1xf32> to vector<8x32xf32>
    %62 = arith.subf %56, %61 : vector<8x32xf32>
    %63 = arith.mulf %62, %62 : vector<8x32xf32>
    %cst_40 = arith.constant dense<0.000000e+00> : vector<8xf32>
    %64 = vector.multi_reduction <add>, %63, %cst_40 [1] : vector<8x32xf32> to vector<8xf32>
    %65 = vector.shape_cast %64 : vector<8xf32> to vector<8x1xf32>
    %cst_41 = arith.constant 3.200000e+01 : f32
    %66 = vector.broadcast %cst_41 : f32 to vector<8x1xf32>
    %67 = arith.divf %65, %66 : vector<8x1xf32>
    %68 = vector.broadcast %60 : vector<8x1xf32> to vector<8x32xf32>
    %69 = arith.subf %56, %68 : vector<8x32xf32>
    %cst_42 = arith.constant 9.99999974E-6 : f32
    %70 = vector.broadcast %cst_42 : f32 to vector<8x1xf32>
    %71 = arith.addf %67, %70 : vector<8x1xf32>
    %72 = math.rsqrt %71 : vector<8x1xf32>
    %73 = vector.broadcast %72 : vector<8x1xf32> to vector<8x32xf32>
    %74 = arith.mulf %69, %73 : vector<8x32xf32>
    %c0_43 = arith.constant 0 : index
    %c0_44 = arith.constant 0 : index
    %75 = vector.load %arg25[%c0_43, %c0_44] : memref<1x32xf32, #tpu.memory_space<vmem>>, vector<1x32xf32>
    %76 = vector.broadcast %75 : vector<1x32xf32> to vector<8x32xf32>
    %77 = arith.mulf %74, %76 : vector<8x32xf32>
    %c0_45 = arith.constant 0 : index
    %c0_46 = arith.constant 0 : index
    %78 = vector.load %arg26[%c0_45, %c0_46] : memref<1x32xf32, #tpu.memory_space<vmem>>, vector<1x32xf32>
    %79 = vector.broadcast %78 : vector<1x32xf32> to vector<8x32xf32>
    %80 = arith.addf %77, %79 : vector<8x32xf32>
    %c0_47 = arith.constant 0 : index
    %c0_48 = arith.constant 0 : index
    %81 = vector.load %arg13[%c0_47, %c0_48] : memref<32x32xf32, #tpu.memory_space<vmem>>, vector<32x32xf32>
    %cst_49 = arith.constant dense<0.000000e+00> : vector<8x32xf32>
    %82 = tpu.matmul %80, %81, %cst_49 {dimension_numbers = #tpu.dot_dimension_numbers<[1], [0], [0], [1], [0, 0, 1, 1], [], []>} : vector<8x32xf32>, vector<32x32xf32>, vector<8x32xf32> -> vector<8x32xf32>
    %c0_50 = arith.constant 0 : index
    %c0_51 = arith.constant 0 : index
    %83 = vector.load %arg14[%c0_50, %c0_51] : memref<1x32xf32, #tpu.memory_space<vmem>>, vector<1x32xf32>
    %84 = vector.broadcast %83 : vector<1x32xf32> to vector<8x32xf32>
    %85 = arith.addf %82, %84 : vector<8x32xf32>
    %c0_52 = arith.constant 0 : index
    %c0_53 = arith.constant 0 : index
    %86 = vector.load %arg15[%c0_52, %c0_53] : memref<32x32xf32, #tpu.memory_space<vmem>>, vector<32x32xf32>
    %cst_54 = arith.constant dense<0.000000e+00> : vector<16x32xf32>
    %87 = tpu.matmul %3, %86, %cst_54 {dimension_numbers = #tpu.dot_dimension_numbers<[1], [0], [0], [1], [0, 0, 1, 1], [], []>} : vector<16x32xf32>, vector<32x32xf32>, vector<16x32xf32> -> vector<16x32xf32>
    %c0_55 = arith.constant 0 : index
    %c0_56 = arith.constant 0 : index
    %88 = vector.load %arg16[%c0_55, %c0_56] : memref<1x32xf32, #tpu.memory_space<vmem>>, vector<1x32xf32>
    %89 = vector.broadcast %88 : vector<1x32xf32> to vector<16x32xf32>
    %90 = arith.addf %87, %89 : vector<16x32xf32>
    %c0_57 = arith.constant 0 : index
    %c0_58 = arith.constant 0 : index
    %91 = vector.load %arg17[%c0_57, %c0_58] : memref<32x32xf32, #tpu.memory_space<vmem>>, vector<32x32xf32>
    %cst_59 = arith.constant dense<0.000000e+00> : vector<16x32xf32>
    %92 = tpu.matmul %3, %91, %cst_59 {dimension_numbers = #tpu.dot_dimension_numbers<[1], [0], [0], [1], [0, 0, 1, 1], [], []>} : vector<16x32xf32>, vector<32x32xf32>, vector<16x32xf32> -> vector<16x32xf32>
    %c0_60 = arith.constant 0 : index
    %c0_61 = arith.constant 0 : index
    %93 = vector.load %arg18[%c0_60, %c0_61] : memref<1x32xf32, #tpu.memory_space<vmem>>, vector<1x32xf32>
    %94 = vector.broadcast %93 : vector<1x32xf32> to vector<16x32xf32>
    %95 = arith.addf %92, %94 : vector<16x32xf32>
    %96 = vector.shape_cast %85 : vector<8x32xf32> to vector<8x4x8xf32>
    %97 = tpu.transpose %96, [1, 0, 2] : vector<8x4x8xf32> -> vector<4x8x8xf32>
    %98 = vector.shape_cast %90 : vector<16x32xf32> to vector<16x4x8xf32>
    %99 = tpu.transpose %98, [1, 0, 2] : vector<16x4x8xf32> -> vector<4x16x8xf32>
    %100 = vector.shape_cast %95 : vector<16x32xf32> to vector<16x4x8xf32>
    %101 = tpu.transpose %100, [1, 0, 2] : vector<16x4x8xf32> -> vector<4x16x8xf32>
    "tpu.trace_start"() <{level = 10 : i32, message = "hqd,hkd->hqk"}> : () -> ()
    %cst_62 = arith.constant dense<0.000000e+00> : vector<4x8x16xf32>
    %102 = tpu.matmul %97, %99, %cst_62 {dimension_numbers = #tpu.dot_dimension_numbers<[2], [2], [1], [1], [0, 0, 0, 1, 1, 1], [0], [0]>} : vector<4x8x8xf32>, vector<4x16x8xf32>, vector<4x8x16xf32> -> vector<4x8x16xf32>
    "tpu.trace_stop"() : () -> ()
    %103 = vector.shape_cast %11 : vector<8x16xi1> to vector<1x8x16xi1>
    %cst_63 = arith.constant -1.000000e+30 : f32
    %104 = vector.shape_cast %103 : vector<1x8x16xi1> to vector<1x8x16xi1>
    %105 = vector.broadcast %104 : vector<1x8x16xi1> to vector<4x8x16xi1>
    %106 = vector.broadcast %cst_63 : f32 to vector<4x8x16xf32>
    %107 = arith.select %105, %102, %106 : vector<4x8x16xi1>, vector<4x8x16xf32>
    %cst_64 = arith.constant dense<0xFF800000> : vector<4x8xf32>
    %108 = vector.multi_reduction <maximumf>, %107, %cst_64 [2] : vector<4x8x16xf32> to vector<4x8xf32>
    %109 = vector.shape_cast %108 : vector<4x8xf32> to vector<4x8x1xf32>
    %110 = vector.broadcast %109 : vector<4x8x1xf32> to vector<4x8x16xf32>
    %111 = arith.subf %107, %110 : vector<4x8x16xf32>
    %112 = math.exp %111 : vector<4x8x16xf32>
    %cst_65 = arith.constant dense<0.000000e+00> : vector<4x8xf32>
    %113 = vector.multi_reduction <add>, %112, %cst_65 [2] : vector<4x8x16xf32> to vector<4x8xf32>
    %114 = vector.shape_cast %113 : vector<4x8xf32> to vector<4x8x1xf32>
    %115 = vector.broadcast %114 : vector<4x8x1xf32> to vector<4x8x16xf32>
    %116 = arith.divf %112, %115 : vector<4x8x16xf32>
    "tpu.trace_start"() <{level = 10 : i32, message = "hqk,hkd->hqd"}> : () -> ()
    %cst_66 = arith.constant dense<0.000000e+00> : vector<4x8x8xf32>
    %117 = tpu.matmul %116, %101, %cst_66 {dimension_numbers = #tpu.dot_dimension_numbers<[2], [1], [1], [2], [0, 0, 0, 1, 1, 2], [0], [0]>} : vector<4x8x16xf32>, vector<4x16x8xf32>, vector<4x8x8xf32> -> vector<4x8x8xf32>
    "tpu.trace_stop"() : () -> ()
    %118 = tpu.transpose %117, [1, 0, 2] : vector<4x8x8xf32> -> vector<8x4x8xf32>
    %119 = vector.shape_cast %118 : vector<8x4x8xf32> to vector<8x32xf32>
    %c0_67 = arith.constant 0 : index
    %c0_68 = arith.constant 0 : index
    %120 = vector.load %arg19[%c0_67, %c0_68] : memref<32x32xf32, #tpu.memory_space<vmem>>, vector<32x32xf32>
    %cst_69 = arith.constant dense<0.000000e+00> : vector<8x32xf32>
    %121 = tpu.matmul %119, %120, %cst_69 {dimension_numbers = #tpu.dot_dimension_numbers<[1], [0], [0], [1], [0, 0, 1, 1], [], []>} : vector<8x32xf32>, vector<32x32xf32>, vector<8x32xf32> -> vector<8x32xf32>
    %c0_70 = arith.constant 0 : index
    %c0_71 = arith.constant 0 : index
    %122 = vector.load %arg20[%c0_70, %c0_71] : memref<1x32xf32, #tpu.memory_space<vmem>>, vector<1x32xf32>
    %123 = vector.broadcast %122 : vector<1x32xf32> to vector<8x32xf32>
    %124 = arith.addf %121, %123 : vector<8x32xf32>
    %125 = arith.addf %80, %124 : vector<8x32xf32>
    %cst_72 = arith.constant dense<0.000000e+00> : vector<8xf32>
    %126 = vector.multi_reduction <add>, %125, %cst_72 [1] : vector<8x32xf32> to vector<8xf32>
    %127 = vector.shape_cast %126 : vector<8xf32> to vector<8x1xf32>
    %cst_73 = arith.constant 3.200000e+01 : f32
    %128 = vector.broadcast %cst_73 : f32 to vector<8x1xf32>
    %129 = arith.divf %127, %128 : vector<8x1xf32>
    %130 = vector.broadcast %129 : vector<8x1xf32> to vector<8x32xf32>
    %131 = arith.subf %125, %130 : vector<8x32xf32>
    %132 = arith.mulf %131, %131 : vector<8x32xf32>
    %cst_74 = arith.constant dense<0.000000e+00> : vector<8xf32>
    %133 = vector.multi_reduction <add>, %132, %cst_74 [1] : vector<8x32xf32> to vector<8xf32>
    %134 = vector.shape_cast %133 : vector<8xf32> to vector<8x1xf32>
    %cst_75 = arith.constant 3.200000e+01 : f32
    %135 = vector.broadcast %cst_75 : f32 to vector<8x1xf32>
    %136 = arith.divf %134, %135 : vector<8x1xf32>
    %137 = vector.broadcast %129 : vector<8x1xf32> to vector<8x32xf32>
    %138 = arith.subf %125, %137 : vector<8x32xf32>
    %cst_76 = arith.constant 9.99999974E-6 : f32
    %139 = vector.broadcast %cst_76 : f32 to vector<8x1xf32>
    %140 = arith.addf %136, %139 : vector<8x1xf32>
    %141 = math.rsqrt %140 : vector<8x1xf32>
    %142 = vector.broadcast %141 : vector<8x1xf32> to vector<8x32xf32>
    %143 = arith.mulf %138, %142 : vector<8x32xf32>
    %c0_77 = arith.constant 0 : index
    %c0_78 = arith.constant 0 : index
    %144 = vector.load %arg27[%c0_77, %c0_78] : memref<1x32xf32, #tpu.memory_space<vmem>>, vector<1x32xf32>
    %145 = vector.broadcast %144 : vector<1x32xf32> to vector<8x32xf32>
    %146 = arith.mulf %143, %145 : vector<8x32xf32>
    %c0_79 = arith.constant 0 : index
    %c0_80 = arith.constant 0 : index
    %147 = vector.load %arg28[%c0_79, %c0_80] : memref<1x32xf32, #tpu.memory_space<vmem>>, vector<1x32xf32>
    %148 = vector.broadcast %147 : vector<1x32xf32> to vector<8x32xf32>
    %149 = arith.addf %146, %148 : vector<8x32xf32>
    %c0_81 = arith.constant 0 : index
    %c0_82 = arith.constant 0 : index
    %150 = vector.load %arg21[%c0_81, %c0_82] : memref<32x64xf32, #tpu.memory_space<vmem>>, vector<32x64xf32>
    %cst_83 = arith.constant dense<0.000000e+00> : vector<8x64xf32>
    %151 = tpu.matmul %149, %150, %cst_83 {dimension_numbers = #tpu.dot_dimension_numbers<[1], [0], [0], [1], [0, 0, 1, 1], [], []>} : vector<8x32xf32>, vector<32x64xf32>, vector<8x64xf32> -> vector<8x64xf32>
    %c0_84 = arith.constant 0 : index
    %c0_85 = arith.constant 0 : index
    %152 = vector.load %arg22[%c0_84, %c0_85] : memref<1x64xf32, #tpu.memory_space<vmem>>, vector<1x64xf32>
    %153 = vector.broadcast %152 : vector<1x64xf32> to vector<8x64xf32>
    %154 = arith.addf %151, %153 : vector<8x64xf32>
    %cst_86 = arith.constant 0.000000e+00 : f32
    %155 = vector.broadcast %cst_86 : f32 to vector<8x64xf32>
    %156 = arith.maximumf %154, %155 : vector<8x64xf32>
    %c0_87 = arith.constant 0 : index
    %c0_88 = arith.constant 0 : index
    %157 = vector.load %arg23[%c0_87, %c0_88] : memref<64x32xf32, #tpu.memory_space<vmem>>, vector<64x32xf32>
    %cst_89 = arith.constant dense<0.000000e+00> : vector<8x32xf32>
    %158 = tpu.matmul %156, %157, %cst_89 {dimension_numbers = #tpu.dot_dimension_numbers<[1], [0], [0], [1], [0, 0, 1, 1], [], []>} : vector<8x64xf32>, vector<64x32xf32>, vector<8x32xf32> -> vector<8x32xf32>
    %c0_90 = arith.constant 0 : index
    %c0_91 = arith.constant 0 : index
    %159 = vector.load %arg24[%c0_90, %c0_91] : memref<1x32xf32, #tpu.memory_space<vmem>>, vector<1x32xf32>
    %160 = vector.broadcast %159 : vector<1x32xf32> to vector<8x32xf32>
    %161 = arith.addf %158, %160 : vector<8x32xf32>
    %162 = arith.addf %149, %161 : vector<8x32xf32>
    %cst_92 = arith.constant dense<0.000000e+00> : vector<8xf32>
    %163 = vector.multi_reduction <add>, %162, %cst_92 [1] : vector<8x32xf32> to vector<8xf32>
    %164 = vector.shape_cast %163 : vector<8xf32> to vector<8x1xf32>
    %cst_93 = arith.constant 3.200000e+01 : f32
    %165 = vector.broadcast %cst_93 : f32 to vector<8x1xf32>
    %166 = arith.divf %164, %165 : vector<8x1xf32>
    %167 = vector.broadcast %166 : vector<8x1xf32> to vector<8x32xf32>
    %168 = arith.subf %162, %167 : vector<8x32xf32>
    %169 = arith.mulf %168, %168 : vector<8x32xf32>
    %cst_94 = arith.constant dense<0.000000e+00> : vector<8xf32>
    %170 = vector.multi_reduction <add>, %169, %cst_94 [1] : vector<8x32xf32> to vector<8xf32>
    %171 = vector.shape_cast %170 : vector<8xf32> to vector<8x1xf32>
    %cst_95 = arith.constant 3.200000e+01 : f32
    %172 = vector.broadcast %cst_95 : f32 to vector<8x1xf32>
    %173 = arith.divf %171, %172 : vector<8x1xf32>
    %174 = vector.broadcast %166 : vector<8x1xf32> to vector<8x32xf32>
    %175 = arith.subf %162, %174 : vector<8x32xf32>
    %cst_96 = arith.constant 9.99999974E-6 : f32
    %176 = vector.broadcast %cst_96 : f32 to vector<8x1xf32>
    %177 = arith.addf %173, %176 : vector<8x1xf32>
    %178 = math.rsqrt %177 : vector<8x1xf32>
    %179 = vector.broadcast %178 : vector<8x1xf32> to vector<8x32xf32>
    %180 = arith.mulf %175, %179 : vector<8x32xf32>
    %c0_97 = arith.constant 0 : index
    %c0_98 = arith.constant 0 : index
    %181 = vector.load %arg29[%c0_97, %c0_98] : memref<1x32xf32, #tpu.memory_space<vmem>>, vector<1x32xf32>
    %182 = vector.broadcast %181 : vector<1x32xf32> to vector<8x32xf32>
    %183 = arith.mulf %180, %182 : vector<8x32xf32>
    %c0_99 = arith.constant 0 : index
    %c0_100 = arith.constant 0 : index
    %184 = vector.load %arg30[%c0_99, %c0_100] : memref<1x32xf32, #tpu.memory_space<vmem>>, vector<1x32xf32>
    %185 = vector.broadcast %184 : vector<1x32xf32> to vector<8x32xf32>
    %186 = arith.addf %183, %185 : vector<8x32xf32>
    %187 = vector.shape_cast %186 : vector<8x32xf32> to vector<1x8x32xf32>
    %c0_101 = arith.constant 0 : index
    %c0_102 = arith.constant 0 : index
    %c0_103 = arith.constant 0 : index
    %188 = vector.load %arg31[%c0_101, %c0_102, %c0_103] : memref<1x8x32xf32, #tpu.memory_space<vmem>>, vector<1x8x32xf32>
    tpu.vector_store %arg31[%c0_101, %c0_102, %c0_103], %187 {strides = array<i32>} : memref<1x8x32xf32, #tpu.memory_space<vmem>>, vector<1x8x32xf32>,
    return
  }
  func.func @transform_0(%arg0: i32) -> (i32, i32, i32) {
    %c0_i32 = arith.constant 0 : i32
    %c0_i32_0 = arith.constant 0 : i32
    %c0_i32_1 = arith.constant 0 : i32
    return %arg0, %c0_i32, %c0_i32_0 : i32, i32, i32
  }
  func.func @transform_1(%arg0: i32) -> (i32, i32, i32) {
    %c0_i32 = arith.constant 0 : i32
    %c0_i32_0 = arith.constant 0 : i32
    %c0_i32_1 = arith.constant 0 : i32
    return %arg0, %c0_i32, %c0_i32_0 : i32, i32, i32
  }
  func.func @transform_2(%arg0: i32) -> (i32, i32, i32, i32) {
    %c0_i32 = arith.constant 0 : i32
    %c0_i32_0 = arith.constant 0 : i32
    %c0_i32_1 = arith.constant 0 : i32
    %c0_i32_2 = arith.constant 0 : i32
    return %arg0, %c0_i32, %c0_i32_0, %c0_i32_1 : i32, i32, i32, i32
  }
  func.func @transform_3(%arg0: i32) -> (i32, i32, i32, i32) {
    %c0_i32 = arith.constant 0 : i32
    %c0_i32_0 = arith.constant 0 : i32
    %c0_i32_1 = arith.constant 0 : i32
    %c0_i32_2 = arith.constant 0 : i32
    return %arg0, %c0_i32, %c0_i32_0, %c0_i32_1 : i32, i32, i32, i32
  }
  func.func @transform_4(%arg0: i32) -> (i32, i32) {
    %c0_i32 = arith.constant 0 : i32
    %c0_i32_0 = arith.constant 0 : i32
    %c0_i32_1 = arith.constant 0 : i32
    return %c0_i32, %c0_i32_0 : i32, i32
  }
  func.func @transform_5(%arg0: i32) -> (i32, i32) {
    %c0_i32 = arith.constant 0 : i32
    %c0_i32_0 = arith.constant 0 : i32
    %c0_i32_1 = arith.constant 0 : i32
    return %c0_i32, %c0_i32_0 : i32, i32
  }
  func.func @transform_6(%arg0: i32) -> (i32, i32) {
    %c0_i32 = arith.constant 0 : i32
    %c0_i32_0 = arith.constant 0 : i32
    %c0_i32_1 = arith.constant 0 : i32
    return %c0_i32, %c0_i32_0 : i32, i32
  }
  func.func @transform_7(%arg0: i32) -> (i32, i32) {
    %c0_i32 = arith.constant 0 : i32
    %c0_i32_0 = arith.constant 0 : i32
    %c0_i32_1 = arith.constant 0 : i32
    return %c0_i32, %c0_i32_0 : i32, i32
  }
  func.func @transform_8(%arg0: i32) -> (i32, i32) {
    %c0_i32 = arith.constant 0 : i32
    %c0_i32_0 = arith.constant 0 : i32
    %c0_i32_1 = arith.constant 0 : i32
    return %c0_i32, %c0_i32_0 : i32, i32
  }
  func.func @transform_9(%arg0: i32) -> (i32, i32) {
    %c0_i32 = arith.constant 0 : i32
    %c0_i32_0 = arith.constant 0 : i32
    %c0_i32_1 = arith.constant 0 : i32
    return %c0_i32, %c0_i32_0 : i32, i32
  }
  func.func @transform_10(%arg0: i32) -> (i32, i32) {
    %c0_i32 = arith.constant 0 : i32
    %c0_i32_0 = arith.constant 0 : i32
    %c0_i32_1 = arith.constant 0 : i32
    return %c0_i32, %c0_i32_0 : i32, i32
  }
  func.func @transform_11(%arg0: i32) -> (i32, i32) {
    %c0_i32 = arith.constant 0 : i32
    %c0_i32_0 = arith.constant 0 : i32
    %c0_i32_1 = arith.constant 0 : i32
    return %c0_i32, %c0_i32_0 : i32, i32
  }
  func.func @transform_12(%arg0: i32) -> (i32, i32) {
    %c0_i32 = arith.constant 0 : i32
    %c0_i32_0 = arith.constant 0 : i32
    %c0_i32_1 = arith.constant 0 : i32
    return %c0_i32, %c0_i32_0 : i32, i32
  }
  func.func @transform_13(%arg0: i32) -> (i32, i32) {
    %c0_i32 = arith.constant 0 : i32
    %c0_i32_0 = arith.constant 0 : i32
    %c0_i32_1 = arith.constant 0 : i32
    return %c0_i32, %c0_i32_0 : i32, i32
  }
  func.func @transform_14(%arg0: i32) -> (i32, i32) {
    %c0_i32 = arith.constant 0 : i32
    %c0_i32_0 = arith.constant 0 : i32
    %c0_i32_1 = arith.constant 0 : i32
    return %c0_i32, %c0_i32_0 : i32, i32
  }
  func.func @transform_15(%arg0: i32) -> (i32, i32) {
    %c0_i32 = arith.constant 0 : i32
    %c0_i32_0 = arith.constant 0 : i32
    %c0_i32_1 = arith.constant 0 : i32
    return %c0_i32, %c0_i32_0 : i32, i32
  }
  func.func @transform_16(%arg0: i32) -> (i32, i32) {
    %c0_i32 = arith.constant 0 : i32
    %c0_i32_0 = arith.constant 0 : i32
    %c0_i32_1 = arith.constant 0 : i32
    return %c0_i32, %c0_i32_0 : i32, i32
  }
  func.func @transform_17(%arg0: i32) -> (i32, i32) {
    %c0_i32 = arith.constant 0 : i32
    %c0_i32_0 = arith.constant 0 : i32
    %c0_i32_1 = arith.constant 0 : i32
    return %c0_i32, %c0_i32_0 : i32, i32
  }
  func.func @transform_18(%arg0: i32) -> (i32, i32) {
    %c0_i32 = arith.constant 0 : i32
    %c0_i32_0 = arith.constant 0 : i32
    %c0_i32_1 = arith.constant 0 : i32
    return %c0_i32, %c0_i32_0 : i32, i32
  }
  func.func @transform_19(%arg0: i32) -> (i32, i32) {
    %c0_i32 = arith.constant 0 : i32
    %c0_i32_0 = arith.constant 0 : i32
    %c0_i32_1 = arith.constant 0 : i32
    return %c0_i32, %c0_i32_0 : i32, i32
  }
  func.func @transform_20(%arg0: i32) -> (i32, i32) {
    %c0_i32 = arith.constant 0 : i32
    %c0_i32_0 = arith.constant 0 : i32
    %c0_i32_1 = arith.constant 0 : i32
    return %c0_i32, %c0_i32_0 : i32, i32
  }
  func.func @transform_21(%arg0: i32) -> (i32, i32) {
    %c0_i32 = arith.constant 0 : i32
    %c0_i32_0 = arith.constant 0 : i32
    %c0_i32_1 = arith.constant 0 : i32
    return %c0_i32, %c0_i32_0 : i32, i32
  }
  func.func @transform_22(%arg0: i32) -> (i32, i32) {
    %c0_i32 = arith.constant 0 : i32
    %c0_i32_0 = arith.constant 0 : i32
    %c0_i32_1 = arith.constant 0 : i32
    return %c0_i32, %c0_i32_0 : i32, i32
  }
  func.func @transform_23(%arg0: i32) -> (i32, i32) {
    %c0_i32 = arith.constant 0 : i32
    %c0_i32_0 = arith.constant 0 : i32
    %c0_i32_1 = arith.constant 0 : i32
    return %c0_i32, %c0_i32_0 : i32, i32
  }
  func.func @transform_24(%arg0: i32) -> (i32, i32) {
    %c0_i32 = arith.constant 0 : i32
    %c0_i32_0 = arith.constant 0 : i32
    %c0_i32_1 = arith.constant 0 : i32
    return %c0_i32, %c0_i32_0 : i32, i32
  }
  func.func @transform_25(%arg0: i32) -> (i32, i32) {
    %c0_i32 = arith.constant 0 : i32
    %c0_i32_0 = arith.constant 0 : i32
    %c0_i32_1 = arith.constant 0 : i32
    return %c0_i32, %c0_i32_0 : i32, i32
  }
  func.func @transform_26(%arg0: i32) -> (i32, i32) {
    %c0_i32 = arith.constant 0 : i32
    %c0_i32_0 = arith.constant 0 : i32
    %c0_i32_1 = arith.constant 0 : i32
    return %c0_i32, %c0_i32_0 : i32, i32
  }
  func.func @transform_27(%arg0: i32) -> (i32, i32) {
    %c0_i32 = arith.constant 0 : i32
    %c0_i32_0 = arith.constant 0 : i32
    %c0_i32_1 = arith.constant 0 : i32
    return %c0_i32, %c0_i32_0 : i32, i32
  }
  func.func @transform_28(%arg0: i32) -> (i32, i32) {
    %c0_i32 = arith.constant 0 : i32
    %c0_i32_0 = arith.constant 0 : i32
    %c0_i32_1 = arith.constant 0 : i32
    return %c0_i32, %c0_i32_0 : i32, i32
  }
  func.func @transform_29(%arg0: i32) -> (i32, i32) {
    %c0_i32 = arith.constant 0 : i32
    %c0_i32_0 = arith.constant 0 : i32
    %c0_i32_1 = arith.constant 0 : i32
    return %c0_i32, %c0_i32_0 : i32, i32
  }
  func.func @transform_30(%arg0: i32) -> (i32, i32, i32) {
    %c0_i32 = arith.constant 0 : i32
    %c0_i32_0 = arith.constant 0 : i32
    %c0_i32_1 = arith.constant 0 : i32
    return %arg0, %c0_i32, %c0_i32_0 : i32, i32, i32
  }
}

</mosaic_0001>

<llo_original>
// kernel: tpu_custom_call.1
$region0: #{tpu_custom_call.1}
  #allocation0 [shape = 'u32[]', space=smem, size = 0x4, offset = 0x4, fixed_abs, tag = 'smem constant byte address 0x4 - core index']
  #allocation1 [shape = 'u32[144,128]{1,0:T(1,128)}', space=vmem, size = 0x12000, scoped, tag = 'internal scratch']
  %s0 = inlined_call_operand.smem [shape: u32[31], index: -1, kind: input, shape index: {}]
  %s1 = sld [smem:[%s0]]
  %s2 = scalar_lea.smem %s0, 1
  %s3 = sld [smem:[%s2]]
  %s4 = scalar_lea.smem %s0, 2
  %s5 = sld [smem:[%s4]]
  %s6 = scalar_lea.smem %s0, 3
  %s7 = sld [smem:[%s6]]
  %s8 = scalar_lea.smem %s0, 4
  %s9 = sld [smem:[%s8]]
  %s10 = scalar_lea.smem %s0, 5
  %s11 = sld [smem:[%s10]]
  %s12 = scalar_lea.smem %s0, 6
  %s13 = sld [smem:[%s12]]
  %s14 = scalar_lea.smem %s0, 7
  %s15 = sld [smem:[%s14]]
  %s16 = scalar_lea.smem %s0, 8
  %s17 = sld [smem:[%s16]]
  %s18 = scalar_lea.smem %s0, 9
  %s19 = sld [smem:[%s18]]
  %s20 = scalar_lea.smem %s0, 10
  %s21 = sld [smem:[%s20]]
  %s22 = scalar_lea.smem %s0, 11
  %s23 = sld [smem:[%s22]]
  %s24 = scalar_lea.smem %s0, 12
  %s25 = sld [smem:[%s24]]
  %s26 = scalar_lea.smem %s0, 13
  %s27 = sld [smem:[%s26]]
  %s28 = scalar_lea.smem %s0, 14
  %s29 = sld [smem:[%s28]]
  %s30 = scalar_lea.smem %s0, 15
  %s31 = sld [smem:[%s30]]
  %s32 = scalar_lea.smem %s0, 16
  %s33 = sld [smem:[%s32]]
  %s34 = scalar_lea.smem %s0, 17
  %s35 = sld [smem:[%s34]]
  %s36 = scalar_lea.smem %s0, 18
  %s37 = sld [smem:[%s36]]
  %s38 = scalar_lea.smem %s0, 19
  %s39 = sld [smem:[%s38]]
  %s40 = scalar_lea.smem %s0, 20
  %s41 = sld [smem:[%s40]]
  %s42 = scalar_lea.smem %s0, 21
  %s43 = sld [smem:[%s42]]
  %s44 = scalar_lea.smem %s0, 22
  %s45 = sld [smem:[%s44]]
  %s46 = scalar_lea.smem %s0, 23
  %s47 = sld [smem:[%s46]]
  %s48 = scalar_lea.smem %s0, 24
  %s49 = sld [smem:[%s48]]
  %s50 = scalar_lea.smem %s0, 25
  %s51 = sld [smem:[%s50]]
  %s52 = scalar_lea.smem %s0, 26
  %s53 = sld [smem:[%s52]]
  %s54 = scalar_lea.smem %s0, 27
  %s55 = sld [smem:[%s54]]
  %s56 = scalar_lea.smem %s0, 28
  %s57 = sld [smem:[%s56]]
  %s58 = scalar_lea.smem %s0, 29
  %s59 = sld [smem:[%s58]]
  %s60 = scalar_lea.smem %s0, 30
  %s61 = sld [smem:[%s60]]
  %s62 = sld [smem:[#allocation0]]
  $region209: #{tpu_custom_call.1} parent=0
    _
  %s64 = ssub.s32 1, %s62
  %s65 = scalar_select 0, %s64, %s62
  $region1: #{tpu_custom_call.1} parent=0
    #allocation2 [shape = 'u8[8192]{0}', space=vmem, size = 0x2000, scoped, tag = 'input window, operand 0']
    #allocation3 [shape = 's32[2]{0}', space=sflag, size = 0x8, scoped, tag = 'scoped memory for tpu_custom_call.1']
    #allocation4 [shape = 's32[2]{0}', space=sflag, size = 0x8, scoped, tag = 'scoped memory for tpu_custom_call.1']
    #allocation5 [shape = 'u8[2048]{0}', space=vmem, size = 0x800, scoped, tag = 'input window, operand 2']
    #allocation6 [shape = 's32[2]{0}', space=sflag, size = 0x8, scoped, tag = 'scoped memory for tpu_custom_call.1']
    #allocation7 [shape = 'u8[16384]{0}', space=vmem, size = 0x4000, scoped, tag = 'input window, operand 8, single buffered']
    #allocation8 [shape = 'u8[16384]{0}', space=vmem, size = 0x4000, scoped, tag = 'input window, operand 10, single buffered']
    #allocation9 [shape = 's32[1]{0}', space=sflag, size = 0x4, scoped, tag = 'scoped memory for tpu_custom_call.1']
    #allocation10 [shape = 'u8[16384]{0}', space=vmem, size = 0x4000, scoped, tag = 'input window, operand 12, single buffered']
    #allocation11 [shape = 'u8[512]{0}', space=vmem, size = 0x400, scoped, tag = 'input window, operand 13, single buffered']
    #allocation12 [shape = 's32[1]{0}', space=sflag, size = 0x4, scoped, tag = 'scoped memory for tpu_custom_call.1']
    #allocation13 [shape = 'u8[16384]{0}', space=vmem, size = 0x4000, scoped, tag = 'input window, operand 14, single buffered']
    #allocation14 [shape = 'u8[512]{0}', space=vmem, size = 0x400, scoped, tag = 'input window, operand 15, single buffered']
    #allocation15 [shape = 's32[1]{0}', space=sflag, size = 0x4, scoped, tag = 'scoped memory for tpu_custom_call.1']
    #allocation16 [shape = 'u8[16384]{0}', space=vmem, size = 0x4000, scoped, tag = 'input window, operand 16, single buffered']
    #allocation17 [shape = 'u8[512]{0}', space=vmem, size = 0x400, scoped, tag = 'input window, operand 17, single buffered']
    #allocation18 [shape = 's32[1]{0}', space=sflag, size = 0x4, scoped, tag = 'scoped memory for tpu_custom_call.1']
    #allocation19 [shape = 'u8[16384]{0}', space=vmem, size = 0x4000, scoped, tag = 'input window, operand 18, single buffered']
    #allocation20 [shape = 'u8[512]{0}', space=vmem, size = 0x400, scoped, tag = 'input window, operand 19, single buffered']
    #allocation21 [shape = 's32[1]{0}', space=sflag, size = 0x4, scoped, tag = 'scoped memory for tpu_custom_call.1']
    #allocation22 [shape = 'u8[16384]{0}', space=vmem, size = 0x4000, scoped, tag = 'input window, operand 20, single buffered']
    #allocation23 [shape = 'u8[512]{0}', space=vmem, size = 0x400, scoped, tag = 'input window, operand 21, single buffered']
    #allocation24 [shape = 's32[1]{0}', space=sflag, size = 0x4, scoped, tag = 'scoped memory for tpu_custom_call.1']
    #allocation25 [shape = 'u8[8192]{0}', space=vmem, size = 0x2000, scoped, tag = 'output window, operand 0']
    %66 = vsyncpa [#allocation3], 0
    %s67 = scalar_lea.sflag [#allocation3], 1
    %68 = vsyncpa %s67, 0
    %69 = vsyncpa [#allocation6], 0
    %s70 = scalar_lea.sflag [#allocation6], 1
    %71 = vsyncpa %s70, 0
    %72 = vsyncpa [#allocation9], 0
    %73 = vsyncpa [#allocation12], 0
    %74 = vsyncpa [#allocation15], 0
    %75 = vsyncpa [#allocation18], 0
    %76 = vsyncpa [#allocation21], 0
    %77 = vsyncpa [#allocation24], 0
    %78 = vsyncpa [#allocation4], 0
    %s79 = scalar_lea.sflag [#allocation4], 1
    %80 = vsyncpa %s79, 0
    loop: start=0, step=1, limit=4
    $region2: #{tpu_custom_call.1} parent=1 // loop_pre_header
      _
    $region3: #{tpu_custom_call.1} parent=1 // loop_header
      %s82 = sphi 0, %s86
      %p83 = scmp.ge.s32.totalorder %s82, 4
      %s92 = sphi 0, %s94
      %s95 = sphi 0, %s92
      %s96 = sphi 0, %s95
      %s112 = sphi 0, %s96
      %s118 = sphi 0, %s120
      %s121 = sphi 0, %s118
      %s122 = sphi 0, %s121
      %s138 = sphi 0, %s122
      %s144 = sphi 0, %s146
      %s147 = sphi 0, %s144
      %s148 = sphi 0, %s147
      %s164 = sphi 0, %s148
      %s170 = sphi 0, %s172
      %s173 = sphi 0, %s170
      %s174 = sphi 0, %s173
      %s190 = sphi 0, %s174
      %s194 = sphi 0, %s194
      %s196 = sphi 0, %s194
      %s197 = sphi 0, %s196
      %s211 = sphi 0, %s197
      %s215 = sphi 0, %s215
      %s217 = sphi 0, %s215
      %s218 = sphi 0, %s217
      %s232 = sphi 0, %s218
      %s236 = sphi 0, %s236
      %s238 = sphi 0, %s236
      %s239 = sphi 0, %s238
      %s253 = sphi 0, %s239
      %s257 = sphi 0, %s257
      %s259 = sphi 0, %s257
      %s260 = sphi 0, %s259
      %s274 = sphi 0, %s260
      %s278 = sphi 0, %s278
      %s280 = sphi 0, %s278
      %s281 = sphi 0, %s280
      %s295 = sphi 0, %s281
      %s299 = sphi 0, %s299
      %s301 = sphi 0, %s299
      %s302 = sphi 0, %s301
      %s316 = sphi 0, %s302
      %s320 = sphi 0, %s320
      %s322 = sphi 0, %s320
      %s323 = sphi 0, %s322
      %s337 = sphi 0, %s323
      %s341 = sphi 0, %s341
      %s343 = sphi 0, %s341
      %s344 = sphi 0, %s343
      %s358 = sphi 0, %s344
      %s362 = sphi 0, %s362
      %s364 = sphi 0, %s362
      %s365 = sphi 0, %s364
      %s379 = sphi 0, %s365
      %s383 = sphi 0, %s383
      %s385 = sphi 0, %s383
      %s386 = sphi 0, %s385
      %s400 = sphi 0, %s386
      %s404 = sphi 0, %s404
      %s406 = sphi 0, %s404
      %s407 = sphi 0, %s406
      %s421 = sphi 0, %s407
      %s425 = sphi 0, %s425
      %s427 = sphi 0, %s425
      %s428 = sphi 0, %s427
      %s442 = sphi 0, %s428
      %s446 = sphi 0, %s446
      %s448 = sphi 0, %s446
      %s449 = sphi 0, %s448
      %s463 = sphi 0, %s449
      %s467 = sphi 0, %s467
      %s469 = sphi 0, %s467
      %s470 = sphi 0, %s469
      %s484 = sphi 0, %s470
      %s488 = sphi 0, %s488
      %s490 = sphi 0, %s488
      %s491 = sphi 0, %s490
      %s505 = sphi 0, %s491
      %s509 = sphi 0, %s509
      %s511 = sphi 0, %s509
      %s512 = sphi 0, %s511
      %s526 = sphi 0, %s512
      %s530 = sphi 0, %s530
      %s532 = sphi 0, %s530
      %s533 = sphi 0, %s532
      %s547 = sphi 0, %s533
      %s551 = sphi 0, %s551
      %s553 = sphi 0, %s551
      %s554 = sphi 0, %s553
      %s568 = sphi 0, %s554
      %s572 = sphi 0, %s572
      %s574 = sphi 0, %s572
      %s575 = sphi 0, %s574
      %s589 = sphi 0, %s575
      %s593 = sphi 0, %s593
      %s595 = sphi 0, %s593
      %s596 = sphi 0, %s595
      %s610 = sphi 0, %s596
      %s614 = sphi 0, %s614
      %s616 = sphi 0, %s614
      %s617 = sphi 0, %s616
      %s631 = sphi 0, %s617
      %s635 = sphi 0, %s635
      %s637 = sphi 0, %s635
      %s638 = sphi 0, %s637
      %s652 = sphi 0, %s638
      %s656 = sphi 0, %s656
      %s658 = sphi 0, %s656
      %s659 = sphi 0, %s658
      %s673 = sphi 0, %s659
      %s677 = sphi 0, %s677
      %s679 = sphi 0, %s677
      %s680 = sphi 0, %s679
      %s694 = sphi 0, %s680
      %s698 = sphi 0, %s698
      %s700 = sphi 0, %s698
      %s701 = sphi 0, %s700
      %s715 = sphi 0, %s701
      %s719 = sphi 0, %s719
      %s721 = sphi 0, %s719
      %s722 = sphi 0, %s721
      %s736 = sphi 0, %s722
      %s742 = sphi 0, %s744
      %s745 = sphi 0, %s742
      %s746 = sphi 0, %s745
      %s762 = sphi 0, %s746
    $region4: #{tpu_custom_call.1} parent=1 // loop_header_branch
      %85 = sbr.rel (%p83) target = $region8
    $region5: #{tpu_custom_call.1} parent=1 // loop_body
      %s87 = ssub.s32 %s82, 1
      %s88 = ssub.s32 %s82, 2
      %s89 = sadd.s32 %s82, 1
      %s90 = ssub.s32 %s82, %s89
      %p91 = scmp.eq.s32.totalorder %s90, 0
      %s93 = sadd.s32 %s92, 1
      %s94 = scalar_select %p91, %s92, %s93
      %p97 = pneg %p91
      %p98 = scmp.eq.s32.totalorder %s82, 1
      %p99 = por %p97, %p98
      %p100 = scmp.ne.s32.totalorder %s92, %s95
      %p101 = scmp.eq.s32.totalorder %s82, 0
      %p102 = por %p100, %p101
      %p103 = scmp.ne.s32.totalorder %s92, %s95
      %p104 = scmp.eq.s32.totalorder %s87, 1
      %p105 = por %p103, %p104
      %p106 = scmp.ne.s32.totalorder %s95, %s96
      %p107 = scmp.eq.s32.totalorder %s87, 0
      %p108 = por %p106, %p107
      %p109 = scmp.ne.s32.totalorder %s95, %s96
      %p110 = scmp.eq.s32.totalorder %s88, 1
      %p111 = por %p109, %p110
      %p113 = scmp.ne.s32.totalorder %s96, %s112
      %p114 = scmp.eq.s32.totalorder %s88, 0
      %p115 = por %p113, %p114
      %s116 = ssub.s32 %s82, %s89
      %p117 = scmp.eq.s32.totalorder %s116, 0
      %s119 = sadd.s32 %s118, 1
      %s120 = scalar_select %p117, %s118, %s119
      %p123 = pneg %p117
      %p124 = scmp.eq.s32.totalorder %s82, 1
      %p125 = por %p123, %p124
      %p126 = scmp.ne.s32.totalorder %s118, %s121
      %p127 = scmp.eq.s32.totalorder %s82, 0
      %p128 = por %p126, %p127
      %p129 = scmp.ne.s32.totalorder %s118, %s121
      %p130 = scmp.eq.s32.totalorder %s87, 1
      %p131 = por %p129, %p130
      %p132 = scmp.ne.s32.totalorder %s121, %s122
      %p133 = scmp.eq.s32.totalorder %s87, 0
      %p134 = por %p132, %p133
      %p135 = scmp.ne.s32.totalorder %s121, %s122
      %p136 = scmp.eq.s32.totalorder %s88, 1
      %p137 = por %p135, %p136
      %p139 = scmp.ne.s32.totalorder %s122, %s138
      %p140 = scmp.eq.s32.totalorder %s88, 0
      %p141 = por %p139, %p140
      %s142 = ssub.s32 %s82, %s89
      %p143 = scmp.eq.s32.totalorder %s142, 0
      %s145 = sadd.s32 %s144, 1
      %s146 = scalar_select %p143, %s144, %s145
      %p149 = pneg %p143
      %p150 = scmp.eq.s32.totalorder %s82, 1
      %p151 = por %p149, %p150
      %p152 = scmp.ne.s32.totalorder %s144, %s147
      %p153 = scmp.eq.s32.totalorder %s82, 0
      %p154 = por %p152, %p153
      %p155 = scmp.ne.s32.totalorder %s144, %s147
      %p156 = scmp.eq.s32.totalorder %s87, 1
      %p157 = por %p155, %p156
      %p158 = scmp.ne.s32.totalorder %s147, %s148
      %p159 = scmp.eq.s32.totalorder %s87, 0
      %p160 = por %p158, %p159
      %p161 = scmp.ne.s32.totalorder %s147, %s148
      %p162 = scmp.eq.s32.totalorder %s88, 1
      %p163 = por %p161, %p162
      %p165 = scmp.ne.s32.totalorder %s148, %s164
      %p166 = scmp.eq.s32.totalorder %s88, 0
      %p167 = por %p165, %p166
      %s168 = ssub.s32 %s82, %s89
      %p169 = scmp.eq.s32.totalorder %s168, 0
      %s171 = sadd.s32 %s170, 1
      %s172 = scalar_select %p169, %s170, %s171
      %p175 = pneg %p169
      %p176 = scmp.eq.s32.totalorder %s82, 1
      %p177 = por %p175, %p176
      %p178 = scmp.ne.s32.totalorder %s170, %s173
      %p179 = scmp.eq.s32.totalorder %s82, 0
      %p180 = por %p178, %p179
      %p181 = scmp.ne.s32.totalorder %s170, %s173
      %p182 = scmp.eq.s32.totalorder %s87, 1
      %p183 = por %p181, %p182
      %p184 = scmp.ne.s32.totalorder %s173, %s174
      %p185 = scmp.eq.s32.totalorder %s87, 0
      %p186 = por %p184, %p185
      %p187 = scmp.ne.s32.totalorder %s173, %s174
      %p188 = scmp.eq.s32.totalorder %s88, 1
      %p189 = por %p187, %p188
      %p191 = scmp.ne.s32.totalorder %s174, %s190
      %p192 = scmp.eq.s32.totalorder %s88, 0
      %p193 = por %p191, %p192
      %s195 = sadd.s32 %s194, 1
      %p198 = scmp.eq.s32.totalorder %s82, 1
      %p199 = scmp.ne.s32.totalorder %s194, %s196
      %p200 = scmp.eq.s32.totalorder %s82, 0
      %p201 = por %p199, %p200
      %p202 = scmp.ne.s32.totalorder %s194, %s196
      %p203 = scmp.eq.s32.totalorder %s87, 1
      %p204 = por %p202, %p203
      %p205 = scmp.ne.s32.totalorder %s196, %s197
      %p206 = scmp.eq.s32.totalorder %s87, 0
      %p207 = por %p205, %p206
      %p208 = scmp.ne.s32.totalorder %s196, %s197
      %p209 = scmp.eq.s32.totalorder %s88, 1
      %p210 = por %p208, %p209
      %p212 = scmp.ne.s32.totalorder %s197, %s211
      %p213 = scmp.eq.s32.totalorder %s88, 0
      %p214 = por %p212, %p213
      %s216 = sadd.s32 %s215, 1
      %p219 = scmp.eq.s32.totalorder %s82, 1
      %p220 = scmp.ne.s32.totalorder %s215, %s217
      %p221 = scmp.eq.s32.totalorder %s82, 0
      %p222 = por %p220, %p221
      %p223 = scmp.ne.s32.totalorder %s215, %s217
      %p224 = scmp.eq.s32.totalorder %s87, 1
      %p225 = por %p223, %p224
      %p226 = scmp.ne.s32.totalorder %s217, %s218
      %p227 = scmp.eq.s32.totalorder %s87, 0
      %p228 = por %p226, %p227
      %p229 = scmp.ne.s32.totalorder %s217, %s218
      %p230 = scmp.eq.s32.totalorder %s88, 1
      %p231 = por %p229, %p230
      %p233 = scmp.ne.s32.totalorder %s218, %s232
      %p234 = scmp.eq.s32.totalorder %s88, 0
      %p235 = por %p233, %p234
      %s237 = sadd.s32 %s236, 1
      %p240 = scmp.eq.s32.totalorder %s82, 1
      %p241 = scmp.ne.s32.totalorder %s236, %s238
      %p242 = scmp.eq.s32.totalorder %s82, 0
      %p243 = por %p241, %p242
      %p244 = scmp.ne.s32.totalorder %s236, %s238
      %p245 = scmp.eq.s32.totalorder %s87, 1
      %p246 = por %p244, %p245
      %p247 = scmp.ne.s32.totalorder %s238, %s239
      %p248 = scmp.eq.s32.totalorder %s87, 0
      %p249 = por %p247, %p248
      %p250 = scmp.ne.s32.totalorder %s238, %s239
      %p251 = scmp.eq.s32.totalorder %s88, 1
      %p252 = por %p250, %p251
      %p254 = scmp.ne.s32.totalorder %s239, %s253
      %p255 = scmp.eq.s32.totalorder %s88, 0
      %p256 = por %p254, %p255
      %s258 = sadd.s32 %s257, 1
      %p261 = scmp.eq.s32.totalorder %s82, 1
      %p262 = scmp.ne.s32.totalorder %s257, %s259
      %p263 = scmp.eq.s32.totalorder %s82, 0
      %p264 = por %p262, %p263
      %p265 = scmp.ne.s32.totalorder %s257, %s259
      %p266 = scmp.eq.s32.totalorder %s87, 1
      %p267 = por %p265, %p266
      %p268 = scmp.ne.s32.totalorder %s259, %s260
      %p269 = scmp.eq.s32.totalorder %s87, 0
      %p270 = por %p268, %p269
      %p271 = scmp.ne.s32.totalorder %s259, %s260
      %p272 = scmp.eq.s32.totalorder %s88, 1
      %p273 = por %p271, %p272
      %p275 = scmp.ne.s32.totalorder %s260, %s274
      %p276 = scmp.eq.s32.totalorder %s88, 0
      %p277 = por %p275, %p276
      %s279 = sadd.s32 %s278, 1
      %p282 = scmp.eq.s32.totalorder %s82, 1
      %p283 = scmp.ne.s32.totalorder %s278, %s280
      %p284 = scmp.eq.s32.totalorder %s82, 0
      %p285 = por %p283, %p284
      %p286 = scmp.ne.s32.totalorder %s278, %s280
      %p287 = scmp.eq.s32.totalorder %s87, 1
      %p288 = por %p286, %p287
      %p289 = scmp.ne.s32.totalorder %s280, %s281
      %p290 = scmp.eq.s32.totalorder %s87, 0
      %p291 = por %p289, %p290
      %p292 = scmp.ne.s32.totalorder %s280, %s281
      %p293 = scmp.eq.s32.totalorder %s88, 1
      %p294 = por %p292, %p293
      %p296 = scmp.ne.s32.totalorder %s281, %s295
      %p297 = scmp.eq.s32.totalorder %s88, 0
      %p298 = por %p296, %p297
      %s300 = sadd.s32 %s299, 1
      %p303 = scmp.eq.s32.totalorder %s82, 1
      %p304 = scmp.ne.s32.totalorder %s299, %s301
      %p305 = scmp.eq.s32.totalorder %s82, 0
      %p306 = por %p304, %p305
      %p307 = scmp.ne.s32.totalorder %s299, %s301
      %p308 = scmp.eq.s32.totalorder %s87, 1
      %p309 = por %p307, %p308
      %p310 = scmp.ne.s32.totalorder %s301, %s302
      %p311 = scmp.eq.s32.totalorder %s87, 0
      %p312 = por %p310, %p311
      %p313 = scmp.ne.s32.totalorder %s301, %s302
      %p314 = scmp.eq.s32.totalorder %s88, 1
      %p315 = por %p313, %p314
      %p317 = scmp.ne.s32.totalorder %s302, %s316
      %p318 = scmp.eq.s32.totalorder %s88, 0
      %p319 = por %p317, %p318
      %s321 = sadd.s32 %s320, 1
      %p324 = scmp.eq.s32.totalorder %s82, 1
      %p325 = scmp.ne.s32.totalorder %s320, %s322
      %p326 = scmp.eq.s32.totalorder %s82, 0
      %p327 = por %p325, %p326
      %p328 = scmp.ne.s32.totalorder %s320, %s322
      %p329 = scmp.eq.s32.totalorder %s87, 1
      %p330 = por %p328, %p329
      %p331 = scmp.ne.s32.totalorder %s322, %s323
      %p332 = scmp.eq.s32.totalorder %s87, 0
      %p333 = por %p331, %p332
      %p334 = scmp.ne.s32.totalorder %s322, %s323
      %p335 = scmp.eq.s32.totalorder %s88, 1
      %p336 = por %p334, %p335
      %p338 = scmp.ne.s32.totalorder %s323, %s337
      %p339 = scmp.eq.s32.totalorder %s88, 0
      %p340 = por %p338, %p339
      %s342 = sadd.s32 %s341, 1
      %p345 = scmp.eq.s32.totalorder %s82, 1
      %p346 = scmp.ne.s32.totalorder %s341, %s343
      %p347 = scmp.eq.s32.totalorder %s82, 0
      %p348 = por %p346, %p347
      %p349 = scmp.ne.s32.totalorder %s341, %s343
      %p350 = scmp.eq.s32.totalorder %s87, 1
      %p351 = por %p349, %p350
      %p352 = scmp.ne.s32.totalorder %s343, %s344
      %p353 = scmp.eq.s32.totalorder %s87, 0
      %p354 = por %p352, %p353
      %p355 = scmp.ne.s32.totalorder %s343, %s344
      %p356 = scmp.eq.s32.totalorder %s88, 1
      %p357 = por %p355, %p356
      %p359 = scmp.ne.s32.totalorder %s344, %s358
      %p360 = scmp.eq.s32.totalorder %s88, 0
      %p361 = por %p359, %p360
      %s363 = sadd.s32 %s362, 1
      %p366 = scmp.eq.s32.totalorder %s82, 1
      %p367 = scmp.ne.s32.totalorder %s362, %s364
      %p368 = scmp.eq.s32.totalorder %s82, 0
      %p369 = por %p367, %p368
      %p370 = scmp.ne.s32.totalorder %s362, %s364
      %p371 = scmp.eq.s32.totalorder %s87, 1
      %p372 = por %p370, %p371
      %p373 = scmp.ne.s32.totalorder %s364, %s365
      %p374 = scmp.eq.s32.totalorder %s87, 0
      %p375 = por %p373, %p374
      %p376 = scmp.ne.s32.totalorder %s364, %s365
      %p377 = scmp.eq.s32.totalorder %s88, 1
      %p378 = por %p376, %p377
      %p380 = scmp.ne.s32.totalorder %s365, %s379
      %p381 = scmp.eq.s32.totalorder %s88, 0
      %p382 = por %p380, %p381
      %s384 = sadd.s32 %s383, 1
      %p387 = scmp.eq.s32.totalorder %s82, 1
      %p388 = scmp.ne.s32.totalorder %s383, %s385
      %p389 = scmp.eq.s32.totalorder %s82, 0
      %p390 = por %p388, %p389
      %p391 = scmp.ne.s32.totalorder %s383, %s385
      %p392 = scmp.eq.s32.totalorder %s87, 1
      %p393 = por %p391, %p392
      %p394 = scmp.ne.s32.totalorder %s385, %s386
      %p395 = scmp.eq.s32.totalorder %s87, 0
      %p396 = por %p394, %p395
      %p397 = scmp.ne.s32.totalorder %s385, %s386
      %p398 = scmp.eq.s32.totalorder %s88, 1
      %p399 = por %p397, %p398
      %p401 = scmp.ne.s32.totalorder %s386, %s400
      %p402 = scmp.eq.s32.totalorder %s88, 0
      %p403 = por %p401, %p402
      %s405 = sadd.s32 %s404, 1
      %p408 = scmp.eq.s32.totalorder %s82, 1
      %p409 = scmp.ne.s32.totalorder %s404, %s406
      %p410 = scmp.eq.s32.totalorder %s82, 0
      %p411 = por %p409, %p410
      %p412 = scmp.ne.s32.totalorder %s404, %s406
      %p413 = scmp.eq.s32.totalorder %s87, 1
      %p414 = por %p412, %p413
      %p415 = scmp.ne.s32.totalorder %s406, %s407
      %p416 = scmp.eq.s32.totalorder %s87, 0
      %p417 = por %p415, %p416
      %p418 = scmp.ne.s32.totalorder %s406, %s407
      %p419 = scmp.eq.s32.totalorder %s88, 1
      %p420 = por %p418, %p419
      %p422 = scmp.ne.s32.totalorder %s407, %s421
      %p423 = scmp.eq.s32.totalorder %s88, 0
      %p424 = por %p422, %p423
      %s426 = sadd.s32 %s425, 1
      %p429 = scmp.eq.s32.totalorder %s82, 1
      %p430 = scmp.ne.s32.totalorder %s425, %s427
      %p431 = scmp.eq.s32.totalorder %s82, 0
      %p432 = por %p430, %p431
      %p433 = scmp.ne.s32.totalorder %s425, %s427
      %p434 = scmp.eq.s32.totalorder %s87, 1
      %p435 = por %p433, %p434
      %p436 = scmp.ne.s32.totalorder %s427, %s428
      %p437 = scmp.eq.s32.totalorder %s87, 0
      %p438 = por %p436, %p437
      %p439 = scmp.ne.s32.totalorder %s427, %s428
      %p440 = scmp.eq.s32.totalorder %s88, 1
      %p441 = por %p439, %p440
      %p443 = scmp.ne.s32.totalorder %s428, %s442
      %p444 = scmp.eq.s32.totalorder %s88, 0
      %p445 = por %p443, %p444
      %s447 = sadd.s32 %s446, 1
      %p450 = scmp.eq.s32.totalorder %s82, 1
      %p451 = scmp.ne.s32.totalorder %s446, %s448
      %p452 = scmp.eq.s32.totalorder %s82, 0
      %p453 = por %p451, %p452
      %p454 = scmp.ne.s32.totalorder %s446, %s448
      %p455 = scmp.eq.s32.totalorder %s87, 1
      %p456 = por %p454, %p455
      %p457 = scmp.ne.s32.totalorder %s448, %s449
      %p458 = scmp.eq.s32.totalorder %s87, 0
      %p459 = por %p457, %p458
      %p460 = scmp.ne.s32.totalorder %s448, %s449
      %p461 = scmp.eq.s32.totalorder %s88, 1
      %p462 = por %p460, %p461
      %p464 = scmp.ne.s32.totalorder %s449, %s463
      %p465 = scmp.eq.s32.totalorder %s88, 0
      %p466 = por %p464, %p465
      %s468 = sadd.s32 %s467, 1
      %p471 = scmp.eq.s32.totalorder %s82, 1
      %p472 = scmp.ne.s32.totalorder %s467, %s469
      %p473 = scmp.eq.s32.totalorder %s82, 0
      %p474 = por %p472, %p473
      %p475 = scmp.ne.s32.totalorder %s467, %s469
      %p476 = scmp.eq.s32.totalorder %s87, 1
      %p477 = por %p475, %p476
      %p478 = scmp.ne.s32.totalorder %s469, %s470
      %p479 = scmp.eq.s32.totalorder %s87, 0
      %p480 = por %p478, %p479
      %p481 = scmp.ne.s32.totalorder %s469, %s470
      %p482 = scmp.eq.s32.totalorder %s88, 1
      %p483 = por %p481, %p482
      %p485 = scmp.ne.s32.totalorder %s470, %s484
      %p486 = scmp.eq.s32.totalorder %s88, 0
      %p487 = por %p485, %p486
      %s489 = sadd.s32 %s488, 1
      %p492 = scmp.eq.s32.totalorder %s82, 1
      %p493 = scmp.ne.s32.totalorder %s488, %s490
      %p494 = scmp.eq.s32.totalorder %s82, 0
      %p495 = por %p493, %p494
      %p496 = scmp.ne.s32.totalorder %s488, %s490
      %p497 = scmp.eq.s32.totalorder %s87, 1
      %p498 = por %p496, %p497
      %p499 = scmp.ne.s32.totalorder %s490, %s491
      %p500 = scmp.eq.s32.totalorder %s87, 0
      %p501 = por %p499, %p500
      %p502 = scmp.ne.s32.totalorder %s490, %s491
      %p503 = scmp.eq.s32.totalorder %s88, 1
      %p504 = por %p502, %p503
      %p506 = scmp.ne.s32.totalorder %s491, %s505
      %p507 = scmp.eq.s32.totalorder %s88, 0
      %p508 = por %p506, %p507
      %s510 = sadd.s32 %s509, 1
      %p513 = scmp.eq.s32.totalorder %s82, 1
      %p514 = scmp.ne.s32.totalorder %s509, %s511
      %p515 = scmp.eq.s32.totalorder %s82, 0
      %p516 = por %p514, %p515
      %p517 = scmp.ne.s32.totalorder %s509, %s511
      %p518 = scmp.eq.s32.totalorder %s87, 1
      %p519 = por %p517, %p518
      %p520 = scmp.ne.s32.totalorder %s511, %s512
      %p521 = scmp.eq.s32.totalorder %s87, 0
      %p522 = por %p520, %p521
      %p523 = scmp.ne.s32.totalorder %s511, %s512
      %p524 = scmp.eq.s32.totalorder %s88, 1
      %p525 = por %p523, %p524
      %p527 = scmp.ne.s32.totalorder %s512, %s526
      %p528 = scmp.eq.s32.totalorder %s88, 0
      %p529 = por %p527, %p528
      %s531 = sadd.s32 %s530, 1
      %p534 = scmp.eq.s32.totalorder %s82, 1
      %p535 = scmp.ne.s32.totalorder %s530, %s532
      %p536 = scmp.eq.s32.totalorder %s82, 0
      %p537 = por %p535, %p536
      %p538 = scmp.ne.s32.totalorder %s530, %s532
      %p539 = scmp.eq.s32.totalorder %s87, 1
      %p540 = por %p538, %p539
      %p541 = scmp.ne.s32.totalorder %s532, %s533
      %p542 = scmp.eq.s32.totalorder %s87, 0
      %p543 = por %p541, %p542
      %p544 = scmp.ne.s32.totalorder %s532, %s533
      %p545 = scmp.eq.s32.totalorder %s88, 1
      %p546 = por %p544, %p545
      %p548 = scmp.ne.s32.totalorder %s533, %s547
      %p549 = scmp.eq.s32.totalorder %s88, 0
      %p550 = por %p548, %p549
      %s552 = sadd.s32 %s551, 1
      %p555 = scmp.eq.s32.totalorder %s82, 1
      %p556 = scmp.ne.s32.totalorder %s551, %s553
      %p557 = scmp.eq.s32.totalorder %s82, 0
      %p558 = por %p556, %p557
      %p559 = scmp.ne.s32.totalorder %s551, %s553
      %p560 = scmp.eq.s32.totalorder %s87, 1
      %p561 = por %p559, %p560
      %p562 = scmp.ne.s32.totalorder %s553, %s554
      %p563 = scmp.eq.s32.totalorder %s87, 0
      %p564 = por %p562, %p563
      %p565 = scmp.ne.s32.totalorder %s553, %s554
      %p566 = scmp.eq.s32.totalorder %s88, 1
      %p567 = por %p565, %p566
      %p569 = scmp.ne.s32.totalorder %s554, %s568
      %p570 = scmp.eq.s32.totalorder %s88, 0
      %p571 = por %p569, %p570
      %s573 = sadd.s32 %s572, 1
      %p576 = scmp.eq.s32.totalorder %s82, 1
      %p577 = scmp.ne.s32.totalorder %s572, %s574
      %p578 = scmp.eq.s32.totalorder %s82, 0
      %p579 = por %p577, %p578
      %p580 = scmp.ne.s32.totalorder %s572, %s574
      %p581 = scmp.eq.s32.totalorder %s87, 1
      %p582 = por %p580, %p581
      %p583 = scmp.ne.s32.totalorder %s574, %s575
      %p584 = scmp.eq.s32.totalorder %s87, 0
      %p585 = por %p583, %p584
      %p586 = scmp.ne.s32.totalorder %s574, %s575
      %p587 = scmp.eq.s32.totalorder %s88, 1
      %p588 = por %p586, %p587
      %p590 = scmp.ne.s32.totalorder %s575, %s589
      %p591 = scmp.eq.s32.totalorder %s88, 0
      %p592 = por %p590, %p591
      %s594 = sadd.s32 %s593, 1
      %p597 = scmp.eq.s32.totalorder %s82, 1
      %p598 = scmp.ne.s32.totalorder %s593, %s595
      %p599 = scmp.eq.s32.totalorder %s82, 0
      %p600 = por %p598, %p599
      %p601 = scmp.ne.s32.totalorder %s593, %s595
      %p602 = scmp.eq.s32.totalorder %s87, 1
      %p603 = por %p601, %p602
      %p604 = scmp.ne.s32.totalorder %s595, %s596
      %p605 = scmp.eq.s32.totalorder %s87, 0
      %p606 = por %p604, %p605
      %p607 = scmp.ne.s32.totalorder %s595, %s596
      %p608 = scmp.eq.s32.totalorder %s88, 1
      %p609 = por %p607, %p608
      %p611 = scmp.ne.s32.totalorder %s596, %s610
      %p612 = scmp.eq.s32.totalorder %s88, 0
      %p613 = por %p611, %p612
      %s615 = sadd.s32 %s614, 1
      %p618 = scmp.eq.s32.totalorder %s82, 1
      %p619 = scmp.ne.s32.totalorder %s614, %s616
      %p620 = scmp.eq.s32.totalorder %s82, 0
      %p621 = por %p619, %p620
      %p622 = scmp.ne.s32.totalorder %s614, %s616
      %p623 = scmp.eq.s32.totalorder %s87, 1
      %p624 = por %p622, %p623
      %p625 = scmp.ne.s32.totalorder %s616, %s617
      %p626 = scmp.eq.s32.totalorder %s87, 0
      %p627 = por %p625, %p626
      %p628 = scmp.ne.s32.totalorder %s616, %s617
      %p629 = scmp.eq.s32.totalorder %s88, 1
      %p630 = por %p628, %p629
      %p632 = scmp.ne.s32.totalorder %s617, %s631
      %p633 = scmp.eq.s32.totalorder %s88, 0
      %p634 = por %p632, %p633
      %s636 = sadd.s32 %s635, 1
      %p639 = scmp.eq.s32.totalorder %s82, 1
      %p640 = scmp.ne.s32.totalorder %s635, %s637
      %p641 = scmp.eq.s32.totalorder %s82, 0
      %p642 = por %p640, %p641
      %p643 = scmp.ne.s32.totalorder %s635, %s637
      %p644 = scmp.eq.s32.totalorder %s87, 1
      %p645 = por %p643, %p644
      %p646 = scmp.ne.s32.totalorder %s637, %s638
      %p647 = scmp.eq.s32.totalorder %s87, 0
      %p648 = por %p646, %p647
      %p649 = scmp.ne.s32.totalorder %s637, %s638
      %p650 = scmp.eq.s32.totalorder %s88, 1
      %p651 = por %p649, %p650
      %p653 = scmp.ne.s32.totalorder %s638, %s652
      %p654 = scmp.eq.s32.totalorder %s88, 0
      %p655 = por %p653, %p654
      %s657 = sadd.s32 %s656, 1
      %p660 = scmp.eq.s32.totalorder %s82, 1
      %p661 = scmp.ne.s32.totalorder %s656, %s658
      %p662 = scmp.eq.s32.totalorder %s82, 0
      %p663 = por %p661, %p662
      %p664 = scmp.ne.s32.totalorder %s656, %s658
      %p665 = scmp.eq.s32.totalorder %s87, 1
      %p666 = por %p664, %p665
      %p667 = scmp.ne.s32.totalorder %s658, %s659
      %p668 = scmp.eq.s32.totalorder %s87, 0
      %p669 = por %p667, %p668
      %p670 = scmp.ne.s32.totalorder %s658, %s659
      %p671 = scmp.eq.s32.totalorder %s88, 1
      %p672 = por %p670, %p671
      %p674 = scmp.ne.s32.totalorder %s659, %s673
      %p675 = scmp.eq.s32.totalorder %s88, 0
      %p676 = por %p674, %p675
      %s678 = sadd.s32 %s677, 1
      %p681 = scmp.eq.s32.totalorder %s82, 1
      %p682 = scmp.ne.s32.totalorder %s677, %s679
      %p683 = scmp.eq.s32.totalorder %s82, 0
      %p684 = por %p682, %p683
      %p685 = scmp.ne.s32.totalorder %s677, %s679
      %p686 = scmp.eq.s32.totalorder %s87, 1
      %p687 = por %p685, %p686
      %p688 = scmp.ne.s32.totalorder %s679, %s680
      %p689 = scmp.eq.s32.totalorder %s87, 0
      %p690 = por %p688, %p689
      %p691 = scmp.ne.s32.totalorder %s679, %s680
      %p692 = scmp.eq.s32.totalorder %s88, 1
      %p693 = por %p691, %p692
      %p695 = scmp.ne.s32.totalorder %s680, %s694
      %p696 = scmp.eq.s32.totalorder %s88, 0
      %p697 = por %p695, %p696
      %s699 = sadd.s32 %s698, 1
      %p702 = scmp.eq.s32.totalorder %s82, 1
      %p703 = scmp.ne.s32.totalorder %s698, %s700
      %p704 = scmp.eq.s32.totalorder %s82, 0
      %p705 = por %p703, %p704
      %p706 = scmp.ne.s32.totalorder %s698, %s700
      %p707 = scmp.eq.s32.totalorder %s87, 1
      %p708 = por %p706, %p707
      %p709 = scmp.ne.s32.totalorder %s700, %s701
      %p710 = scmp.eq.s32.totalorder %s87, 0
      %p711 = por %p709, %p710
      %p712 = scmp.ne.s32.totalorder %s700, %s701
      %p713 = scmp.eq.s32.totalorder %s88, 1
      %p714 = por %p712, %p713
      %p716 = scmp.ne.s32.totalorder %s701, %s715
      %p717 = scmp.eq.s32.totalorder %s88, 0
      %p718 = por %p716, %p717
      %s720 = sadd.s32 %s719, 1
      %p723 = scmp.eq.s32.totalorder %s82, 1
      %p724 = scmp.ne.s32.totalorder %s719, %s721
      %p725 = scmp.eq.s32.totalorder %s82, 0
      %p726 = por %p724, %p725
      %p727 = scmp.ne.s32.totalorder %s719, %s721
      %p728 = scmp.eq.s32.totalorder %s87, 1
      %p729 = por %p727, %p728
      %p730 = scmp.ne.s32.totalorder %s721, %s722
      %p731 = scmp.eq.s32.totalorder %s87, 0
      %p732 = por %p730, %p731
      %p733 = scmp.ne.s32.totalorder %s721, %s722
      %p734 = scmp.eq.s32.totalorder %s88, 1
      %p735 = por %p733, %p734
      %p737 = scmp.ne.s32.totalorder %s722, %s736
      %p738 = scmp.eq.s32.totalorder %s88, 0
      %p739 = por %p737, %p738
      %s740 = ssub.s32 %s82, %s89
      %p741 = scmp.eq.s32.totalorder %s740, 0
      %s743 = sadd.s32 %s742, 1
      %s744 = scalar_select %p741, %s742, %s743
      %p747 = pneg %p741
      %p748 = scmp.eq.s32.totalorder %s82, 1
      %p749 = por %p747, %p748
      %p750 = scmp.ne.s32.totalorder %s742, %s745
      %p751 = scmp.eq.s32.totalorder %s82, 0
      %p752 = por %p750, %p751
      %p753 = scmp.ne.s32.totalorder %s742, %s745
      %p754 = scmp.eq.s32.totalorder %s87, 1
      %p755 = por %p753, %p754
      %p756 = scmp.ne.s32.totalorder %s745, %s746
      %p757 = scmp.eq.s32.totalorder %s87, 0
      %p758 = por %p756, %p757
      %p759 = scmp.ne.s32.totalorder %s745, %s746
      %p760 = scmp.eq.s32.totalorder %s88, 1
      %p761 = por %p759, %p760
      %p763 = scmp.ne.s32.totalorder %s746, %s762
      %p764 = scmp.eq.s32.totalorder %s88, 0
      %p765 = por %p763, %p764
      %p766 = scmp.le.s32.totalorder 1, %s82
      %p767 = scmp.lt.s32.totalorder %s82, 3
      %p768 = pnand %p766, %p767
      %p769 = pneg %p768
      // Predicated region
      $region9: #{tpu_custom_call.1} parent=5 // pred_check
        _
      $region10: #{tpu_custom_call.1} parent=5 // pred_check_branch
        %771 = sbr.rel (%p768) target = $region12
      $region11: #{tpu_custom_call.1} parent=5 // pred_region
        %s772 = ssub.s32 %s82, 1
        // Predicated region
        $region13: #{tpu_custom_call.1} parent=11 // pred_check
          %p773 = pneg %p207
        $region14: #{tpu_custom_call.1} parent=11 // pred_check_branch
          %775 = sbr.rel (%p773) target = $region16
        $region15: #{tpu_custom_call.1} parent=11 // pred_region
          _
        $region16: #{tpu_custom_call.1} parent=11 // pred_fallthru
          _
        // Predicated region
        $region17: #{tpu_custom_call.1} parent=11 // pred_check
          %p776 = pneg %p228
        $region18: #{tpu_custom_call.1} parent=11 // pred_check_branch
          %778 = sbr.rel (%p776) target = $region20
        $region19: #{tpu_custom_call.1} parent=11 // pred_region
          _
        $region20: #{tpu_custom_call.1} parent=11 // pred_fallthru
          _
        // Predicated region
        $region21: #{tpu_custom_call.1} parent=11 // pred_check
          %p779 = pneg %p249
        $region22: #{tpu_custom_call.1} parent=11 // pred_check_branch
          %781 = sbr.rel (%p779) target = $region24
        $region23: #{tpu_custom_call.1} parent=11 // pred_region
          _
        $region24: #{tpu_custom_call.1} parent=11 // pred_fallthru
          _
        // Predicated region
        $region25: #{tpu_custom_call.1} parent=11 // pred_check
          %p782 = pneg %p270
        $region26: #{tpu_custom_call.1} parent=11 // pred_check_branch
          %784 = sbr.rel (%p782) target = $region28
        $region27: #{tpu_custom_call.1} parent=11 // pred_region
          _
        $region28: #{tpu_custom_call.1} parent=11 // pred_fallthru
          _
        // Predicated region
        $region29: #{tpu_custom_call.1} parent=11 // pred_check
          %p785 = pneg %p291
        $region30: #{tpu_custom_call.1} parent=11 // pred_check_branch
          %787 = sbr.rel (%p785) target = $region32
        $region31: #{tpu_custom_call.1} parent=11 // pred_region
          %s789 = ssub.s32 512, 512
          %790 = vsyncadd [#allocation6], %s789
          %s791 = sshll.u32 [#allocation7], 4
          %s792 = int_to_ptr.vmem [resolvable:$true] %s791
          %797 = dma.hbm_to_vmem [thread:$0]  %s17, 512, %s792, [#allocation6], 128, 128, 8
        $region32: #{tpu_custom_call.1} parent=11 // pred_fallthru
          _
        // Predicated region
        $region33: #{tpu_custom_call.1} parent=11 // pred_check
          %p798 = pneg %p312
        $region34: #{tpu_custom_call.1} parent=11 // pred_check_branch
          %800 = sbr.rel (%p798) target = $region36
        $region35: #{tpu_custom_call.1} parent=11 // pred_region
          _
        $region36: #{tpu_custom_call.1} parent=11 // pred_fallthru
          _
        // Predicated region
        $region37: #{tpu_custom_call.1} parent=11 // pred_check
          %p801 = pneg %p333
        $region38: #{tpu_custom_call.1} parent=11 // pred_check_branch
          %803 = sbr.rel (%p801) target = $region40
        $region39: #{tpu_custom_call.1} parent=11 // pred_region
          %s805 = ssub.s32 512, 512
          %806 = vsyncadd [#allocation9], %s805
          %s807 = sshll.u32 [#allocation8], 4
          %s808 = int_to_ptr.vmem [resolvable:$true] %s807
          %813 = dma.hbm_to_vmem [thread:$0]  %s21, 512, %s808, [#allocation9], 128, 128, 8
        $region40: #{tpu_custom_call.1} parent=11 // pred_fallthru
          _
        // Predicated region
        $region41: #{tpu_custom_call.1} parent=11 // pred_check
          %p814 = pneg %p354
        $region42: #{tpu_custom_call.1} parent=11 // pred_check_branch
          %816 = sbr.rel (%p814) target = $region44
        $region43: #{tpu_custom_call.1} parent=11 // pred_region
          _
        $region44: #{tpu_custom_call.1} parent=11 // pred_fallthru
          _
        // Predicated region
        $region45: #{tpu_custom_call.1} parent=11 // pred_check
          %p817 = pneg %p375
        $region46: #{tpu_custom_call.1} parent=11 // pred_check_branch
          %819 = sbr.rel (%p817) target = $region48
        $region47: #{tpu_custom_call.1} parent=11 // pred_region
          %s821 = ssub.s32 512, 512
          %822 = vsyncadd [#allocation9], %s821
          %s823 = sshll.u32 [#allocation10], 4
          %s824 = int_to_ptr.vmem [resolvable:$true] %s823
          %829 = dma.hbm_to_vmem [thread:$0]  %s25, 512, %s824, [#allocation9], 128, 128, 8
        $region48: #{tpu_custom_call.1} parent=11 // pred_fallthru
          _
        // Predicated region
        $region49: #{tpu_custom_call.1} parent=11 // pred_check
          %p830 = pneg %p396
        $region50: #{tpu_custom_call.1} parent=11 // pred_check_branch
          %832 = sbr.rel (%p830) target = $region52
        $region51: #{tpu_custom_call.1} parent=11 // pred_region
          %s834 = ssub.s32 16, 16
          %835 = vsyncadd [#allocation12], %s834
          %s837 = sshll.u32 [#allocation11], 4
          %s838 = int_to_ptr.vmem [resolvable:$true] %s837
          %840 = dma.hbm_to_vmem [thread:$0]  %s27, 16, %s838, [#allocation12]
        $region52: #{tpu_custom_call.1} parent=11 // pred_fallthru
          _
        // Predicated region
        $region53: #{tpu_custom_call.1} parent=11 // pred_check
          %p841 = pneg %p417
        $region54: #{tpu_custom_call.1} parent=11 // pred_check_branch
          %843 = sbr.rel (%p841) target = $region56
        $region55: #{tpu_custom_call.1} parent=11 // pred_region
          %s845 = ssub.s32 512, 512
          %846 = vsyncadd [#allocation12], %s845
          %s847 = sshll.u32 [#allocation13], 4
          %s848 = int_to_ptr.vmem [resolvable:$true] %s847
          %853 = dma.hbm_to_vmem [thread:$0]  %s29, 512, %s848, [#allocation12], 128, 128, 8
        $region56: #{tpu_custom_call.1} parent=11 // pred_fallthru
          _
        // Predicated region
        $region57: #{tpu_custom_call.1} parent=11 // pred_check
          %p854 = pneg %p438
        $region58: #{tpu_custom_call.1} parent=11 // pred_check_branch
          %856 = sbr.rel (%p854) target = $region60
        $region59: #{tpu_custom_call.1} parent=11 // pred_region
          %s858 = ssub.s32 16, 16
          %859 = vsyncadd [#allocation15], %s858
          %s861 = sshll.u32 [#allocation14], 4
          %s862 = int_to_ptr.vmem [resolvable:$true] %s861
          %864 = dma.hbm_to_vmem [thread:$0]  %s31, 16, %s862, [#allocation15]
        $region60: #{tpu_custom_call.1} parent=11 // pred_fallthru
          _
        // Predicated region
        $region61: #{tpu_custom_call.1} parent=11 // pred_check
          %p865 = pneg %p459
        $region62: #{tpu_custom_call.1} parent=11 // pred_check_branch
          %867 = sbr.rel (%p865) target = $region64
        $region63: #{tpu_custom_call.1} parent=11 // pred_region
          %s869 = ssub.s32 512, 512
          %870 = vsyncadd [#allocation15], %s869
          %s871 = sshll.u32 [#allocation16], 4
          %s872 = int_to_ptr.vmem [resolvable:$true] %s871
          %877 = dma.hbm_to_vmem [thread:$0]  %s33, 512, %s872, [#allocation15], 128, 128, 8
        $region64: #{tpu_custom_call.1} parent=11 // pred_fallthru
          _
        // Predicated region
        $region65: #{tpu_custom_call.1} parent=11 // pred_check
          %p878 = pneg %p480
        $region66: #{tpu_custom_call.1} parent=11 // pred_check_branch
          %880 = sbr.rel (%p878) target = $region68
        $region67: #{tpu_custom_call.1} parent=11 // pred_region
          %s882 = ssub.s32 16, 16
          %883 = vsyncadd [#allocation18], %s882
          %s885 = sshll.u32 [#allocation17], 4
          %s886 = int_to_ptr.vmem [resolvable:$true] %s885
          %888 = dma.hbm_to_vmem [thread:$0]  %s35, 16, %s886, [#allocation18]
        $region68: #{tpu_custom_call.1} parent=11 // pred_fallthru
          _
        // Predicated region
        $region69: #{tpu_custom_call.1} parent=11 // pred_check
          %p889 = pneg %p501
        $region70: #{tpu_custom_call.1} parent=11 // pred_check_branch
          %891 = sbr.rel (%p889) target = $region72
        $region71: #{tpu_custom_call.1} parent=11 // pred_region
          %s893 = ssub.s32 512, 512
          %894 = vsyncadd [#allocation18], %s893
          %s895 = sshll.u32 [#allocation19], 4
          %s896 = int_to_ptr.vmem [resolvable:$true] %s895
          %901 = dma.hbm_to_vmem [thread:$0]  %s37, 512, %s896, [#allocation18], 128, 128, 8
        $region72: #{tpu_custom_call.1} parent=11 // pred_fallthru
          _
        // Predicated region
        $region73: #{tpu_custom_call.1} parent=11 // pred_check
          %p902 = pneg %p522
        $region74: #{tpu_custom_call.1} parent=11 // pred_check_branch
          %904 = sbr.rel (%p902) target = $region76
        $region75: #{tpu_custom_call.1} parent=11 // pred_region
          %s906 = ssub.s32 16, 16
          %907 = vsyncadd [#allocation21], %s906
          %s909 = sshll.u32 [#allocation20], 4
          %s910 = int_to_ptr.vmem [resolvable:$true] %s909
          %912 = dma.hbm_to_vmem [thread:$0]  %s39, 16, %s910, [#allocation21]
        $region76: #{tpu_custom_call.1} parent=11 // pred_fallthru
          _
        // Predicated region
        $region77: #{tpu_custom_call.1} parent=11 // pred_check
          %p913 = pneg %p543
        $region78: #{tpu_custom_call.1} parent=11 // pred_check_branch
          %915 = sbr.rel (%p913) target = $region80
        $region79: #{tpu_custom_call.1} parent=11 // pred_region
          %s917 = ssub.s32 512, 512
          %918 = vsyncadd [#allocation21], %s917
          %s919 = sshll.u32 [#allocation22], 4
          %s920 = int_to_ptr.vmem [resolvable:$true] %s919
          %925 = dma.hbm_to_vmem [thread:$0]  %s41, 512, %s920, [#allocation21], 128, 128, 8
        $region80: #{tpu_custom_call.1} parent=11 // pred_fallthru
          _
        // Predicated region
        $region81: #{tpu_custom_call.1} parent=11 // pred_check
          %p926 = pneg %p564
        $region82: #{tpu_custom_call.1} parent=11 // pred_check_branch
          %928 = sbr.rel (%p926) target = $region84
        $region83: #{tpu_custom_call.1} parent=11 // pred_region
          %s930 = ssub.s32 16, 16
          %931 = vsyncadd [#allocation24], %s930
          %s933 = sshll.u32 [#allocation23], 4
          %s934 = int_to_ptr.vmem [resolvable:$true] %s933
          %936 = dma.hbm_to_vmem [thread:$0]  %s43, 16, %s934, [#allocation24]
        $region84: #{tpu_custom_call.1} parent=11 // pred_fallthru
          _
        // Predicated region
        $region85: #{tpu_custom_call.1} parent=11 // pred_check
          %p937 = pneg %p585
        $region86: #{tpu_custom_call.1} parent=11 // pred_check_branch
          %939 = sbr.rel (%p937) target = $region88
        $region87: #{tpu_custom_call.1} parent=11 // pred_region
          _
        $region88: #{tpu_custom_call.1} parent=11 // pred_fallthru
          _
        // Predicated region
        $region89: #{tpu_custom_call.1} parent=11 // pred_check
          %p940 = pneg %p606
        $region90: #{tpu_custom_call.1} parent=11 // pred_check_branch
          %942 = sbr.rel (%p940) target = $region92
        $region91: #{tpu_custom_call.1} parent=11 // pred_region
          _
        $region92: #{tpu_custom_call.1} parent=11 // pred_fallthru
          _
        // Predicated region
        $region93: #{tpu_custom_call.1} parent=11 // pred_check
          %p943 = pneg %p627
        $region94: #{tpu_custom_call.1} parent=11 // pred_check_branch
          %945 = sbr.rel (%p943) target = $region96
        $region95: #{tpu_custom_call.1} parent=11 // pred_region
          _
        $region96: #{tpu_custom_call.1} parent=11 // pred_fallthru
          _
        // Predicated region
        $region97: #{tpu_custom_call.1} parent=11 // pred_check
          %p946 = pneg %p648
        $region98: #{tpu_custom_call.1} parent=11 // pred_check_branch
          %948 = sbr.rel (%p946) target = $region100
        $region99: #{tpu_custom_call.1} parent=11 // pred_region
          _
        $region100: #{tpu_custom_call.1} parent=11 // pred_fallthru
          _
        // Predicated region
        $region101: #{tpu_custom_call.1} parent=11 // pred_check
          %p949 = pneg %p669
        $region102: #{tpu_custom_call.1} parent=11 // pred_check_branch
          %951 = sbr.rel (%p949) target = $region104
        $region103: #{tpu_custom_call.1} parent=11 // pred_region
          _
        $region104: #{tpu_custom_call.1} parent=11 // pred_fallthru
          _
        // Predicated region
        $region105: #{tpu_custom_call.1} parent=11 // pred_check
          %p952 = pneg %p690
        $region106: #{tpu_custom_call.1} parent=11 // pred_check_branch
          %954 = sbr.rel (%p952) target = $region108
        $region107: #{tpu_custom_call.1} parent=11 // pred_region
          _
        $region108: #{tpu_custom_call.1} parent=11 // pred_fallthru
          _
        // Predicated region
        $region109: #{tpu_custom_call.1} parent=11 // pred_check
          %p955 = pneg %p711
        $region110: #{tpu_custom_call.1} parent=11 // pred_check_branch
          %957 = sbr.rel (%p955) target = $region112
        $region111: #{tpu_custom_call.1} parent=11 // pred_region
          _
        $region112: #{tpu_custom_call.1} parent=11 // pred_fallthru
          _
        // Predicated region
        $region113: #{tpu_custom_call.1} parent=11 // pred_check
          %p958 = pneg %p732
        $region114: #{tpu_custom_call.1} parent=11 // pred_check_branch
          %960 = sbr.rel (%p958) target = $region116
        $region115: #{tpu_custom_call.1} parent=11 // pred_region
          _
        $region116: #{tpu_custom_call.1} parent=11 // pred_fallthru
          _
      $region12: #{tpu_custom_call.1} parent=5 // pred_fallthru
        _
      %p961 = scmp.lt.s32.totalorder %s82, 2
      // Predicated region
      $region117: #{tpu_custom_call.1} parent=5 // pred_check
        %p962 = pneg %p961
      $region118: #{tpu_custom_call.1} parent=5 // pred_check_branch
        %964 = sbr.rel (%p962) target = $region120
      $region119: #{tpu_custom_call.1} parent=5 // pred_region
        // Predicated region
        $region121: #{tpu_custom_call.1} parent=119 // pred_check
          %p965 = pneg %p102
        $region122: #{tpu_custom_call.1} parent=119 // pred_check_branch
          %967 = sbr.rel (%p965) target = $region124
        $region123: #{tpu_custom_call.1} parent=119 // pred_region
          %s968 = sand.u32 %s92, 1
          %s969 = scalar_lea.sflag [#allocation3], %s968
          %s970 = sand.u32 %s92, 1
          %s971 = smul.addr %s970, 8
          %s972 = scalar_lea.vmem [#allocation2], %s971
          %s974 = ssub.s32 128, 128
          %975 = vsyncadd %s969, %s974
          %s976 = smul.addr %s82, 128
          %s977 = scalar_lea.hbm %s1, %s976
          %s979 = sshll.u32 %s972, 4
          %s980 = int_to_ptr.vmem [resolvable:$true] %s979
          %982 = dma.hbm_to_vmem [thread:$0]  %s977, 128, %s980, %s969
        $region124: #{tpu_custom_call.1} parent=119 // pred_fallthru
          _
        // Predicated region
        $region125: #{tpu_custom_call.1} parent=119 // pred_check
          %p983 = pneg %p128
        $region126: #{tpu_custom_call.1} parent=119 // pred_check_branch
          %985 = sbr.rel (%p983) target = $region128
        $region127: #{tpu_custom_call.1} parent=119 // pred_region
          %p986 = scmp.lt.s32.totalorder %s82, 1
          %s987 = scalar_select %p986, %s82, 1
          %s988 = smul.addr %s987, 2
          %s989 = smul.addr %s988, 8
          %s990 = scalar_lea.vmem %s3, %s989
        $region128: #{tpu_custom_call.1} parent=119 // pred_fallthru
          _
        // Predicated region
        $region129: #{tpu_custom_call.1} parent=119 // pred_check
          %p991 = pneg %p154
        $region130: #{tpu_custom_call.1} parent=119 // pred_check_branch
          %993 = sbr.rel (%p991) target = $region132
        $region131: #{tpu_custom_call.1} parent=119 // pred_region
          %s994 = sand.u32 %s82, 1
          %s995 = scalar_lea.sflag [#allocation6], %s994
          %s996 = sand.u32 %s144, 1
          %s997 = smul.addr %s996, 2
          %s998 = scalar_lea.vmem [#allocation5], %s997
          %s1000 = ssub.s32 32, 32
          %1001 = vsyncadd %s995, %s1000
          %s1002 = smul.addr %s82, 32
          %s1003 = scalar_lea.hbm %s5, %s1002
          %s1005 = sshll.u32 %s998, 4
          %s1006 = int_to_ptr.vmem [resolvable:$true] %s1005
          %1008 = dma.hbm_to_vmem [thread:$0]  %s1003, 32, %s1006, %s995
        $region132: #{tpu_custom_call.1} parent=119 // pred_fallthru
          _
        // Predicated region
        $region133: #{tpu_custom_call.1} parent=119 // pred_check
          %p1009 = pneg %p180
        $region134: #{tpu_custom_call.1} parent=119 // pred_check_branch
          %1011 = sbr.rel (%p1009) target = $region136
        $region135: #{tpu_custom_call.1} parent=119 // pred_region
          %p1012 = scmp.lt.s32.totalorder %s82, 1
          %s1013 = scalar_select %p1012, %s82, 1
          %s1014 = smul.addr %s1013, 2
          %s1015 = scalar_lea.vmem %s7, %s1014
        $region136: #{tpu_custom_call.1} parent=119 // pred_fallthru
          _
      $region120: #{tpu_custom_call.1} parent=5 // pred_fallthru
        _
      %p1016 = scmp.le.s32.totalorder 1, %s82
      %p1017 = scmp.lt.s32.totalorder %s82, 3
      %p1018 = pnand %p1016, %p1017
      %p1019 = pneg %p1018
      // Predicated region
      $region137: #{tpu_custom_call.1} parent=5 // pred_check
        _
      $region138: #{tpu_custom_call.1} parent=5 // pred_check_branch
        %1021 = sbr.rel (%p1018) target = $region140
      $region139: #{tpu_custom_call.1} parent=5 // pred_region
        %s1022 = ssub.s32 %s82, 1
        %s1023 = sand.u32 %s95, 1
        %s1024 = scalar_lea.sflag [#allocation3], %s1023
        %s1025 = sand.u32 %s95, 1
        %s1026 = smul.addr %s1025, 8
        %s1027 = scalar_lea.vmem [#allocation2], %s1026
        // Predicated region
        $region141: #{tpu_custom_call.1} parent=139 // pred_check
          %p1028 = pneg %p108
        $region142: #{tpu_custom_call.1} parent=139 // pred_check_branch
          %1030 = sbr.rel (%p1028) target = $region144
        $region143: #{tpu_custom_call.1} parent=139 // pred_region
          %1031 = dma.done %s1024, 128
        $region144: #{tpu_custom_call.1} parent=139 // pred_fallthru
          _
        %s1032 = sand.u32 %s87, 1
        %s1033 = scalar_lea.sflag [#allocation6], %s1032
        %s1034 = sand.u32 %s147, 1
        %s1035 = smul.addr %s1034, 2
        %s1036 = scalar_lea.vmem [#allocation5], %s1035
        // Predicated region
        $region145: #{tpu_custom_call.1} parent=139 // pred_check
          %p1037 = pneg %p160
        $region146: #{tpu_custom_call.1} parent=139 // pred_check_branch
          %1039 = sbr.rel (%p1037) target = $region148
        $region147: #{tpu_custom_call.1} parent=139 // pred_region
          %1040 = dma.done %s1033, 32
        $region148: #{tpu_custom_call.1} parent=139 // pred_fallthru
          _
        // Predicated region
        $region149: #{tpu_custom_call.1} parent=139 // pred_check
          %p1041 = pneg %p291
        $region150: #{tpu_custom_call.1} parent=139 // pred_check_branch
          %1043 = sbr.rel (%p1041) target = $region152
        $region151: #{tpu_custom_call.1} parent=139 // pred_region
          %1044 = dma.done [#allocation6], 512
        $region152: #{tpu_custom_call.1} parent=139 // pred_fallthru
          _
        // Predicated region
        $region153: #{tpu_custom_call.1} parent=139 // pred_check
          %p1045 = pneg %p333
        $region154: #{tpu_custom_call.1} parent=139 // pred_check_branch
          %1047 = sbr.rel (%p1045) target = $region156
        $region155: #{tpu_custom_call.1} parent=139 // pred_region
          %1048 = dma.done [#allocation9], 512
        $region156: #{tpu_custom_call.1} parent=139 // pred_fallthru
          _
        // Predicated region
        $region157: #{tpu_custom_call.1} parent=139 // pred_check
          %p1049 = pneg %p375
        $region158: #{tpu_custom_call.1} parent=139 // pred_check_branch
          %1051 = sbr.rel (%p1049) target = $region160
        $region159: #{tpu_custom_call.1} parent=139 // pred_region
          %1052 = dma.done [#allocation9], 512
        $region160: #{tpu_custom_call.1} parent=139 // pred_fallthru
          _
        // Predicated region
        $region161: #{tpu_custom_call.1} parent=139 // pred_check
          %p1053 = pneg %p396
        $region162: #{tpu_custom_call.1} parent=139 // pred_check_branch
          %1055 = sbr.rel (%p1053) target = $region164
        $region163: #{tpu_custom_call.1} parent=139 // pred_region
          %1056 = dma.done [#allocation12], 16
        $region164: #{tpu_custom_call.1} parent=139 // pred_fallthru
          _
        // Predicated region
        $region165: #{tpu_custom_call.1} parent=139 // pred_check
          %p1057 = pneg %p417
        $region166: #{tpu_custom_call.1} parent=139 // pred_check_branch
          %1059 = sbr.rel (%p1057) target = $region168
        $region167: #{tpu_custom_call.1} parent=139 // pred_region
          %1060 = dma.done [#allocation12], 512
        $region168: #{tpu_custom_call.1} parent=139 // pred_fallthru
          _
        // Predicated region
        $region169: #{tpu_custom_call.1} parent=139 // pred_check
          %p1061 = pneg %p438
        $region170: #{tpu_custom_call.1} parent=139 // pred_check_branch
          %1063 = sbr.rel (%p1061) target = $region172
        $region171: #{tpu_custom_call.1} parent=139 // pred_region
          %1064 = dma.done [#allocation15], 16
        $region172: #{tpu_custom_call.1} parent=139 // pred_fallthru
          _
        // Predicated region
        $region173: #{tpu_custom_call.1} parent=139 // pred_check
          %p1065 = pneg %p459
        $region174: #{tpu_custom_call.1} parent=139 // pred_check_branch
          %1067 = sbr.rel (%p1065) target = $region176
        $region175: #{tpu_custom_call.1} parent=139 // pred_region
          %1068 = dma.done [#allocation15], 512
        $region176: #{tpu_custom_call.1} parent=139 // pred_fallthru
          _
        // Predicated region
        $region177: #{tpu_custom_call.1} parent=139 // pred_check
          %p1069 = pneg %p480
        $region178: #{tpu_custom_call.1} parent=139 // pred_check_branch
          %1071 = sbr.rel (%p1069) target = $region180
        $region179: #{tpu_custom_call.1} parent=139 // pred_region
          %1072 = dma.done [#allocation18], 16
        $region180: #{tpu_custom_call.1} parent=139 // pred_fallthru
          _
        // Predicated region
        $region181: #{tpu_custom_call.1} parent=139 // pred_check
          %p1073 = pneg %p501
        $region182: #{tpu_custom_call.1} parent=139 // pred_check_branch
          %1075 = sbr.rel (%p1073) target = $region184
        $region183: #{tpu_custom_call.1} parent=139 // pred_region
          %1076 = dma.done [#allocation18], 512
        $region184: #{tpu_custom_call.1} parent=139 // pred_fallthru
          _
        // Predicated region
        $region185: #{tpu_custom_call.1} parent=139 // pred_check
          %p1077 = pneg %p522
        $region186: #{tpu_custom_call.1} parent=139 // pred_check_branch
          %1079 = sbr.rel (%p1077) target = $region188
        $region187: #{tpu_custom_call.1} parent=139 // pred_region
          %1080 = dma.done [#allocation21], 16
        $region188: #{tpu_custom_call.1} parent=139 // pred_fallthru
          _
        // Predicated region
        $region189: #{tpu_custom_call.1} parent=139 // pred_check
          %p1081 = pneg %p543
        $region190: #{tpu_custom_call.1} parent=139 // pred_check_branch
          %1083 = sbr.rel (%p1081) target = $region192
        $region191: #{tpu_custom_call.1} parent=139 // pred_region
          %1084 = dma.done [#allocation21], 512
        $region192: #{tpu_custom_call.1} parent=139 // pred_fallthru
          _
        // Predicated region
        $region193: #{tpu_custom_call.1} parent=139 // pred_check
          %p1085 = pneg %p564
        $region194: #{tpu_custom_call.1} parent=139 // pred_check_branch
          %1087 = sbr.rel (%p1085) target = $region196
        $region195: #{tpu_custom_call.1} parent=139 // pred_region
          %1088 = dma.done [#allocation24], 16
        $region196: #{tpu_custom_call.1} parent=139 // pred_fallthru
          _
        %s1089 = sand.u32 %s95, 1
        %s1090 = scalar_lea.sflag [#allocation3], %s1089
        %s1091 = sand.u32 %s95, 1
        %s1092 = smul.addr %s1091, 8
        %s1093 = scalar_lea.vmem [#allocation2], %s1092
        %p1094 = pneg %p108
        %p1095 = pneg %p105
        %p1096 = scmp.lt.s32.totalorder %s87, 1
        %s1097 = scalar_select %p1096, %s87, 1
        %s1098 = smul.addr %s1097, 2
        %s1099 = smul.addr %s1098, 8
        %s1100 = scalar_lea.vmem %s3, %s1099
        %p1101 = pneg %p134
        %p1102 = pneg %p131
        %s1103 = sand.u32 %s87, 1
        %s1104 = scalar_lea.sflag [#allocation6], %s1103
        %s1105 = sand.u32 %s147, 1
        %s1106 = smul.addr %s1105, 2
        %s1107 = scalar_lea.vmem [#allocation5], %s1106
        %p1108 = pneg %p160
        %p1109 = pneg %p157
        %p1110 = scmp.lt.s32.totalorder %s87, 1
        %s1111 = scalar_select %p1110, %s87, 1
        %s1112 = smul.addr %s1111, 2
        %s1113 = scalar_lea.vmem %s7, %s1112
        %p1114 = pneg %p186
        %p1115 = pneg %p183
        %p1116 = pneg %p207
        %p1117 = pneg %p204
        %p1118 = pneg %p228
        %p1119 = pneg %p225
        %p1120 = pneg %p249
        %p1121 = pneg %p246
        %p1122 = pneg %p270
        %p1123 = pneg %p267
        %p1124 = pneg %p291
        %p1125 = pneg %p288
        %p1126 = pneg %p312
        %p1127 = pneg %p309
        %p1128 = pneg %p333
        %p1129 = pneg %p330
        %p1130 = pneg %p354
        %p1131 = pneg %p351
        %p1132 = pneg %p375
        %p1133 = pneg %p372
        %p1134 = pneg %p396
        %p1135 = pneg %p393
        %p1136 = pneg %p417
        %p1137 = pneg %p414
        %p1138 = pneg %p438
        %p1139 = pneg %p435
        %p1140 = pneg %p459
        %p1141 = pneg %p456
        %p1142 = pneg %p480
        %p1143 = pneg %p477
        %p1144 = pneg %p501
        %p1145 = pneg %p498
        %p1146 = pneg %p522
        %p1147 = pneg %p519
        %p1148 = pneg %p543
        %p1149 = pneg %p540
        %p1150 = pneg %p564
        %p1151 = pneg %p561
        %p1152 = pneg %p585
        %p1153 = pneg %p582
        %p1154 = pneg %p606
        %p1155 = pneg %p603
        %p1156 = pneg %p627
        %p1157 = pneg %p624
        %p1158 = pneg %p648
        %p1159 = pneg %p645
        %p1160 = pneg %p669
        %p1161 = pneg %p666
        %p1162 = pneg %p690
        %p1163 = pneg %p687
        %p1164 = pneg %p711
        %p1165 = pneg %p708
        %p1166 = pneg %p732
        %p1167 = pneg %p729
        %p1168 = pneg %p758
        %p1169 = pneg %p755
        %s1170 = sand.u32 %s745, 1
        %s1171 = scalar_lea.sflag [#allocation4], %s1170
        %s1172 = sand.u32 %s745, 1
        %s1173 = smul.addr %s1172, 8
        %s1174 = scalar_lea.vmem [#allocation25], %s1173
        %p1175 = scmp.lt.s32.totalorder %s87, 1
        %s1176 = scalar_select %p1175, %s87, 1
        %s1177 = smul.addr %s1176, 2
        %s1178 = smul.addr %s1177, 8
        %s1179 = scalar_lea.vmem %s3, %s1178
        %p1180 = scmp.lt.s32.totalorder %s87, 1
        %s1181 = scalar_select %p1180, %s87, 1
        %s1182 = smul.addr %s1181, 2
        %s1183 = scalar_lea.vmem %s7, %s1182
        %v1186 = vld [vmem:[%s1027] sm:$0xff]
        %v1187 = vld [vmem:[%s1179] sm:$0xff]
        %v1188 = vld [vmem:[%s1179 + $0x8] sm:$0xff]
        %v1189 = vld [vmem:[%s1183] sm:$0x3]
        %vm1190 = vnez %v1189
        %v1191 = vld [vmem:[%s1036] sm:$0x3]
        %vm1192 = vnez %v1191
        %v1193 = vld [vmem:[%s9] sm:$0xff]
        %v1194 = vld [vmem:[%s9 + $0x8] sm:$0xff]
        %v1195 = vld [vmem:[%s9 + $0x10] sm:$0xff]
        %v1196 = vld [vmem:[%s9 + $0x18] sm:$0xff]
        %v1197 = vld [vmem:[%s11] sm:$0x1]
        %v1199 = vlaneseq
        %v1200 = vshrl.u32 %v1199, 7
        %v1201 = vsub.s32 0, %v1200
        %v1202 = vrot.slane %v1197, %v1201
        %vm1204 = vcmask 261120
        %v1206 = vsel %vm1204, %v1186, 0
        %1208 = vmatprep.subr.mxu0 0.0
        %1209 = vmatpush1.msra.mxu0 0.0
        %1210 = vmatprep.subr.mxu0 0.0
        %1211 = vmatpush1.msra.mxu0 0.0
        %1212 = vmatprep.subr.mxu0 0.0
        %1213 = vmatpush1.msra.mxu0 0.0
        %1214 = vmatprep.subr.mxu0 0.0
        %1215 = vmatpush1.msra.mxu0 0.0
        %1216 = vmatprep.subr.mxu0 0.0
        %1217 = vmatpush1.msra.mxu0 0.0
        %1218 = vmatprep.subr.mxu0 0.0
        %1219 = vmatpush1.msra.mxu0 0.0
        %1220 = vmatprep.subr.mxu0 0.0
        %1221 = vmatpush1.msra.mxu0 0.0
        %1222 = vmatprep.subr.mxu0 0.0
        %1223 = vmatpush1.msra.mxu0 0.0
        %1224 = vmatprep.subr.mxu0 0.0
        %1225 = vmatpush1.msra.mxu0 0.0
        %1226 = vmatprep.subr.mxu0 0.0
        %1227 = vmatpush1.msra.mxu0 0.0
        %1228 = vmatprep.subr.mxu0 0.0
        %1229 = vmatpush1.msra.mxu0 0.0
        %1230 = vmatprep.subr.mxu0 0.0
        %1231 = vmatpush1.msra.mxu0 0.0
        %1232 = vmatprep.subr.mxu0 0.0
        %1233 = vmatpush1.msra.mxu0 %v1196
        %1234 = vmatprep.subr.mxu0 0.0
        %1235 = vmatpush1.msra.mxu0 %v1195
        %1236 = vmatprep.subr.mxu0 0.0
        %1237 = vmatpush1.msra.mxu0 %v1194
        %1238 = vmatprep.subr.mxu0 0.0
        %1239 = vmatpush1.msra.mxu0 %v1193
        %1240 = vmatprep.subr.mxu0 0.0
        %1241 = vmatpush2.msra.mxu0 0.0
        %1242 = vmatprep.subr.mxu0 0.0
        %1243 = vmatpush2.msra.mxu0 0.0
        %1244 = vmatprep.subr.mxu0 0.0
        %1245 = vmatpush2.msra.mxu0 0.0
        %1246 = vmatprep.subr.mxu0 0.0
        %1247 = vmatpush2.msra.mxu0 0.0
        %1248 = vmatprep.subr.mxu0 0.0
        %1249 = vmatpush2.msra.mxu0 0.0
        %1250 = vmatprep.subr.mxu0 0.0
        %1251 = vmatpush2.msra.mxu0 0.0
        %1252 = vmatprep.subr.mxu0 0.0
        %1253 = vmatpush2.msra.mxu0 0.0
        %1254 = vmatprep.subr.mxu0 0.0
        %1255 = vmatpush2.msra.mxu0 0.0
        %1256 = vmatprep.subr.mxu0 0.0
        %1257 = vmatpush2.msra.mxu0 0.0
        %1258 = vmatprep.subr.mxu0 0.0
        %1259 = vmatpush2.msra.mxu0 0.0
        %1260 = vmatprep.subr.mxu0 0.0
        %1261 = vmatpush2.msra.mxu0 0.0
        %1262 = vmatprep.subr.mxu0 0.0
        %1263 = vmatpush2.msra.mxu0 0.0
        %1264 = vmatprep.subr.mxu0 0.0
        %1265 = vmatpush2.msra.mxu0 0.0
        %1266 = vmatprep.subr.mxu0 0.0
        %1267 = vmatpush2.msra.mxu0 0.0
        %1268 = vmatprep.subr.mxu0 0.0
        %1269 = vmatpush2.msra.mxu0 0.0
        %1270 = vmatprep.subr.mxu0 0.0
        %1271 = vmatpush2.msra.mxu0 0.0
        %1272 = vmatprep.mubr.f32.mxu0 0.0
        %1273 = vmatmul.mubr.f32.gmra.mxu0 %v1206
        %v1274 = vpop.f32.mrf.mxu0
        %v1275 = vadd.f32 %v1202, %v1274
        %v1276 = vpop.f32.mrf.mxu0
        %1277 = vdwg.mxu0
        %v1278 = vld [vmem:[%s13] sm:$0xff]
        %v1279 = vld [vmem:[%s13 + $0x8] sm:$0xff]
        %v1280 = vld [vmem:[%s13 + $0x10] sm:$0xff]
        %v1281 = vld [vmem:[%s13 + $0x18] sm:$0xff]
        %v1282 = vld [vmem:[%s15] sm:$0x1]
        %v1284 = vlaneseq
        %v1285 = vshrl.u32 %v1284, 7
        %v1286 = vsub.s32 0, %v1285
        %v1287 = vrot.slane %v1282, %v1286
        %1289 = vmatprep.subr.mxu0 0.0
        %1290 = vmatpush1.msra.mxu0 0.0
        %1291 = vmatprep.subr.mxu0 0.0
        %1292 = vmatpush1.msra.mxu0 0.0
        %1293 = vmatprep.subr.mxu0 0.0
        %1294 = vmatpush1.msra.mxu0 0.0
        %1295 = vmatprep.subr.mxu0 0.0
        %1296 = vmatpush1.msra.mxu0 0.0
        %1297 = vmatprep.subr.mxu0 0.0
        %1298 = vmatpush1.msra.mxu0 0.0
        %1299 = vmatprep.subr.mxu0 0.0
        %1300 = vmatpush1.msra.mxu0 0.0
        %1301 = vmatprep.subr.mxu0 0.0
        %1302 = vmatpush1.msra.mxu0 0.0
        %1303 = vmatprep.subr.mxu0 0.0
        %1304 = vmatpush1.msra.mxu0 0.0
        %1305 = vmatprep.subr.mxu0 0.0
        %1306 = vmatpush1.msra.mxu0 0.0
        %1307 = vmatprep.subr.mxu0 0.0
        %1308 = vmatpush1.msra.mxu0 0.0
        %1309 = vmatprep.subr.mxu0 0.0
        %1310 = vmatpush1.msra.mxu0 0.0
        %1311 = vmatprep.subr.mxu0 0.0
        %1312 = vmatpush1.msra.mxu0 0.0
        %1313 = vmatprep.subr.mxu0 0.0
        %1314 = vmatpush1.msra.mxu0 %v1281
        %1315 = vmatprep.subr.mxu0 0.0
        %1316 = vmatpush1.msra.mxu0 %v1280
        %1317 = vmatprep.subr.mxu0 0.0
        %1318 = vmatpush1.msra.mxu0 %v1279
        %1319 = vmatprep.subr.mxu0 0.0
        %1320 = vmatpush1.msra.mxu0 %v1278
        %1321 = vmatprep.subr.mxu0 0.0
        %1322 = vmatpush2.msra.mxu0 0.0
        %1323 = vmatprep.subr.mxu0 0.0
        %1324 = vmatpush2.msra.mxu0 0.0
        %1325 = vmatprep.subr.mxu0 0.0
        %1326 = vmatpush2.msra.mxu0 0.0
        %1327 = vmatprep.subr.mxu0 0.0
        %1328 = vmatpush2.msra.mxu0 0.0
        %1329 = vmatprep.subr.mxu0 0.0
        %1330 = vmatpush2.msra.mxu0 0.0
        %1331 = vmatprep.subr.mxu0 0.0
        %1332 = vmatpush2.msra.mxu0 0.0
        %1333 = vmatprep.subr.mxu0 0.0
        %1334 = vmatpush2.msra.mxu0 0.0
        %1335 = vmatprep.subr.mxu0 0.0
        %1336 = vmatpush2.msra.mxu0 0.0
        %1337 = vmatprep.subr.mxu0 0.0
        %1338 = vmatpush2.msra.mxu0 0.0
        %1339 = vmatprep.subr.mxu0 0.0
        %1340 = vmatpush2.msra.mxu0 0.0
        %1341 = vmatprep.subr.mxu0 0.0
        %1342 = vmatpush2.msra.mxu0 0.0
        %1343 = vmatprep.subr.mxu0 0.0
        %1344 = vmatpush2.msra.mxu0 0.0
        %1345 = vmatprep.subr.mxu0 0.0
        %1346 = vmatpush2.msra.mxu0 0.0
        %1347 = vmatprep.subr.mxu0 0.0
        %1348 = vmatpush2.msra.mxu0 0.0
        %1349 = vmatprep.subr.mxu0 0.0
        %1350 = vmatpush2.msra.mxu0 0.0
        %1351 = vmatprep.subr.mxu0 0.0
        %1352 = vmatpush2.msra.mxu0 0.0
        %1353 = vmatprep.mubr.f32.mxu0 0.0
        %1354 = vmatmul.mubr.f32.gmra.mxu0 %v1206
        %v1355 = vpop.f32.mrf.mxu0
        %v1356 = vadd.f32 %v1287, %v1355
        %v1357 = vpop.f32.mrf.mxu0
        %1358 = vdwg.mxu0
        %v1359 = vld [vmem:[#allocation7] sm:$0xff]
        %v1360 = vld [vmem:[#allocation7 + $0x8] sm:$0xff]
        %v1361 = vld [vmem:[#allocation7 + $0x10] sm:$0xff]
        %v1362 = vld [vmem:[#allocation7 + $0x18] sm:$0xff]
        %v1363 = vld [vmem:[%s19] sm:$0x1]
        %v1365 = vlaneseq
        %v1366 = vshrl.u32 %v1365, 7
        %v1367 = vsub.s32 0, %v1366
        %v1368 = vrot.slane %v1363, %v1367
        %1370 = vmatprep.subr.mxu0 0.0
        %1371 = vmatpush1.msra.mxu0 0.0
        %1372 = vmatprep.subr.mxu0 0.0
        %1373 = vmatpush1.msra.mxu0 0.0
        %1374 = vmatprep.subr.mxu0 0.0
        %1375 = vmatpush1.msra.mxu0 0.0
        %1376 = vmatprep.subr.mxu0 0.0
        %1377 = vmatpush1.msra.mxu0 0.0
        %1378 = vmatprep.subr.mxu0 0.0
        %1379 = vmatpush1.msra.mxu0 0.0
        %1380 = vmatprep.subr.mxu0 0.0
        %1381 = vmatpush1.msra.mxu0 0.0
        %1382 = vmatprep.subr.mxu0 0.0
        %1383 = vmatpush1.msra.mxu0 0.0
        %1384 = vmatprep.subr.mxu0 0.0
        %1385 = vmatpush1.msra.mxu0 0.0
        %1386 = vmatprep.subr.mxu0 0.0
        %1387 = vmatpush1.msra.mxu0 0.0
        %1388 = vmatprep.subr.mxu0 0.0
        %1389 = vmatpush1.msra.mxu0 0.0
        %1390 = vmatprep.subr.mxu0 0.0
        %1391 = vmatpush1.msra.mxu0 0.0
        %1392 = vmatprep.subr.mxu0 0.0
        %1393 = vmatpush1.msra.mxu0 0.0
        %1394 = vmatprep.subr.mxu0 0.0
        %1395 = vmatpush1.msra.mxu0 %v1362
        %1396 = vmatprep.subr.mxu0 0.0
        %1397 = vmatpush1.msra.mxu0 %v1361
        %1398 = vmatprep.subr.mxu0 0.0
        %1399 = vmatpush1.msra.mxu0 %v1360
        %1400 = vmatprep.subr.mxu0 0.0
        %1401 = vmatpush1.msra.mxu0 %v1359
        %1402 = vmatprep.subr.mxu0 0.0
        %1403 = vmatpush2.msra.mxu0 0.0
        %1404 = vmatprep.subr.mxu0 0.0
        %1405 = vmatpush2.msra.mxu0 0.0
        %1406 = vmatprep.subr.mxu0 0.0
        %1407 = vmatpush2.msra.mxu0 0.0
        %1408 = vmatprep.subr.mxu0 0.0
        %1409 = vmatpush2.msra.mxu0 0.0
        %1410 = vmatprep.subr.mxu0 0.0
        %1411 = vmatpush2.msra.mxu0 0.0
        %1412 = vmatprep.subr.mxu0 0.0
        %1413 = vmatpush2.msra.mxu0 0.0
        %1414 = vmatprep.subr.mxu0 0.0
        %1415 = vmatpush2.msra.mxu0 0.0
        %1416 = vmatprep.subr.mxu0 0.0
        %1417 = vmatpush2.msra.mxu0 0.0
        %1418 = vmatprep.subr.mxu0 0.0
        %1419 = vmatpush2.msra.mxu0 0.0
        %1420 = vmatprep.subr.mxu0 0.0
        %1421 = vmatpush2.msra.mxu0 0.0
        %1422 = vmatprep.subr.mxu0 0.0
        %1423 = vmatpush2.msra.mxu0 0.0
        %1424 = vmatprep.subr.mxu0 0.0
        %1425 = vmatpush2.msra.mxu0 0.0
        %1426 = vmatprep.subr.mxu0 0.0
        %1427 = vmatpush2.msra.mxu0 0.0
        %1428 = vmatprep.subr.mxu0 0.0
        %1429 = vmatpush2.msra.mxu0 0.0
        %1430 = vmatprep.subr.mxu0 0.0
        %1431 = vmatpush2.msra.mxu0 0.0
        %1432 = vmatprep.subr.mxu0 0.0
        %1433 = vmatpush2.msra.mxu0 0.0
        %1434 = vmatprep.mubr.f32.mxu0 0.0
        %1435 = vmatmul.mubr.f32.gmra.mxu0 %v1206
        %v1436 = vpop.f32.mrf.mxu0
        %v1437 = vadd.f32 %v1368, %v1436
        %v1438 = vpop.f32.mrf.mxu0
        %1439 = vdwg.mxu0
        %1441 = vrot.lane.b32.xlu0 %v1275, 120
        %v1442 = vpop.permute.xlu0 %1441
        %1444 = vrot.lane.b32.xlu0 %v1275, 112
        %v1445 = vpop.permute.xlu0 %1444
        %1447 = vrot.lane.b32.xlu0 %v1275, 104
        %v1448 = vpop.permute.xlu0 %1447
        %v1450 = vcombine.low %v1275, %v1445
        %v1451 = vcombine.high %v1275, %v1445
        %v1453 = vunpack.c.l.s4 1983009808
        %v1454 = vunpack.c.0.s8 %v1453
        %v1455 = vlaneseq
        %v1456 = vshrl.u32 %v1455, 7
        %v1457 = vsub.s32 %v1454, %v1456
        %v1458 = vrot.slane %v1450, %v1457
        %v1460 = vunpack.c.l.s4 1983009808
        %v1461 = vunpack.c.0.s8 %v1460
        %v1462 = vlaneseq
        %v1463 = vshrl.u32 %v1462, 7
        %v1464 = vsub.s32 %v1461, %v1463
        %v1465 = vrot.slane %v1451, %v1464
        %v1466 = vcombine.low %v1442, %v1448
        %v1467 = vcombine.high %v1442, %v1448
        %v1469 = vunpack.c.l.s4 1983009808
        %v1470 = vunpack.c.0.s8 %v1469
        %v1471 = vlaneseq
        %v1472 = vshrl.u32 %v1471, 7
        %v1473 = vsub.s32 %v1470, %v1472
        %v1474 = vrot.slane %v1466, %v1473
        %v1476 = vunpack.c.l.s4 1983009808
        %v1477 = vunpack.c.0.s8 %v1476
        %v1478 = vlaneseq
        %v1479 = vshrl.u32 %v1478, 7
        %v1480 = vsub.s32 %v1477, %v1479
        %v1481 = vrot.slane %v1467, %v1480
        %v1482 = vcombine.low %v1458, %v1474
        %v1483 = vcombine.high %v1458, %v1474
        %v1485 = vunpack.c.l.s4 1934713408
        %v1486 = vunpack.c.0.s8 %v1485
        %v1487 = vlaneseq
        %v1488 = vshrl.u32 %v1487, 7
        %v1489 = vsub.s32 %v1486, %v1488
        %v1490 = vrot.slane %v1482, %v1489
        %v1492 = vunpack.c.l.s4 1934713408
        %v1493 = vunpack.c.0.s8 %v1492
        %v1494 = vlaneseq
        %v1495 = vshrl.u32 %v1494, 7
        %v1496 = vsub.s32 %v1493, %v1495
        %v1497 = vrot.slane %v1483, %v1496
        %v1498 = vcombine.low %v1465, %v1481
        %v1499 = vcombine.high %v1465, %v1481
        %v1501 = vunpack.c.l.s4 1934713408
        %v1502 = vunpack.c.0.s8 %v1501
        %v1503 = vlaneseq
        %v1504 = vshrl.u32 %v1503, 7
        %v1505 = vsub.s32 %v1502, %v1504
        %v1506 = vrot.slane %v1498, %v1505
        %v1508 = vunpack.c.l.s4 1934713408
        %v1509 = vunpack.c.0.s8 %v1508
        %v1510 = vlaneseq
        %v1511 = vshrl.u32 %v1510, 7
        %v1512 = vsub.s32 %v1509, %v1511
        %v1513 = vrot.slane %v1499, %v1512
        %v1514 = vcombine.high %v1490, 0.0
        %v1515 = vcombine.high %v1497, 0.0
        %v1516 = vcombine.high %v1506, 0.0
        %v1517 = vcombine.high %v1513, 0.0
        %v1518 = vcombine.low %v1490, %v1497
        %v1520 = vunpack.c.l.s4 1983009808
        %v1521 = vunpack.c.0.s8 %v1520
        %v1522 = vlaneseq
        %v1523 = vshrl.u32 %v1522, 7
        %v1524 = vsub.s32 %v1521, %v1523
        %v1525 = vrot.slane %v1518, %v1524
        %v1526 = vcombine.low %v1514, %v1515
        %v1528 = vunpack.c.l.s4 1983009808
        %v1529 = vunpack.c.0.s8 %v1528
        %v1530 = vlaneseq
        %v1531 = vshrl.u32 %v1530, 7
        %v1532 = vsub.s32 %v1529, %v1531
        %v1533 = vrot.slane %v1526, %v1532
        %v1534 = vcombine.low %v1506, %v1513
        %v1536 = vunpack.c.l.s4 1983009808
        %v1537 = vunpack.c.0.s8 %v1536
        %v1538 = vlaneseq
        %v1539 = vshrl.u32 %v1538, 7
        %v1540 = vsub.s32 %v1537, %v1539
        %v1541 = vrot.slane %v1534, %v1540
        %v1542 = vcombine.low %v1516, %v1517
        %v1544 = vunpack.c.l.s4 1983009808
        %v1545 = vunpack.c.0.s8 %v1544
        %v1546 = vlaneseq
        %v1547 = vshrl.u32 %v1546, 7
        %v1548 = vsub.s32 %v1545, %v1547
        %v1549 = vrot.slane %v1542, %v1548
        %v1550 = vcombine.low %v1525, %v1533
        %v1551 = vcombine.high %v1525, %v1533
        %v1553 = vunpack.c.l.s4 1934713408
        %v1554 = vunpack.c.0.s8 %v1553
        %v1555 = vlaneseq
        %v1556 = vshrl.u32 %v1555, 7
        %v1557 = vsub.s32 %v1554, %v1556
        %v1558 = vrot.slane %v1550, %v1557
        %v1560 = vunpack.c.l.s4 1934713408
        %v1561 = vunpack.c.0.s8 %v1560
        %v1562 = vlaneseq
        %v1563 = vshrl.u32 %v1562, 7
        %v1564 = vsub.s32 %v1561, %v1563
        %v1565 = vrot.slane %v1551, %v1564
        %v1566 = vcombine.low %v1541, %v1549
        %v1567 = vcombine.high %v1541, %v1549
        %v1569 = vunpack.c.l.s4 1934713408
        %v1570 = vunpack.c.0.s8 %v1569
        %v1571 = vlaneseq
        %v1572 = vshrl.u32 %v1571, 7
        %v1573 = vsub.s32 %v1570, %v1572
        %v1574 = vrot.slane %v1566, %v1573
        %v1576 = vunpack.c.l.s4 1934713408
        %v1577 = vunpack.c.0.s8 %v1576
        %v1578 = vlaneseq
        %v1579 = vshrl.u32 %v1578, 7
        %v1580 = vsub.s32 %v1577, %v1579
        %v1581 = vrot.slane %v1567, %v1580
        %v1582 = vcombine.low %v1558, %v1574
        %v1583 = vcombine.high %v1558, %v1574
        %v1584 = vcombine.low %v1565, %v1581
        %v1585 = vcombine.high %v1565, %v1581
        %1587 = vrot.lane.b32.xlu0 %v1356, 120
        %v1588 = vpop.permute.xlu0 %1587
        %1590 = vrot.lane.b32.xlu0 %v1356, 112
        %v1591 = vpop.permute.xlu0 %1590
        %1593 = vrot.lane.b32.xlu0 %v1356, 104
        %v1594 = vpop.permute.xlu0 %1593
        %v1596 = vcombine.low %v1356, %v1591
        %v1597 = vcombine.high %v1356, %v1591
        %v1599 = vunpack.c.l.s4 1983009808
        %v1600 = vunpack.c.0.s8 %v1599
        %v1601 = vlaneseq
        %v1602 = vshrl.u32 %v1601, 7
        %v1603 = vsub.s32 %v1600, %v1602
        %v1604 = vrot.slane %v1596, %v1603
        %v1606 = vunpack.c.l.s4 1983009808
        %v1607 = vunpack.c.0.s8 %v1606
        %v1608 = vlaneseq
        %v1609 = vshrl.u32 %v1608, 7
        %v1610 = vsub.s32 %v1607, %v1609
        %v1611 = vrot.slane %v1597, %v1610
        %v1612 = vcombine.low %v1588, %v1594
        %v1613 = vcombine.high %v1588, %v1594
        %v1615 = vunpack.c.l.s4 1983009808
        %v1616 = vunpack.c.0.s8 %v1615
        %v1617 = vlaneseq
        %v1618 = vshrl.u32 %v1617, 7
        %v1619 = vsub.s32 %v1616, %v1618
        %v1620 = vrot.slane %v1612, %v1619
        %v1622 = vunpack.c.l.s4 1983009808
        %v1623 = vunpack.c.0.s8 %v1622
        %v1624 = vlaneseq
        %v1625 = vshrl.u32 %v1624, 7
        %v1626 = vsub.s32 %v1623, %v1625
        %v1627 = vrot.slane %v1613, %v1626
        %v1628 = vcombine.low %v1604, %v1620
        %v1629 = vcombine.high %v1604, %v1620
        %v1631 = vunpack.c.l.s4 1934713408
        %v1632 = vunpack.c.0.s8 %v1631
        %v1633 = vlaneseq
        %v1634 = vshrl.u32 %v1633, 7
        %v1635 = vsub.s32 %v1632, %v1634
        %v1636 = vrot.slane %v1628, %v1635
        %v1638 = vunpack.c.l.s4 1934713408
        %v1639 = vunpack.c.0.s8 %v1638
        %v1640 = vlaneseq
        %v1641 = vshrl.u32 %v1640, 7
        %v1642 = vsub.s32 %v1639, %v1641
        %v1643 = vrot.slane %v1629, %v1642
        %v1644 = vcombine.low %v1611, %v1627
        %v1645 = vcombine.high %v1611, %v1627
        %v1647 = vunpack.c.l.s4 1934713408
        %v1648 = vunpack.c.0.s8 %v1647
        %v1649 = vlaneseq
        %v1650 = vshrl.u32 %v1649, 7
        %v1651 = vsub.s32 %v1648, %v1650
        %v1652 = vrot.slane %v1644, %v1651
        %v1654 = vunpack.c.l.s4 1934713408
        %v1655 = vunpack.c.0.s8 %v1654
        %v1656 = vlaneseq
        %v1657 = vshrl.u32 %v1656, 7
        %v1658 = vsub.s32 %v1655, %v1657
        %v1659 = vrot.slane %v1645, %v1658
        %v1660 = vcombine.high %v1636, 0.0
        %v1661 = vcombine.high %v1643, 0.0
        %v1662 = vcombine.high %v1652, 0.0
        %v1663 = vcombine.high %v1659, 0.0
        %v1664 = vcombine.low %v1636, %v1643
        %v1666 = vunpack.c.l.s4 1983009808
        %v1667 = vunpack.c.0.s8 %v1666
        %v1668 = vlaneseq
        %v1669 = vshrl.u32 %v1668, 7
        %v1670 = vsub.s32 %v1667, %v1669
        %v1671 = vrot.slane %v1664, %v1670
        %v1672 = vcombine.low %v1660, %v1661
        %v1674 = vunpack.c.l.s4 1983009808
        %v1675 = vunpack.c.0.s8 %v1674
        %v1676 = vlaneseq
        %v1677 = vshrl.u32 %v1676, 7
        %v1678 = vsub.s32 %v1675, %v1677
        %v1679 = vrot.slane %v1672, %v1678
        %v1680 = vcombine.low %v1652, %v1659
        %v1682 = vunpack.c.l.s4 1983009808
        %v1683 = vunpack.c.0.s8 %v1682
        %v1684 = vlaneseq
        %v1685 = vshrl.u32 %v1684, 7
        %v1686 = vsub.s32 %v1683, %v1685
        %v1687 = vrot.slane %v1680, %v1686
        %v1688 = vcombine.low %v1662, %v1663
        %v1690 = vunpack.c.l.s4 1983009808
        %v1691 = vunpack.c.0.s8 %v1690
        %v1692 = vlaneseq
        %v1693 = vshrl.u32 %v1692, 7
        %v1694 = vsub.s32 %v1691, %v1693
        %v1695 = vrot.slane %v1688, %v1694
        %v1696 = vcombine.low %v1671, %v1679
        %v1697 = vcombine.high %v1671, %v1679
        %v1699 = vunpack.c.l.s4 1934713408
        %v1700 = vunpack.c.0.s8 %v1699
        %v1701 = vlaneseq
        %v1702 = vshrl.u32 %v1701, 7
        %v1703 = vsub.s32 %v1700, %v1702
        %v1704 = vrot.slane %v1696, %v1703
        %v1706 = vunpack.c.l.s4 1934713408
        %v1707 = vunpack.c.0.s8 %v1706
        %v1708 = vlaneseq
        %v1709 = vshrl.u32 %v1708, 7
        %v1710 = vsub.s32 %v1707, %v1709
        %v1711 = vrot.slane %v1697, %v1710
        %v1712 = vcombine.low %v1687, %v1695
        %v1713 = vcombine.high %v1687, %v1695
        %v1715 = vunpack.c.l.s4 1934713408
        %v1716 = vunpack.c.0.s8 %v1715
        %v1717 = vlaneseq
        %v1718 = vshrl.u32 %v1717, 7
        %v1719 = vsub.s32 %v1716, %v1718
        %v1720 = vrot.slane %v1712, %v1719
        %v1722 = vunpack.c.l.s4 1934713408
        %v1723 = vunpack.c.0.s8 %v1722
        %v1724 = vlaneseq
        %v1725 = vshrl.u32 %v1724, 7
        %v1726 = vsub.s32 %v1723, %v1725
        %v1727 = vrot.slane %v1713, %v1726
        %v1728 = vcombine.low %v1704, %v1720
        %v1729 = vcombine.high %v1704, %v1720
        %v1730 = vcombine.low %v1711, %v1727
        %v1731 = vcombine.high %v1711, %v1727
        %1733 = vrot.lane.b32.xlu0 %v1437, 120
        %v1734 = vpop.permute.xlu0 %1733
        %1736 = vrot.lane.b32.xlu0 %v1437, 112
        %v1737 = vpop.permute.xlu0 %1736
        %1739 = vrot.lane.b32.xlu0 %v1437, 104
        %v1740 = vpop.permute.xlu0 %1739
        %v1742 = vcombine.low %v1437, %v1737
        %v1743 = vcombine.high %v1437, %v1737
        %v1745 = vunpack.c.l.s4 1983009808
        %v1746 = vunpack.c.0.s8 %v1745
        %v1747 = vlaneseq
        %v1748 = vshrl.u32 %v1747, 7
        %v1749 = vsub.s32 %v1746, %v1748
        %v1750 = vrot.slane %v1742, %v1749
        %v1752 = vunpack.c.l.s4 1983009808
        %v1753 = vunpack.c.0.s8 %v1752
        %v1754 = vlaneseq
        %v1755 = vshrl.u32 %v1754, 7
        %v1756 = vsub.s32 %v1753, %v1755
        %v1757 = vrot.slane %v1743, %v1756
        %v1758 = vcombine.low %v1734, %v1740
        %v1759 = vcombine.high %v1734, %v1740
        %v1761 = vunpack.c.l.s4 1983009808
        %v1762 = vunpack.c.0.s8 %v1761
        %v1763 = vlaneseq
        %v1764 = vshrl.u32 %v1763, 7
        %v1765 = vsub.s32 %v1762, %v1764
        %v1766 = vrot.slane %v1758, %v1765
        %v1768 = vunpack.c.l.s4 1983009808
        %v1769 = vunpack.c.0.s8 %v1768
        %v1770 = vlaneseq
        %v1771 = vshrl.u32 %v1770, 7
        %v1772 = vsub.s32 %v1769, %v1771
        %v1773 = vrot.slane %v1759, %v1772
        %v1774 = vcombine.low %v1750, %v1766
        %v1775 = vcombine.high %v1750, %v1766
        %v1777 = vunpack.c.l.s4 1934713408
        %v1778 = vunpack.c.0.s8 %v1777
        %v1779 = vlaneseq
        %v1780 = vshrl.u32 %v1779, 7
        %v1781 = vsub.s32 %v1778, %v1780
        %v1782 = vrot.slane %v1774, %v1781
        %v1784 = vunpack.c.l.s4 1934713408
        %v1785 = vunpack.c.0.s8 %v1784
        %v1786 = vlaneseq
        %v1787 = vshrl.u32 %v1786, 7
        %v1788 = vsub.s32 %v1785, %v1787
        %v1789 = vrot.slane %v1775, %v1788
        %v1790 = vcombine.low %v1757, %v1773
        %v1791 = vcombine.high %v1757, %v1773
        %v1793 = vunpack.c.l.s4 1934713408
        %v1794 = vunpack.c.0.s8 %v1793
        %v1795 = vlaneseq
        %v1796 = vshrl.u32 %v1795, 7
        %v1797 = vsub.s32 %v1794, %v1796
        %v1798 = vrot.slane %v1790, %v1797
        %v1800 = vunpack.c.l.s4 1934713408
        %v1801 = vunpack.c.0.s8 %v1800
        %v1802 = vlaneseq
        %v1803 = vshrl.u32 %v1802, 7
        %v1804 = vsub.s32 %v1801, %v1803
        %v1805 = vrot.slane %v1791, %v1804
        %v1806 = vcombine.high %v1782, 0.0
        %v1807 = vcombine.high %v1789, 0.0
        %v1808 = vcombine.high %v1798, 0.0
        %v1809 = vcombine.high %v1805, 0.0
        %v1810 = vcombine.low %v1782, %v1789
        %v1812 = vunpack.c.l.s4 1983009808
        %v1813 = vunpack.c.0.s8 %v1812
        %v1814 = vlaneseq
        %v1815 = vshrl.u32 %v1814, 7
        %v1816 = vsub.s32 %v1813, %v1815
        %v1817 = vrot.slane %v1810, %v1816
        %v1818 = vcombine.low %v1806, %v1807
        %v1820 = vunpack.c.l.s4 1983009808
        %v1821 = vunpack.c.0.s8 %v1820
        %v1822 = vlaneseq
        %v1823 = vshrl.u32 %v1822, 7
        %v1824 = vsub.s32 %v1821, %v1823
        %v1825 = vrot.slane %v1818, %v1824
        %v1826 = vcombine.low %v1798, %v1805
        %v1828 = vunpack.c.l.s4 1983009808
        %v1829 = vunpack.c.0.s8 %v1828
        %v1830 = vlaneseq
        %v1831 = vshrl.u32 %v1830, 7
        %v1832 = vsub.s32 %v1829, %v1831
        %v1833 = vrot.slane %v1826, %v1832
        %v1834 = vcombine.low %v1808, %v1809
        %v1836 = vunpack.c.l.s4 1983009808
        %v1837 = vunpack.c.0.s8 %v1836
        %v1838 = vlaneseq
        %v1839 = vshrl.u32 %v1838, 7
        %v1840 = vsub.s32 %v1837, %v1839
        %v1841 = vrot.slane %v1834, %v1840
        %v1842 = vcombine.low %v1817, %v1825
        %v1843 = vcombine.high %v1817, %v1825
        %v1845 = vunpack.c.l.s4 1934713408
        %v1846 = vunpack.c.0.s8 %v1845
        %v1847 = vlaneseq
        %v1848 = vshrl.u32 %v1847, 7
        %v1849 = vsub.s32 %v1846, %v1848
        %v1850 = vrot.slane %v1842, %v1849
        %v1852 = vunpack.c.l.s4 1934713408
        %v1853 = vunpack.c.0.s8 %v1852
        %v1854 = vlaneseq
        %v1855 = vshrl.u32 %v1854, 7
        %v1856 = vsub.s32 %v1853, %v1855
        %v1857 = vrot.slane %v1843, %v1856
        %v1858 = vcombine.low %v1833, %v1841
        %v1859 = vcombine.high %v1833, %v1841
        %v1861 = vunpack.c.l.s4 1934713408
        %v1862 = vunpack.c.0.s8 %v1861
        %v1863 = vlaneseq
        %v1864 = vshrl.u32 %v1863, 7
        %v1865 = vsub.s32 %v1862, %v1864
        %v1866 = vrot.slane %v1858, %v1865
        %v1868 = vunpack.c.l.s4 1934713408
        %v1869 = vunpack.c.0.s8 %v1868
        %v1870 = vlaneseq
        %v1871 = vshrl.u32 %v1870, 7
        %v1872 = vsub.s32 %v1869, %v1871
        %v1873 = vrot.slane %v1859, %v1872
        %v1874 = vcombine.low %v1850, %v1866
        %v1875 = vcombine.high %v1850, %v1866
        %v1876 = vcombine.low %v1857, %v1873
        %v1877 = vcombine.high %v1857, %v1873
        %vm1878 = vcmask 64512
        %v1880 = vsel %vm1878, %v1582, 0
        %v1883 = vsel %vm1878, %v1728, 0
        %1885 = vmatprep.subr.mxu0 0.0
        %1886 = vmatpush1.xpose.msra.mxu0 0.0
        %1887 = vmatprep.subr.mxu0 0.0
        %1888 = vmatpush1.xpose.msra.mxu0 0.0
        %1889 = vmatprep.subr.mxu0 0.0
        %1890 = vmatpush1.xpose.msra.mxu0 0.0
        %1891 = vmatprep.subr.mxu0 0.0
        %1892 = vmatpush1.xpose.msra.mxu0 0.0
        %1893 = vmatprep.subr.mxu0 0.0
        %1894 = vmatpush1.xpose.msra.mxu0 0.0
        %1895 = vmatprep.subr.mxu0 0.0
        %1896 = vmatpush1.xpose.msra.mxu0 0.0
        %1897 = vmatprep.subr.mxu0 0.0
        %1898 = vmatpush1.xpose.msra.mxu0 0.0
        %1899 = vmatprep.subr.mxu0 0.0
        %1900 = vmatpush1.xpose.msra.mxu0 0.0
        %1901 = vmatprep.subr.mxu0 0.0
        %1902 = vmatpush1.xpose.msra.mxu0 0.0
        %1903 = vmatprep.subr.mxu0 0.0
        %1904 = vmatpush1.xpose.msra.mxu0 0.0
        %1905 = vmatprep.subr.mxu0 0.0
        %1906 = vmatpush1.xpose.msra.mxu0 0.0
        %1907 = vmatprep.subr.mxu0 0.0
        %1908 = vmatpush1.xpose.msra.mxu0 0.0
        %1909 = vmatprep.subr.mxu0 0.0
        %1910 = vmatpush1.xpose.msra.mxu0 0.0
        %1911 = vmatprep.subr.mxu0 0.0
        %1912 = vmatpush1.xpose.msra.mxu0 0.0
        %1913 = vmatprep.subr.mxu0 0.0
        %1914 = vmatpush1.xpose.msra.mxu0 0.0
        %1915 = vmatprep.subr.mxu0 0.0
        %1916 = vmatpush1.xpose.msra.mxu0 %v1883
        %1917 = vmatprep.subr.mxu0 0.0
        %1918 = vmatpush2.xpose.msra.mxu0 0.0
        %1919 = vmatprep.subr.mxu0 0.0
        %1920 = vmatpush2.xpose.msra.mxu0 0.0
        %1921 = vmatprep.subr.mxu0 0.0
        %1922 = vmatpush2.xpose.msra.mxu0 0.0
        %1923 = vmatprep.subr.mxu0 0.0
        %1924 = vmatpush2.xpose.msra.mxu0 0.0
        %1925 = vmatprep.subr.mxu0 0.0
        %1926 = vmatpush2.xpose.msra.mxu0 0.0
        %1927 = vmatprep.subr.mxu0 0.0
        %1928 = vmatpush2.xpose.msra.mxu0 0.0
        %1929 = vmatprep.subr.mxu0 0.0
        %1930 = vmatpush2.xpose.msra.mxu0 0.0
        %1931 = vmatprep.subr.mxu0 0.0
        %1932 = vmatpush2.xpose.msra.mxu0 0.0
        %1933 = vmatprep.subr.mxu0 0.0
        %1934 = vmatpush2.xpose.msra.mxu0 0.0
        %1935 = vmatprep.subr.mxu0 0.0
        %1936 = vmatpush2.xpose.msra.mxu0 0.0
        %1937 = vmatprep.subr.mxu0 0.0
        %1938 = vmatpush2.xpose.msra.mxu0 0.0
        %1939 = vmatprep.subr.mxu0 0.0
        %1940 = vmatpush2.xpose.msra.mxu0 0.0
        %1941 = vmatprep.subr.mxu0 0.0
        %1942 = vmatpush2.xpose.msra.mxu0 0.0
        %1943 = vmatprep.subr.mxu0 0.0
        %1944 = vmatpush2.xpose.msra.mxu0 0.0
        %1945 = vmatprep.subr.mxu0 0.0
        %1946 = vmatpush2.xpose.msra.mxu0 0.0
        %1947 = vmatprep.subr.mxu0 0.0
        %1948 = vmatpush2.xpose.msra.mxu0 0.0
        %1949 = vmatprep.mubr.f32.mxu0 0.0
        %1950 = vmatmul.mubr.f32.gmra.mxu0 %v1880
        %v1951 = vpop.f32.mrf.mxu0
        %v1952 = vadd.f32 0.0, %v1951
        %v1953 = vpop.f32.mrf.mxu0
        %1954 = vdwg.mxu0
        %v1956 = vsel %vm1878, %v1583, 0
        %v1959 = vsel %vm1878, %v1729, 0
        %1961 = vmatprep.subr.mxu0 0.0
        %1962 = vmatpush1.xpose.msra.mxu0 0.0
        %1963 = vmatprep.subr.mxu0 0.0
        %1964 = vmatpush1.xpose.msra.mxu0 0.0
        %1965 = vmatprep.subr.mxu0 0.0
        %1966 = vmatpush1.xpose.msra.mxu0 0.0
        %1967 = vmatprep.subr.mxu0 0.0
        %1968 = vmatpush1.xpose.msra.mxu0 0.0
        %1969 = vmatprep.subr.mxu0 0.0
        %1970 = vmatpush1.xpose.msra.mxu0 0.0
        %1971 = vmatprep.subr.mxu0 0.0
        %1972 = vmatpush1.xpose.msra.mxu0 0.0
        %1973 = vmatprep.subr.mxu0 0.0
        %1974 = vmatpush1.xpose.msra.mxu0 0.0
        %1975 = vmatprep.subr.mxu0 0.0
        %1976 = vmatpush1.xpose.msra.mxu0 0.0
        %1977 = vmatprep.subr.mxu0 0.0
        %1978 = vmatpush1.xpose.msra.mxu0 0.0
        %1979 = vmatprep.subr.mxu0 0.0
        %1980 = vmatpush1.xpose.msra.mxu0 0.0
        %1981 = vmatprep.subr.mxu0 0.0
        %1982 = vmatpush1.xpose.msra.mxu0 0.0
        %1983 = vmatprep.subr.mxu0 0.0
        %1984 = vmatpush1.xpose.msra.mxu0 0.0
        %1985 = vmatprep.subr.mxu0 0.0
        %1986 = vmatpush1.xpose.msra.mxu0 0.0
        %1987 = vmatprep.subr.mxu0 0.0
        %1988 = vmatpush1.xpose.msra.mxu0 0.0
        %1989 = vmatprep.subr.mxu0 0.0
        %1990 = vmatpush1.xpose.msra.mxu0 0.0
        %1991 = vmatprep.subr.mxu0 0.0
        %1992 = vmatpush1.xpose.msra.mxu0 %v1959
        %1993 = vmatprep.subr.mxu0 0.0
        %1994 = vmatpush2.xpose.msra.mxu0 0.0
        %1995 = vmatprep.subr.mxu0 0.0
        %1996 = vmatpush2.xpose.msra.mxu0 0.0
        %1997 = vmatprep.subr.mxu0 0.0
        %1998 = vmatpush2.xpose.msra.mxu0 0.0
        %1999 = vmatprep.subr.mxu0 0.0
        %2000 = vmatpush2.xpose.msra.mxu0 0.0
        %2001 = vmatprep.subr.mxu0 0.0
        %2002 = vmatpush2.xpose.msra.mxu0 0.0
        %2003 = vmatprep.subr.mxu0 0.0
        %2004 = vmatpush2.xpose.msra.mxu0 0.0
        %2005 = vmatprep.subr.mxu0 0.0
        %2006 = vmatpush2.xpose.msra.mxu0 0.0
        %2007 = vmatprep.subr.mxu0 0.0
        %2008 = vmatpush2.xpose.msra.mxu0 0.0
        %2009 = vmatprep.subr.mxu0 0.0
        %2010 = vmatpush2.xpose.msra.mxu0 0.0
        %2011 = vmatprep.subr.mxu0 0.0
        %2012 = vmatpush2.xpose.msra.mxu0 0.0
        %2013 = vmatprep.subr.mxu0 0.0
        %2014 = vmatpush2.xpose.msra.mxu0 0.0
        %2015 = vmatprep.subr.mxu0 0.0
        %2016 = vmatpush2.xpose.msra.mxu0 0.0
        %2017 = vmatprep.subr.mxu0 0.0
        %2018 = vmatpush2.xpose.msra.mxu0 0.0
        %2019 = vmatprep.subr.mxu0 0.0
        %2020 = vmatpush2.xpose.msra.mxu0 0.0
        %2021 = vmatprep.subr.mxu0 0.0
        %2022 = vmatpush2.xpose.msra.mxu0 0.0
        %2023 = vmatprep.subr.mxu0 0.0
        %2024 = vmatpush2.xpose.msra.mxu0 0.0
        %2025 = vmatprep.mubr.f32.mxu0 0.0
        %2026 = vmatmul.mubr.f32.gmra.mxu0 %v1956
        %v2027 = vpop.f32.mrf.mxu0
        %v2028 = vadd.f32 0.0, %v2027
        %v2029 = vpop.f32.mrf.mxu0
        %2030 = vdwg.mxu0
        %v2032 = vsel %vm1878, %v1584, 0
        %v2035 = vsel %vm1878, %v1730, 0
        %2037 = vmatprep.subr.mxu0 0.0
        %2038 = vmatpush1.xpose.msra.mxu0 0.0
        %2039 = vmatprep.subr.mxu0 0.0
        %2040 = vmatpush1.xpose.msra.mxu0 0.0
        %2041 = vmatprep.subr.mxu0 0.0
        %2042 = vmatpush1.xpose.msra.mxu0 0.0
        %2043 = vmatprep.subr.mxu0 0.0
        %2044 = vmatpush1.xpose.msra.mxu0 0.0
        %2045 = vmatprep.subr.mxu0 0.0
        %2046 = vmatpush1.xpose.msra.mxu0 0.0
        %2047 = vmatprep.subr.mxu0 0.0
        %2048 = vmatpush1.xpose.msra.mxu0 0.0
        %2049 = vmatprep.subr.mxu0 0.0
        %2050 = vmatpush1.xpose.msra.mxu0 0.0
        %2051 = vmatprep.subr.mxu0 0.0
        %2052 = vmatpush1.xpose.msra.mxu0 0.0
        %2053 = vmatprep.subr.mxu0 0.0
        %2054 = vmatpush1.xpose.msra.mxu0 0.0
        %2055 = vmatprep.subr.mxu0 0.0
        %2056 = vmatpush1.xpose.msra.mxu0 0.0
        %2057 = vmatprep.subr.mxu0 0.0
        %2058 = vmatpush1.xpose.msra.mxu0 0.0
        %2059 = vmatprep.subr.mxu0 0.0
        %2060 = vmatpush1.xpose.msra.mxu0 0.0
        %2061 = vmatprep.subr.mxu0 0.0
        %2062 = vmatpush1.xpose.msra.mxu0 0.0
        %2063 = vmatprep.subr.mxu0 0.0
        %2064 = vmatpush1.xpose.msra.mxu0 0.0
        %2065 = vmatprep.subr.mxu0 0.0
        %2066 = vmatpush1.xpose.msra.mxu0 0.0
        %2067 = vmatprep.subr.mxu0 0.0
        %2068 = vmatpush1.xpose.msra.mxu0 %v2035
        %2069 = vmatprep.subr.mxu0 0.0
        %2070 = vmatpush2.xpose.msra.mxu0 0.0
        %2071 = vmatprep.subr.mxu0 0.0
        %2072 = vmatpush2.xpose.msra.mxu0 0.0
        %2073 = vmatprep.subr.mxu0 0.0
        %2074 = vmatpush2.xpose.msra.mxu0 0.0
        %2075 = vmatprep.subr.mxu0 0.0
        %2076 = vmatpush2.xpose.msra.mxu0 0.0
        %2077 = vmatprep.subr.mxu0 0.0
        %2078 = vmatpush2.xpose.msra.mxu0 0.0
        %2079 = vmatprep.subr.mxu0 0.0
        %2080 = vmatpush2.xpose.msra.mxu0 0.0
        %2081 = vmatprep.subr.mxu0 0.0
        %2082 = vmatpush2.xpose.msra.mxu0 0.0
        %2083 = vmatprep.subr.mxu0 0.0
        %2084 = vmatpush2.xpose.msra.mxu0 0.0
        %2085 = vmatprep.subr.mxu0 0.0
        %2086 = vmatpush2.xpose.msra.mxu0 0.0
        %2087 = vmatprep.subr.mxu0 0.0
        %2088 = vmatpush2.xpose.msra.mxu0 0.0
        %2089 = vmatprep.subr.mxu0 0.0
        %2090 = vmatpush2.xpose.msra.mxu0 0.0
        %2091 = vmatprep.subr.mxu0 0.0
        %2092 = vmatpush2.xpose.msra.mxu0 0.0
        %2093 = vmatprep.subr.mxu0 0.0
        %2094 = vmatpush2.xpose.msra.mxu0 0.0
        %2095 = vmatprep.subr.mxu0 0.0
        %2096 = vmatpush2.xpose.msra.mxu0 0.0
        %2097 = vmatprep.subr.mxu0 0.0
        %2098 = vmatpush2.xpose.msra.mxu0 0.0
        %2099 = vmatprep.subr.mxu0 0.0
        %2100 = vmatpush2.xpose.msra.mxu0 0.0
        %2101 = vmatprep.mubr.f32.mxu0 0.0
        %2102 = vmatmul.mubr.f32.gmra.mxu0 %v2032
        %v2103 = vpop.f32.mrf.mxu0
        %v2104 = vadd.f32 0.0, %v2103
        %v2105 = vpop.f32.mrf.mxu0
        %2106 = vdwg.mxu0
        %v2108 = vsel %vm1878, %v1585, 0
        %v2111 = vsel %vm1878, %v1731, 0
        %2113 = vmatprep.subr.mxu0 0.0
        %2114 = vmatpush1.xpose.msra.mxu0 0.0
        %2115 = vmatprep.subr.mxu0 0.0
        %2116 = vmatpush1.xpose.msra.mxu0 0.0
        %2117 = vmatprep.subr.mxu0 0.0
        %2118 = vmatpush1.xpose.msra.mxu0 0.0
        %2119 = vmatprep.subr.mxu0 0.0
        %2120 = vmatpush1.xpose.msra.mxu0 0.0
        %2121 = vmatprep.subr.mxu0 0.0
        %2122 = vmatpush1.xpose.msra.mxu0 0.0
        %2123 = vmatprep.subr.mxu0 0.0
        %2124 = vmatpush1.xpose.msra.mxu0 0.0
        %2125 = vmatprep.subr.mxu0 0.0
        %2126 = vmatpush1.xpose.msra.mxu0 0.0
        %2127 = vmatprep.subr.mxu0 0.0
        %2128 = vmatpush1.xpose.msra.mxu0 0.0
        %2129 = vmatprep.subr.mxu0 0.0
        %2130 = vmatpush1.xpose.msra.mxu0 0.0
        %2131 = vmatprep.subr.mxu0 0.0
        %2132 = vmatpush1.xpose.msra.mxu0 0.0
        %2133 = vmatprep.subr.mxu0 0.0
        %2134 = vmatpush1.xpose.msra.mxu0 0.0
        %2135 = vmatprep.subr.mxu0 0.0
        %2136 = vmatpush1.xpose.msra.mxu0 0.0
        %2137 = vmatprep.subr.mxu0 0.0
        %2138 = vmatpush1.xpose.msra.mxu0 0.0
        %2139 = vmatprep.subr.mxu0 0.0
        %2140 = vmatpush1.xpose.msra.mxu0 0.0
        %2141 = vmatprep.subr.mxu0 0.0
        %2142 = vmatpush1.xpose.msra.mxu0 0.0
        %2143 = vmatprep.subr.mxu0 0.0
        %2144 = vmatpush1.xpose.msra.mxu0 %v2111
        %2145 = vmatprep.subr.mxu0 0.0
        %2146 = vmatpush2.xpose.msra.mxu0 0.0
        %2147 = vmatprep.subr.mxu0 0.0
        %2148 = vmatpush2.xpose.msra.mxu0 0.0
        %2149 = vmatprep.subr.mxu0 0.0
        %2150 = vmatpush2.xpose.msra.mxu0 0.0
        %2151 = vmatprep.subr.mxu0 0.0
        %2152 = vmatpush2.xpose.msra.mxu0 0.0
        %2153 = vmatprep.subr.mxu0 0.0
        %2154 = vmatpush2.xpose.msra.mxu0 0.0
        %2155 = vmatprep.subr.mxu0 0.0
        %2156 = vmatpush2.xpose.msra.mxu0 0.0
        %2157 = vmatprep.subr.mxu0 0.0
        %2158 = vmatpush2.xpose.msra.mxu0 0.0
        %2159 = vmatprep.subr.mxu0 0.0
        %2160 = vmatpush2.xpose.msra.mxu0 0.0
        %2161 = vmatprep.subr.mxu0 0.0
        %2162 = vmatpush2.xpose.msra.mxu0 0.0
        %2163 = vmatprep.subr.mxu0 0.0
        %2164 = vmatpush2.xpose.msra.mxu0 0.0
        %2165 = vmatprep.subr.mxu0 0.0
        %2166 = vmatpush2.xpose.msra.mxu0 0.0
        %2167 = vmatprep.subr.mxu0 0.0
        %2168 = vmatpush2.xpose.msra.mxu0 0.0
        %2169 = vmatprep.subr.mxu0 0.0
        %2170 = vmatpush2.xpose.msra.mxu0 0.0
        %2171 = vmatprep.subr.mxu0 0.0
        %2172 = vmatpush2.xpose.msra.mxu0 0.0
        %2173 = vmatprep.subr.mxu0 0.0
        %2174 = vmatpush2.xpose.msra.mxu0 0.0
        %2175 = vmatprep.subr.mxu0 0.0
        %2176 = vmatpush2.xpose.msra.mxu0 0.0
        %2177 = vmatprep.mubr.f32.mxu0 0.0
        %2178 = vmatmul.mubr.f32.gmra.mxu0 %v2108
        %v2179 = vpop.f32.mrf.mxu0
        %v2180 = vadd.f32 0.0, %v2179
        %v2181 = vpop.f32.mrf.mxu0
        %2182 = vdwg.mxu0
        %v2183 = vsel %vm1190, 16843009, 0
        %v2184 = vunpack.c.0.s8 %v2183
        %vm2185 = vcmp.ne.s32.totalorder %v2184, 0
        %v2186 = vsel %vm2185, 1, 0
        %vm2187 = vcmp.eq.s32.totalorder %v2186, 1
        %v2188 = vsel %vm2187, %v1952, -1e+30
        %v2189 = vsel %vm2187, %v2028, -1e+30
        %v2190 = vsel %vm2187, %v2104, -1e+30
        %v2191 = vsel %vm2187, %v2180, -1e+30
        %v2192 = vsel %vm1878, %v2188, -inf
        %2193 = vmax.xlane.f32.xlu0 %v2192
        %v2194 = vpop.xlane.xlu0 %2193
        %v2195 = vsel %vm1878, %v2189, -inf
        %2196 = vmax.xlane.f32.xlu0 %v2195
        %v2197 = vpop.xlane.xlu0 %2196
        %v2198 = vsel %vm1878, %v2190, -inf
        %2199 = vmax.xlane.f32.xlu0 %v2198
        %v2200 = vpop.xlane.xlu0 %2199
        %v2201 = vsel %vm1878, %v2191, -inf
        %2202 = vmax.xlane.f32.xlu0 %v2201
        %v2203 = vpop.xlane.xlu0 %2202
        %v2204 = vsub.f32 %v2188, %v2194
        %v2205 = vsub.f32 %v2189, %v2197
        %v2206 = vsub.f32 %v2190, %v2200
        %v2207 = vsub.f32 %v2191, %v2203
        %v2208 = vmul.f32 %v2204, 1.442695
        %v2209 = vpow.pop %v2208
        %v2210 = vmul.f32 %v2205, 1.442695
        %v2211 = vpow.pop %v2210
        %v2212 = vmul.f32 %v2206, 1.442695
        %v2213 = vpow.pop %v2212
        %v2214 = vmul.f32 %v2207, 1.442695
        %v2215 = vpow.pop %v2214
        %v2216 = vsel %vm1878, %v2209, 0.0
        %2217 = vadd.xlane.f32.xlu0 %v2216
        %v2218 = vpop.xlane.xlu0 %2217
        %v2219 = vsel %vm1878, %v2211, 0.0
        %2220 = vadd.xlane.f32.xlu0 %v2219
        %v2221 = vpop.xlane.xlu0 %2220
        %v2222 = vsel %vm1878, %v2213, 0.0
        %2223 = vadd.xlane.f32.xlu0 %v2222
        %v2224 = vpop.xlane.xlu0 %2223
        %v2225 = vsel %vm1878, %v2215, 0.0
        %2226 = vadd.xlane.f32.xlu0 %v2225
        %v2227 = vpop.xlane.xlu0 %2226
        %v2228 = vrcp.pop %v2218
        %v2229 = vmul.f32 %v2209, %v2228
        %v2230 = vrcp.pop %v2221
        %v2231 = vmul.f32 %v2211, %v2230
        %v2232 = vrcp.pop %v2224
        %v2233 = vmul.f32 %v2213, %v2232
        %v2234 = vrcp.pop %v2227
        %v2235 = vmul.f32 %v2215, %v2234
        %v2237 = vsel %vm1878, %v2229, 0
        %2239 = vmatprep.subr.mxu0 0.0
        %2240 = vmatpush1.msra.mxu0 0.0
        %2241 = vmatprep.subr.mxu0 0.0
        %2242 = vmatpush1.msra.mxu0 0.0
        %2243 = vmatprep.subr.mxu0 0.0
        %2244 = vmatpush1.msra.mxu0 0.0
        %2245 = vmatprep.subr.mxu0 0.0
        %2246 = vmatpush1.msra.mxu0 0.0
        %2247 = vmatprep.subr.mxu0 0.0
        %2248 = vmatpush1.msra.mxu0 0.0
        %2249 = vmatprep.subr.mxu0 0.0
        %2250 = vmatpush1.msra.mxu0 0.0
        %2251 = vmatprep.subr.mxu0 0.0
        %2252 = vmatpush1.msra.mxu0 0.0
        %2253 = vmatprep.subr.mxu0 0.0
        %2254 = vmatpush1.msra.mxu0 0.0
        %2255 = vmatprep.subr.mxu0 0.0
        %2256 = vmatpush1.msra.mxu0 0.0
        %2257 = vmatprep.subr.mxu0 0.0
        %2258 = vmatpush1.msra.mxu0 0.0
        %2259 = vmatprep.subr.mxu0 0.0
        %2260 = vmatpush1.msra.mxu0 0.0
        %2261 = vmatprep.subr.mxu0 0.0
        %2262 = vmatpush1.msra.mxu0 0.0
        %2263 = vmatprep.subr.mxu0 0.0
        %2264 = vmatpush1.msra.mxu0 0.0
        %2265 = vmatprep.subr.mxu0 0.0
        %2266 = vmatpush1.msra.mxu0 0.0
        %2267 = vmatprep.subr.mxu0 0.0
        %2268 = vmatpush1.msra.mxu0 0.0
        %2269 = vmatprep.subr.mxu0 0.0
        %2270 = vmatpush1.msra.mxu0 %v1874
        %2271 = vmatprep.subr.mxu0 0.0
        %2272 = vmatpush2.msra.mxu0 0.0
        %2273 = vmatprep.subr.mxu0 0.0
        %2274 = vmatpush2.msra.mxu0 0.0
        %2275 = vmatprep.subr.mxu0 0.0
        %2276 = vmatpush2.msra.mxu0 0.0
        %2277 = vmatprep.subr.mxu0 0.0
        %2278 = vmatpush2.msra.mxu0 0.0
        %2279 = vmatprep.subr.mxu0 0.0
        %2280 = vmatpush2.msra.mxu0 0.0
        %2281 = vmatprep.subr.mxu0 0.0
        %2282 = vmatpush2.msra.mxu0 0.0
        %2283 = vmatprep.subr.mxu0 0.0
        %2284 = vmatpush2.msra.mxu0 0.0
        %2285 = vmatprep.subr.mxu0 0.0
        %2286 = vmatpush2.msra.mxu0 0.0
        %2287 = vmatprep.subr.mxu0 0.0
        %2288 = vmatpush2.msra.mxu0 0.0
        %2289 = vmatprep.subr.mxu0 0.0
        %2290 = vmatpush2.msra.mxu0 0.0
        %2291 = vmatprep.subr.mxu0 0.0
        %2292 = vmatpush2.msra.mxu0 0.0
        %2293 = vmatprep.subr.mxu0 0.0
        %2294 = vmatpush2.msra.mxu0 0.0
        %2295 = vmatprep.subr.mxu0 0.0
        %2296 = vmatpush2.msra.mxu0 0.0
        %2297 = vmatprep.subr.mxu0 0.0
        %2298 = vmatpush2.msra.mxu0 0.0
        %2299 = vmatprep.subr.mxu0 0.0
        %2300 = vmatpush2.msra.mxu0 0.0
        %2301 = vmatprep.subr.mxu0 0.0
        %2302 = vmatpush2.msra.mxu0 0.0
        %2303 = vmatprep.mubr.f32.mxu0 0.0
        %2304 = vmatmul.mubr.f32.gmra.mxu0 %v2237
        %v2305 = vpop.f32.mrf.mxu0
        %v2306 = vadd.f32 0.0, %v2305
        %v2307 = vpop.f32.mrf.mxu0
        %2308 = vdwg.mxu0
        %v2310 = vsel %vm1878, %v2231, 0
        %2312 = vmatprep.subr.mxu0 0.0
        %2313 = vmatpush1.msra.mxu0 0.0
        %2314 = vmatprep.subr.mxu0 0.0
        %2315 = vmatpush1.msra.mxu0 0.0
        %2316 = vmatprep.subr.mxu0 0.0
        %2317 = vmatpush1.msra.mxu0 0.0
        %2318 = vmatprep.subr.mxu0 0.0
        %2319 = vmatpush1.msra.mxu0 0.0
        %2320 = vmatprep.subr.mxu0 0.0
        %2321 = vmatpush1.msra.mxu0 0.0
        %2322 = vmatprep.subr.mxu0 0.0
        %2323 = vmatpush1.msra.mxu0 0.0
        %2324 = vmatprep.subr.mxu0 0.0
        %2325 = vmatpush1.msra.mxu0 0.0
        %2326 = vmatprep.subr.mxu0 0.0
        %2327 = vmatpush1.msra.mxu0 0.0
        %2328 = vmatprep.subr.mxu0 0.0
        %2329 = vmatpush1.msra.mxu0 0.0
        %2330 = vmatprep.subr.mxu0 0.0
        %2331 = vmatpush1.msra.mxu0 0.0
        %2332 = vmatprep.subr.mxu0 0.0
        %2333 = vmatpush1.msra.mxu0 0.0
        %2334 = vmatprep.subr.mxu0 0.0
        %2335 = vmatpush1.msra.mxu0 0.0
        %2336 = vmatprep.subr.mxu0 0.0
        %2337 = vmatpush1.msra.mxu0 0.0
        %2338 = vmatprep.subr.mxu0 0.0
        %2339 = vmatpush1.msra.mxu0 0.0
        %2340 = vmatprep.subr.mxu0 0.0
        %2341 = vmatpush1.msra.mxu0 0.0
        %2342 = vmatprep.subr.mxu0 0.0
        %2343 = vmatpush1.msra.mxu0 %v1875
        %2344 = vmatprep.subr.mxu0 0.0
        %2345 = vmatpush2.msra.mxu0 0.0
        %2346 = vmatprep.subr.mxu0 0.0
        %2347 = vmatpush2.msra.mxu0 0.0
        %2348 = vmatprep.subr.mxu0 0.0
        %2349 = vmatpush2.msra.mxu0 0.0
        %2350 = vmatprep.subr.mxu0 0.0
        %2351 = vmatpush2.msra.mxu0 0.0
        %2352 = vmatprep.subr.mxu0 0.0
        %2353 = vmatpush2.msra.mxu0 0.0
        %2354 = vmatprep.subr.mxu0 0.0
        %2355 = vmatpush2.msra.mxu0 0.0
        %2356 = vmatprep.subr.mxu0 0.0
        %2357 = vmatpush2.msra.mxu0 0.0
        %2358 = vmatprep.subr.mxu0 0.0
        %2359 = vmatpush2.msra.mxu0 0.0
        %2360 = vmatprep.subr.mxu0 0.0
        %2361 = vmatpush2.msra.mxu0 0.0
        %2362 = vmatprep.subr.mxu0 0.0
        %2363 = vmatpush2.msra.mxu0 0.0
        %2364 = vmatprep.subr.mxu0 0.0
        %2365 = vmatpush2.msra.mxu0 0.0
        %2366 = vmatprep.subr.mxu0 0.0
        %2367 = vmatpush2.msra.mxu0 0.0
        %2368 = vmatprep.subr.mxu0 0.0
        %2369 = vmatpush2.msra.mxu0 0.0
        %2370 = vmatprep.subr.mxu0 0.0
        %2371 = vmatpush2.msra.mxu0 0.0
        %2372 = vmatprep.subr.mxu0 0.0
        %2373 = vmatpush2.msra.mxu0 0.0
        %2374 = vmatprep.subr.mxu0 0.0
        %2375 = vmatpush2.msra.mxu0 0.0
        %2376 = vmatprep.mubr.f32.mxu0 0.0
        %2377 = vmatmul.mubr.f32.gmra.mxu0 %v2310
        %v2378 = vpop.f32.mrf.mxu0
        %v2379 = vadd.f32 0.0, %v2378
        %v2380 = vpop.f32.mrf.mxu0
        %2381 = vdwg.mxu0
        %v2383 = vsel %vm1878, %v2233, 0
        %2385 = vmatprep.subr.mxu0 0.0
        %2386 = vmatpush1.msra.mxu0 0.0
        %2387 = vmatprep.subr.mxu0 0.0
        %2388 = vmatpush1.msra.mxu0 0.0
        %2389 = vmatprep.subr.mxu0 0.0
        %2390 = vmatpush1.msra.mxu0 0.0
        %2391 = vmatprep.subr.mxu0 0.0
        %2392 = vmatpush1.msra.mxu0 0.0
        %2393 = vmatprep.subr.mxu0 0.0
        %2394 = vmatpush1.msra.mxu0 0.0
        %2395 = vmatprep.subr.mxu0 0.0
        %2396 = vmatpush1.msra.mxu0 0.0
        %2397 = vmatprep.subr.mxu0 0.0
        %2398 = vmatpush1.msra.mxu0 0.0
        %2399 = vmatprep.subr.mxu0 0.0
        %2400 = vmatpush1.msra.mxu0 0.0
        %2401 = vmatprep.subr.mxu0 0.0
        %2402 = vmatpush1.msra.mxu0 0.0
        %2403 = vmatprep.subr.mxu0 0.0
        %2404 = vmatpush1.msra.mxu0 0.0
        %2405 = vmatprep.subr.mxu0 0.0
        %2406 = vmatpush1.msra.mxu0 0.0
        %2407 = vmatprep.subr.mxu0 0.0
        %2408 = vmatpush1.msra.mxu0 0.0
        %2409 = vmatprep.subr.mxu0 0.0
        %2410 = vmatpush1.msra.mxu0 0.0
        %2411 = vmatprep.subr.mxu0 0.0
        %2412 = vmatpush1.msra.mxu0 0.0
        %2413 = vmatprep.subr.mxu0 0.0
        %2414 = vmatpush1.msra.mxu0 0.0
        %2415 = vmatprep.subr.mxu0 0.0
        %2416 = vmatpush1.msra.mxu0 %v1876
        %2417 = vmatprep.subr.mxu0 0.0
        %2418 = vmatpush2.msra.mxu0 0.0
        %2419 = vmatprep.subr.mxu0 0.0
        %2420 = vmatpush2.msra.mxu0 0.0
        %2421 = vmatprep.subr.mxu0 0.0
        %2422 = vmatpush2.msra.mxu0 0.0
        %2423 = vmatprep.subr.mxu0 0.0
        %2424 = vmatpush2.msra.mxu0 0.0
        %2425 = vmatprep.subr.mxu0 0.0
        %2426 = vmatpush2.msra.mxu0 0.0
        %2427 = vmatprep.subr.mxu0 0.0
        %2428 = vmatpush2.msra.mxu0 0.0
        %2429 = vmatprep.subr.mxu0 0.0
        %2430 = vmatpush2.msra.mxu0 0.0
        %2431 = vmatprep.subr.mxu0 0.0
        %2432 = vmatpush2.msra.mxu0 0.0
        %2433 = vmatprep.subr.mxu0 0.0
        %2434 = vmatpush2.msra.mxu0 0.0
        %2435 = vmatprep.subr.mxu0 0.0
        %2436 = vmatpush2.msra.mxu0 0.0
        %2437 = vmatprep.subr.mxu0 0.0
        %2438 = vmatpush2.msra.mxu0 0.0
        %2439 = vmatprep.subr.mxu0 0.0
        %2440 = vmatpush2.msra.mxu0 0.0
        %2441 = vmatprep.subr.mxu0 0.0
        %2442 = vmatpush2.msra.mxu0 0.0
        %2443 = vmatprep.subr.mxu0 0.0
        %2444 = vmatpush2.msra.mxu0 0.0
        %2445 = vmatprep.subr.mxu0 0.0
        %2446 = vmatpush2.msra.mxu0 0.0
        %2447 = vmatprep.subr.mxu0 0.0
        %2448 = vmatpush2.msra.mxu0 0.0
        %2449 = vmatprep.mubr.f32.mxu0 0.0
        %2450 = vmatmul.mubr.f32.gmra.mxu0 %v2383
        %v2451 = vpop.f32.mrf.mxu0
        %v2452 = vadd.f32 0.0, %v2451
        %v2453 = vpop.f32.mrf.mxu0
        %2454 = vdwg.mxu0
        %v2456 = vsel %vm1878, %v2235, 0
        %2458 = vmatprep.subr.mxu0 0.0
        %2459 = vmatpush1.msra.mxu0 0.0
        %2460 = vmatprep.subr.mxu0 0.0
        %2461 = vmatpush1.msra.mxu0 0.0
        %2462 = vmatprep.subr.mxu0 0.0
        %2463 = vmatpush1.msra.mxu0 0.0
        %2464 = vmatprep.subr.mxu0 0.0
        %2465 = vmatpush1.msra.mxu0 0.0
        %2466 = vmatprep.subr.mxu0 0.0
        %2467 = vmatpush1.msra.mxu0 0.0
        %2468 = vmatprep.subr.mxu0 0.0
        %2469 = vmatpush1.msra.mxu0 0.0
        %2470 = vmatprep.subr.mxu0 0.0
        %2471 = vmatpush1.msra.mxu0 0.0
        %2472 = vmatprep.subr.mxu0 0.0
        %2473 = vmatpush1.msra.mxu0 0.0
        %2474 = vmatprep.subr.mxu0 0.0
        %2475 = vmatpush1.msra.mxu0 0.0
        %2476 = vmatprep.subr.mxu0 0.0
        %2477 = vmatpush1.msra.mxu0 0.0
        %2478 = vmatprep.subr.mxu0 0.0
        %2479 = vmatpush1.msra.mxu0 0.0
        %2480 = vmatprep.subr.mxu0 0.0
        %2481 = vmatpush1.msra.mxu0 0.0
        %2482 = vmatprep.subr.mxu0 0.0
        %2483 = vmatpush1.msra.mxu0 0.0
        %2484 = vmatprep.subr.mxu0 0.0
        %2485 = vmatpush1.msra.mxu0 0.0
        %2486 = vmatprep.subr.mxu0 0.0
        %2487 = vmatpush1.msra.mxu0 0.0
        %2488 = vmatprep.subr.mxu0 0.0
        %2489 = vmatpush1.msra.mxu0 %v1877
        %2490 = vmatprep.subr.mxu0 0.0
        %2491 = vmatpush2.msra.mxu0 0.0
        %2492 = vmatprep.subr.mxu0 0.0
        %2493 = vmatpush2.msra.mxu0 0.0
        %2494 = vmatprep.subr.mxu0 0.0
        %2495 = vmatpush2.msra.mxu0 0.0
        %2496 = vmatprep.subr.mxu0 0.0
        %2497 = vmatpush2.msra.mxu0 0.0
        %2498 = vmatprep.subr.mxu0 0.0
        %2499 = vmatpush2.msra.mxu0 0.0
        %2500 = vmatprep.subr.mxu0 0.0
        %2501 = vmatpush2.msra.mxu0 0.0
        %2502 = vmatprep.subr.mxu0 0.0
        %2503 = vmatpush2.msra.mxu0 0.0
        %2504 = vmatprep.subr.mxu0 0.0
        %2505 = vmatpush2.msra.mxu0 0.0
        %2506 = vmatprep.subr.mxu0 0.0
        %2507 = vmatpush2.msra.mxu0 0.0
        %2508 = vmatprep.subr.mxu0 0.0
        %2509 = vmatpush2.msra.mxu0 0.0
        %2510 = vmatprep.subr.mxu0 0.0
        %2511 = vmatpush2.msra.mxu0 0.0
        %2512 = vmatprep.subr.mxu0 0.0
        %2513 = vmatpush2.msra.mxu0 0.0
        %2514 = vmatprep.subr.mxu0 0.0
        %2515 = vmatpush2.msra.mxu0 0.0
        %2516 = vmatprep.subr.mxu0 0.0
        %2517 = vmatpush2.msra.mxu0 0.0
        %2518 = vmatprep.subr.mxu0 0.0
        %2519 = vmatpush2.msra.mxu0 0.0
        %2520 = vmatprep.subr.mxu0 0.0
        %2521 = vmatpush2.msra.mxu0 0.0
        %2522 = vmatprep.mubr.f32.mxu0 0.0
        %2523 = vmatmul.mubr.f32.gmra.mxu0 %v2456
        %v2524 = vpop.f32.mrf.mxu0
        %v2525 = vadd.f32 0.0, %v2524
        %v2526 = vpop.f32.mrf.mxu0
        %2527 = vdwg.mxu0
        %v2528 = vcombine.low %v2306, %v2452
        %v2529 = vcombine.high %v2306, %v2452
        %v2531 = vunpack.c.l.s4 1983009808
        %v2532 = vunpack.c.0.s8 %v2531
        %v2533 = vlaneseq
        %v2534 = vshrl.u32 %v2533, 7
        %v2535 = vsub.s32 %v2532, %v2534
        %v2536 = vrot.slane %v2528, %v2535
        %v2538 = vunpack.c.l.s4 1983009808
        %v2539 = vunpack.c.0.s8 %v2538
        %v2540 = vlaneseq
        %v2541 = vshrl.u32 %v2540, 7
        %v2542 = vsub.s32 %v2539, %v2541
        %v2543 = vrot.slane %v2529, %v2542
        %v2544 = vcombine.low %v2379, %v2525
        %v2545 = vcombine.high %v2379, %v2525
        %v2547 = vunpack.c.l.s4 1983009808
        %v2548 = vunpack.c.0.s8 %v2547
        %v2549 = vlaneseq
        %v2550 = vshrl.u32 %v2549, 7
        %v2551 = vsub.s32 %v2548, %v2550
        %v2552 = vrot.slane %v2544, %v2551
        %v2554 = vunpack.c.l.s4 1983009808
        %v2555 = vunpack.c.0.s8 %v2554
        %v2556 = vlaneseq
        %v2557 = vshrl.u32 %v2556, 7
        %v2558 = vsub.s32 %v2555, %v2557
        %v2559 = vrot.slane %v2545, %v2558
        %v2560 = vcombine.low %v2536, %v2552
        %v2561 = vcombine.high %v2536, %v2552
        %v2563 = vunpack.c.l.s4 1934713408
        %v2564 = vunpack.c.0.s8 %v2563
        %v2565 = vlaneseq
        %v2566 = vshrl.u32 %v2565, 7
        %v2567 = vsub.s32 %v2564, %v2566
        %v2568 = vrot.slane %v2560, %v2567
        %v2570 = vunpack.c.l.s4 1934713408
        %v2571 = vunpack.c.0.s8 %v2570
        %v2572 = vlaneseq
        %v2573 = vshrl.u32 %v2572, 7
        %v2574 = vsub.s32 %v2571, %v2573
        %v2575 = vrot.slane %v2561, %v2574
        %v2576 = vcombine.low %v2543, %v2559
        %v2577 = vcombine.high %v2543, %v2559
        %v2579 = vunpack.c.l.s4 1934713408
        %v2580 = vunpack.c.0.s8 %v2579
        %v2581 = vlaneseq
        %v2582 = vshrl.u32 %v2581, 7
        %v2583 = vsub.s32 %v2580, %v2582
        %v2584 = vrot.slane %v2576, %v2583
        %v2586 = vunpack.c.l.s4 1934713408
        %v2587 = vunpack.c.0.s8 %v2586
        %v2588 = vlaneseq
        %v2589 = vshrl.u32 %v2588, 7
        %v2590 = vsub.s32 %v2587, %v2589
        %v2591 = vrot.slane %v2577, %v2590
        %v2592 = vcombine.high %v2568, 0.0
        %v2593 = vcombine.high %v2575, 0.0
        %v2594 = vcombine.high %v2584, 0.0
        %v2595 = vcombine.high %v2591, 0.0
        %v2596 = vcombine.low %v2568, %v2575
        %v2598 = vunpack.c.l.s4 1983009808
        %v2599 = vunpack.c.0.s8 %v2598
        %v2600 = vlaneseq
        %v2601 = vshrl.u32 %v2600, 7
        %v2602 = vsub.s32 %v2599, %v2601
        %v2603 = vrot.slane %v2596, %v2602
        %v2604 = vcombine.low %v2592, %v2593
        %v2606 = vunpack.c.l.s4 1983009808
        %v2607 = vunpack.c.0.s8 %v2606
        %v2608 = vlaneseq
        %v2609 = vshrl.u32 %v2608, 7
        %v2610 = vsub.s32 %v2607, %v2609
        %v2611 = vrot.slane %v2604, %v2610
        %v2612 = vcombine.low %v2584, %v2591
        %v2614 = vunpack.c.l.s4 1983009808
        %v2615 = vunpack.c.0.s8 %v2614
        %v2616 = vlaneseq
        %v2617 = vshrl.u32 %v2616, 7
        %v2618 = vsub.s32 %v2615, %v2617
        %v2619 = vrot.slane %v2612, %v2618
        %v2620 = vcombine.low %v2594, %v2595
        %v2622 = vunpack.c.l.s4 1983009808
        %v2623 = vunpack.c.0.s8 %v2622
        %v2624 = vlaneseq
        %v2625 = vshrl.u32 %v2624, 7
        %v2626 = vsub.s32 %v2623, %v2625
        %v2627 = vrot.slane %v2620, %v2626
        %v2628 = vcombine.low %v2603, %v2611
        %v2629 = vcombine.high %v2603, %v2611
        %v2631 = vunpack.c.l.s4 1934713408
        %v2632 = vunpack.c.0.s8 %v2631
        %v2633 = vlaneseq
        %v2634 = vshrl.u32 %v2633, 7
        %v2635 = vsub.s32 %v2632, %v2634
        %v2636 = vrot.slane %v2628, %v2635
        %v2638 = vunpack.c.l.s4 1934713408
        %v2639 = vunpack.c.0.s8 %v2638
        %v2640 = vlaneseq
        %v2641 = vshrl.u32 %v2640, 7
        %v2642 = vsub.s32 %v2639, %v2641
        %v2643 = vrot.slane %v2629, %v2642
        %v2644 = vcombine.low %v2619, %v2627
        %v2645 = vcombine.high %v2619, %v2627
        %v2647 = vunpack.c.l.s4 1934713408
        %v2648 = vunpack.c.0.s8 %v2647
        %v2649 = vlaneseq
        %v2650 = vshrl.u32 %v2649, 7
        %v2651 = vsub.s32 %v2648, %v2650
        %v2652 = vrot.slane %v2644, %v2651
        %v2654 = vunpack.c.l.s4 1934713408
        %v2655 = vunpack.c.0.s8 %v2654
        %v2656 = vlaneseq
        %v2657 = vshrl.u32 %v2656, 7
        %v2658 = vsub.s32 %v2655, %v2657
        %v2659 = vrot.slane %v2645, %v2658
        %v2660 = vcombine.low %v2636, %v2652
        %v2661 = vcombine.high %v2636, %v2652
        %v2662 = vcombine.low %v2643, %v2659
        %v2663 = vcombine.high %v2643, %v2659
        %2665 = vrot.lane.b32.xlu0 %v2661, 8
        %v2666 = vpop.permute.xlu0 %2665
        %2669 = vrot.lane.b32.xlu0 %v2662, 16
        %v2670 = vpop.permute.xlu0 %2669
        %2673 = vrot.lane.b32.xlu0 %v2663, 24
        %v2674 = vpop.permute.xlu0 %2673
        %v2676 = vsel %vm1878, %v2660, %v2666
        %vm2677 = vcmask 130048
        %v2678 = vsel %vm2677, %v2676, %v2670
        %vm2679 = vcmask 195584
        %v2680 = vsel %vm2679, %v2678, %v2674
        %v2681 = vld [vmem:[#allocation8] sm:$0xff]
        %v2682 = vld [vmem:[#allocation8 + $0x8] sm:$0xff]
        %v2683 = vld [vmem:[#allocation8 + $0x10] sm:$0xff]
        %v2684 = vld [vmem:[#allocation8 + $0x18] sm:$0xff]
        %v2685 = vld [vmem:[%s23] sm:$0x1]
        %v2687 = vlaneseq
        %v2688 = vshrl.u32 %v2687, 7
        %v2689 = vsub.s32 0, %v2688
        %v2690 = vrot.slane %v2685, %v2689
        %v2693 = vsel %vm1204, %v2680, 0
        %2695 = vmatprep.subr.mxu0 0.0
        %2696 = vmatpush1.msra.mxu0 0.0
        %2697 = vmatprep.subr.mxu0 0.0
        %2698 = vmatpush1.msra.mxu0 0.0
        %2699 = vmatprep.subr.mxu0 0.0
        %2700 = vmatpush1.msra.mxu0 0.0
        %2701 = vmatprep.subr.mxu0 0.0
        %2702 = vmatpush1.msra.mxu0 0.0
        %2703 = vmatprep.subr.mxu0 0.0
        %2704 = vmatpush1.msra.mxu0 0.0
        %2705 = vmatprep.subr.mxu0 0.0
        %2706 = vmatpush1.msra.mxu0 0.0
        %2707 = vmatprep.subr.mxu0 0.0
        %2708 = vmatpush1.msra.mxu0 0.0
        %2709 = vmatprep.subr.mxu0 0.0
        %2710 = vmatpush1.msra.mxu0 0.0
        %2711 = vmatprep.subr.mxu0 0.0
        %2712 = vmatpush1.msra.mxu0 0.0
        %2713 = vmatprep.subr.mxu0 0.0
        %2714 = vmatpush1.msra.mxu0 0.0
        %2715 = vmatprep.subr.mxu0 0.0
        %2716 = vmatpush1.msra.mxu0 0.0
        %2717 = vmatprep.subr.mxu0 0.0
        %2718 = vmatpush1.msra.mxu0 0.0
        %2719 = vmatprep.subr.mxu0 0.0
        %2720 = vmatpush1.msra.mxu0 %v2684
        %2721 = vmatprep.subr.mxu0 0.0
        %2722 = vmatpush1.msra.mxu0 %v2683
        %2723 = vmatprep.subr.mxu0 0.0
        %2724 = vmatpush1.msra.mxu0 %v2682
        %2725 = vmatprep.subr.mxu0 0.0
        %2726 = vmatpush1.msra.mxu0 %v2681
        %2727 = vmatprep.subr.mxu0 0.0
        %2728 = vmatpush2.msra.mxu0 0.0
        %2729 = vmatprep.subr.mxu0 0.0
        %2730 = vmatpush2.msra.mxu0 0.0
        %2731 = vmatprep.subr.mxu0 0.0
        %2732 = vmatpush2.msra.mxu0 0.0
        %2733 = vmatprep.subr.mxu0 0.0
        %2734 = vmatpush2.msra.mxu0 0.0
        %2735 = vmatprep.subr.mxu0 0.0
        %2736 = vmatpush2.msra.mxu0 0.0
        %2737 = vmatprep.subr.mxu0 0.0
        %2738 = vmatpush2.msra.mxu0 0.0
        %2739 = vmatprep.subr.mxu0 0.0
        %2740 = vmatpush2.msra.mxu0 0.0
        %2741 = vmatprep.subr.mxu0 0.0
        %2742 = vmatpush2.msra.mxu0 0.0
        %2743 = vmatprep.subr.mxu0 0.0
        %2744 = vmatpush2.msra.mxu0 0.0
        %2745 = vmatprep.subr.mxu0 0.0
        %2746 = vmatpush2.msra.mxu0 0.0
        %2747 = vmatprep.subr.mxu0 0.0
        %2748 = vmatpush2.msra.mxu0 0.0
        %2749 = vmatprep.subr.mxu0 0.0
        %2750 = vmatpush2.msra.mxu0 0.0
        %2751 = vmatprep.subr.mxu0 0.0
        %2752 = vmatpush2.msra.mxu0 0.0
        %2753 = vmatprep.subr.mxu0 0.0
        %2754 = vmatpush2.msra.mxu0 0.0
        %2755 = vmatprep.subr.mxu0 0.0
        %2756 = vmatpush2.msra.mxu0 0.0
        %2757 = vmatprep.subr.mxu0 0.0
        %2758 = vmatpush2.msra.mxu0 0.0
        %2759 = vmatprep.mubr.f32.mxu0 0.0
        %2760 = vmatmul.mubr.f32.gmra.mxu0 %v2693
        %v2761 = vpop.f32.mrf.mxu0
        %v2762 = vadd.f32 %v2690, %v2761
        %v2763 = vpop.f32.mrf.mxu0
        %2764 = vdwg.mxu0
        %v2765 = vadd.f32 %v1186, %v2762
        %v2766 = vsel %vm1204, %v2765, 0.0
        %2767 = vadd.xlane.f32.xlu0 %v2766
        %v2768 = vpop.xlane.xlu0 %2767
        %v2769 = vrcp.pop 32.0
        %v2770 = vmul.f32 %v2768, %v2769
        %v2771 = vsub.f32 %v2765, %v2770
        %v2772 = vmul.f32 %v2771, %v2771
        %v2773 = vsel %vm1204, %v2772, 0.0
        %2774 = vadd.xlane.f32.xlu0 %v2773
        %v2775 = vpop.xlane.xlu0 %2774
        %v2776 = vmul.f32 %v2775, %v2769
        %v2777 = vadd.f32 %v2776, 1e-05
        %v2778 = vrsqrt.pop %v2777
        %v2779 = vmul.f32 %v2771, %v2778
        %v2780 = vld [vmem:[%s49] sm:$0x1]
        %v2782 = vlaneseq
        %v2783 = vshrl.u32 %v2782, 7
        %v2784 = vsub.s32 0, %v2783
        %v2785 = vrot.slane %v2780, %v2784
        %v2787 = vmul.f32 %v2779, %v2785
        %v2788 = vld [vmem:[%s51] sm:$0x1]
        %v2790 = vlaneseq
        %v2791 = vshrl.u32 %v2790, 7
        %v2792 = vsub.s32 0, %v2791
        %v2793 = vrot.slane %v2788, %v2792
        %v2795 = vadd.f32 %v2787, %v2793
        %v2796 = vld [vmem:[#allocation10] sm:$0xff]
        %v2797 = vld [vmem:[#allocation10 + $0x8] sm:$0xff]
        %v2798 = vld [vmem:[#allocation10 + $0x10] sm:$0xff]
        %v2799 = vld [vmem:[#allocation10 + $0x18] sm:$0xff]
        %v2800 = vld [vmem:[#allocation11] sm:$0x1]
        %v2802 = vlaneseq
        %v2803 = vshrl.u32 %v2802, 7
        %v2804 = vsub.s32 0, %v2803
        %v2805 = vrot.slane %v2800, %v2804
        %v2808 = vsel %vm1204, %v2795, 0
        %2810 = vmatprep.subr.mxu0 0.0
        %2811 = vmatpush1.msra.mxu0 0.0
        %2812 = vmatprep.subr.mxu0 0.0
        %2813 = vmatpush1.msra.mxu0 0.0
        %2814 = vmatprep.subr.mxu0 0.0
        %2815 = vmatpush1.msra.mxu0 0.0
        %2816 = vmatprep.subr.mxu0 0.0
        %2817 = vmatpush1.msra.mxu0 0.0
        %2818 = vmatprep.subr.mxu0 0.0
        %2819 = vmatpush1.msra.mxu0 0.0
        %2820 = vmatprep.subr.mxu0 0.0
        %2821 = vmatpush1.msra.mxu0 0.0
        %2822 = vmatprep.subr.mxu0 0.0
        %2823 = vmatpush1.msra.mxu0 0.0
        %2824 = vmatprep.subr.mxu0 0.0
        %2825 = vmatpush1.msra.mxu0 0.0
        %2826 = vmatprep.subr.mxu0 0.0
        %2827 = vmatpush1.msra.mxu0 0.0
        %2828 = vmatprep.subr.mxu0 0.0
        %2829 = vmatpush1.msra.mxu0 0.0
        %2830 = vmatprep.subr.mxu0 0.0
        %2831 = vmatpush1.msra.mxu0 0.0
        %2832 = vmatprep.subr.mxu0 0.0
        %2833 = vmatpush1.msra.mxu0 0.0
        %2834 = vmatprep.subr.mxu0 0.0
        %2835 = vmatpush1.msra.mxu0 %v2799
        %2836 = vmatprep.subr.mxu0 0.0
        %2837 = vmatpush1.msra.mxu0 %v2798
        %2838 = vmatprep.subr.mxu0 0.0
        %2839 = vmatpush1.msra.mxu0 %v2797
        %2840 = vmatprep.subr.mxu0 0.0
        %2841 = vmatpush1.msra.mxu0 %v2796
        %2842 = vmatprep.subr.mxu0 0.0
        %2843 = vmatpush2.msra.mxu0 0.0
        %2844 = vmatprep.subr.mxu0 0.0
        %2845 = vmatpush2.msra.mxu0 0.0
        %2846 = vmatprep.subr.mxu0 0.0
        %2847 = vmatpush2.msra.mxu0 0.0
        %2848 = vmatprep.subr.mxu0 0.0
        %2849 = vmatpush2.msra.mxu0 0.0
        %2850 = vmatprep.subr.mxu0 0.0
        %2851 = vmatpush2.msra.mxu0 0.0
        %2852 = vmatprep.subr.mxu0 0.0
        %2853 = vmatpush2.msra.mxu0 0.0
        %2854 = vmatprep.subr.mxu0 0.0
        %2855 = vmatpush2.msra.mxu0 0.0
        %2856 = vmatprep.subr.mxu0 0.0
        %2857 = vmatpush2.msra.mxu0 0.0
        %2858 = vmatprep.subr.mxu0 0.0
        %2859 = vmatpush2.msra.mxu0 0.0
        %2860 = vmatprep.subr.mxu0 0.0
        %2861 = vmatpush2.msra.mxu0 0.0
        %2862 = vmatprep.subr.mxu0 0.0
        %2863 = vmatpush2.msra.mxu0 0.0
        %2864 = vmatprep.subr.mxu0 0.0
        %2865 = vmatpush2.msra.mxu0 0.0
        %2866 = vmatprep.subr.mxu0 0.0
        %2867 = vmatpush2.msra.mxu0 0.0
        %2868 = vmatprep.subr.mxu0 0.0
        %2869 = vmatpush2.msra.mxu0 0.0
        %2870 = vmatprep.subr.mxu0 0.0
        %2871 = vmatpush2.msra.mxu0 0.0
        %2872 = vmatprep.subr.mxu0 0.0
        %2873 = vmatpush2.msra.mxu0 0.0
        %2874 = vmatprep.mubr.f32.mxu0 0.0
        %2875 = vmatmul.mubr.f32.gmra.mxu0 %v2808
        %v2876 = vpop.f32.mrf.mxu0
        %v2877 = vadd.f32 %v2805, %v2876
        %v2878 = vpop.f32.mrf.mxu0
        %2879 = vdwg.mxu0
        %v2880 = vld [vmem:[#allocation13] sm:$0xff]
        %v2881 = vld [vmem:[#allocation13 + $0x8] sm:$0xff]
        %v2882 = vld [vmem:[#allocation13 + $0x10] sm:$0xff]
        %v2883 = vld [vmem:[#allocation13 + $0x18] sm:$0xff]
        %v2884 = vld [vmem:[#allocation14] sm:$0x1]
        %v2886 = vlaneseq
        %v2887 = vshrl.u32 %v2886, 7
        %v2888 = vsub.s32 0, %v2887
        %v2889 = vrot.slane %v2884, %v2888
        %v2892 = vsel %vm1204, %v1187, 0
        %v2895 = vsel %vm1204, %v1188, 0
        %2897 = vmatprep.subr.mxu0 0.0
        %2898 = vmatpush1.msra.mxu0 0.0
        %2899 = vmatprep.subr.mxu0 0.0
        %2900 = vmatpush1.msra.mxu0 0.0
        %2901 = vmatprep.subr.mxu0 0.0
        %2902 = vmatpush1.msra.mxu0 0.0
        %2903 = vmatprep.subr.mxu0 0.0
        %2904 = vmatpush1.msra.mxu0 0.0
        %2905 = vmatprep.subr.mxu0 0.0
        %2906 = vmatpush1.msra.mxu0 0.0
        %2907 = vmatprep.subr.mxu0 0.0
        %2908 = vmatpush1.msra.mxu0 0.0
        %2909 = vmatprep.subr.mxu0 0.0
        %2910 = vmatpush1.msra.mxu0 0.0
        %2911 = vmatprep.subr.mxu0 0.0
        %2912 = vmatpush1.msra.mxu0 0.0
        %2913 = vmatprep.subr.mxu0 0.0
        %2914 = vmatpush1.msra.mxu0 0.0
        %2915 = vmatprep.subr.mxu0 0.0
        %2916 = vmatpush1.msra.mxu0 0.0
        %2917 = vmatprep.subr.mxu0 0.0
        %2918 = vmatpush1.msra.mxu0 0.0
        %2919 = vmatprep.subr.mxu0 0.0
        %2920 = vmatpush1.msra.mxu0 0.0
        %2921 = vmatprep.subr.mxu0 0.0
        %2922 = vmatpush1.msra.mxu0 %v2883
        %2923 = vmatprep.subr.mxu0 0.0
        %2924 = vmatpush1.msra.mxu0 %v2882
        %2925 = vmatprep.subr.mxu0 0.0
        %2926 = vmatpush1.msra.mxu0 %v2881
        %2927 = vmatprep.subr.mxu0 0.0
        %2928 = vmatpush1.msra.mxu0 %v2880
        %2929 = vmatprep.subr.mxu0 0.0
        %2930 = vmatpush2.msra.mxu0 0.0
        %2931 = vmatprep.subr.mxu0 0.0
        %2932 = vmatpush2.msra.mxu0 0.0
        %2933 = vmatprep.subr.mxu0 0.0
        %2934 = vmatpush2.msra.mxu0 0.0
        %2935 = vmatprep.subr.mxu0 0.0
        %2936 = vmatpush2.msra.mxu0 0.0
        %2937 = vmatprep.subr.mxu0 0.0
        %2938 = vmatpush2.msra.mxu0 0.0
        %2939 = vmatprep.subr.mxu0 0.0
        %2940 = vmatpush2.msra.mxu0 0.0
        %2941 = vmatprep.subr.mxu0 0.0
        %2942 = vmatpush2.msra.mxu0 0.0
        %2943 = vmatprep.subr.mxu0 0.0
        %2944 = vmatpush2.msra.mxu0 0.0
        %2945 = vmatprep.subr.mxu0 0.0
        %2946 = vmatpush2.msra.mxu0 0.0
        %2947 = vmatprep.subr.mxu0 0.0
        %2948 = vmatpush2.msra.mxu0 0.0
        %2949 = vmatprep.subr.mxu0 0.0
        %2950 = vmatpush2.msra.mxu0 0.0
        %2951 = vmatprep.subr.mxu0 0.0
        %2952 = vmatpush2.msra.mxu0 0.0
        %2953 = vmatprep.subr.mxu0 0.0
        %2954 = vmatpush2.msra.mxu0 0.0
        %2955 = vmatprep.subr.mxu0 0.0
        %2956 = vmatpush2.msra.mxu0 0.0
        %2957 = vmatprep.subr.mxu0 0.0
        %2958 = vmatpush2.msra.mxu0 0.0
        %2959 = vmatprep.subr.mxu0 0.0
        %2960 = vmatpush2.msra.mxu0 0.0
        %2961 = vmatprep.mubr.f32.mxu0 0.0
        %2962 = vmatmul.mubr.f32.gmra.mxu0 %v2892
        %v2963 = vpop.f32.mrf.mxu0
        %v2964 = vadd.f32 %v2889, %v2963
        %v2965 = vpop.f32.mrf.mxu0
        %2966 = vmatprep.mubr.f32.mxu0 0.0
        %2967 = vmatmul.mubr.f32.gmra.mxu0 %v2895
        %v2968 = vpop.f32.mrf.mxu0
        %v2969 = vadd.f32 %v2889, %v2968
        %v2970 = vpop.f32.mrf.mxu0
        %2971 = vdwg.mxu0
        %v2972 = vld [vmem:[#allocation16] sm:$0xff]
        %v2973 = vld [vmem:[#allocation16 + $0x8] sm:$0xff]
        %v2974 = vld [vmem:[#allocation16 + $0x10] sm:$0xff]
        %v2975 = vld [vmem:[#allocation16 + $0x18] sm:$0xff]
        %v2976 = vld [vmem:[#allocation17] sm:$0x1]
        %v2978 = vlaneseq
        %v2979 = vshrl.u32 %v2978, 7
        %v2980 = vsub.s32 0, %v2979
        %v2981 = vrot.slane %v2976, %v2980
        %2983 = vmatprep.subr.mxu0 0.0
        %2984 = vmatpush1.msra.mxu0 0.0
        %2985 = vmatprep.subr.mxu0 0.0
        %2986 = vmatpush1.msra.mxu0 0.0
        %2987 = vmatprep.subr.mxu0 0.0
        %2988 = vmatpush1.msra.mxu0 0.0
        %2989 = vmatprep.subr.mxu0 0.0
        %2990 = vmatpush1.msra.mxu0 0.0
        %2991 = vmatprep.subr.mxu0 0.0
        %2992 = vmatpush1.msra.mxu0 0.0
        %2993 = vmatprep.subr.mxu0 0.0
        %2994 = vmatpush1.msra.mxu0 0.0
        %2995 = vmatprep.subr.mxu0 0.0
        %2996 = vmatpush1.msra.mxu0 0.0
        %2997 = vmatprep.subr.mxu0 0.0
        %2998 = vmatpush1.msra.mxu0 0.0
        %2999 = vmatprep.subr.mxu0 0.0
        %3000 = vmatpush1.msra.mxu0 0.0
        %3001 = vmatprep.subr.mxu0 0.0
        %3002 = vmatpush1.msra.mxu0 0.0
        %3003 = vmatprep.subr.mxu0 0.0
        %3004 = vmatpush1.msra.mxu0 0.0
        %3005 = vmatprep.subr.mxu0 0.0
        %3006 = vmatpush1.msra.mxu0 0.0
        %3007 = vmatprep.subr.mxu0 0.0
        %3008 = vmatpush1.msra.mxu0 %v2975
        %3009 = vmatprep.subr.mxu0 0.0
        %3010 = vmatpush1.msra.mxu0 %v2974
        %3011 = vmatprep.subr.mxu0 0.0
        %3012 = vmatpush1.msra.mxu0 %v2973
        %3013 = vmatprep.subr.mxu0 0.0
        %3014 = vmatpush1.msra.mxu0 %v2972
        %3015 = vmatprep.subr.mxu0 0.0
        %3016 = vmatpush2.msra.mxu0 0.0
        %3017 = vmatprep.subr.mxu0 0.0
        %3018 = vmatpush2.msra.mxu0 0.0
        %3019 = vmatprep.subr.mxu0 0.0
        %3020 = vmatpush2.msra.mxu0 0.0
        %3021 = vmatprep.subr.mxu0 0.0
        %3022 = vmatpush2.msra.mxu0 0.0
        %3023 = vmatprep.subr.mxu0 0.0
        %3024 = vmatpush2.msra.mxu0 0.0
        %3025 = vmatprep.subr.mxu0 0.0
        %3026 = vmatpush2.msra.mxu0 0.0
        %3027 = vmatprep.subr.mxu0 0.0
        %3028 = vmatpush2.msra.mxu0 0.0
        %3029 = vmatprep.subr.mxu0 0.0
        %3030 = vmatpush2.msra.mxu0 0.0
        %3031 = vmatprep.subr.mxu0 0.0
        %3032 = vmatpush2.msra.mxu0 0.0
        %3033 = vmatprep.subr.mxu0 0.0
        %3034 = vmatpush2.msra.mxu0 0.0
        %3035 = vmatprep.subr.mxu0 0.0
        %3036 = vmatpush2.msra.mxu0 0.0
        %3037 = vmatprep.subr.mxu0 0.0
        %3038 = vmatpush2.msra.mxu0 0.0
        %3039 = vmatprep.subr.mxu0 0.0
        %3040 = vmatpush2.msra.mxu0 0.0
        %3041 = vmatprep.subr.mxu0 0.0
        %3042 = vmatpush2.msra.mxu0 0.0
        %3043 = vmatprep.subr.mxu0 0.0
        %3044 = vmatpush2.msra.mxu0 0.0
        %3045 = vmatprep.subr.mxu0 0.0
        %3046 = vmatpush2.msra.mxu0 0.0
        %3047 = vmatprep.mubr.f32.mxu0 0.0
        %3048 = vmatmul.mubr.f32.gmra.mxu0 %v2892
        %v3049 = vpop.f32.mrf.mxu0
        %v3050 = vadd.f32 %v2981, %v3049
        %v3051 = vpop.f32.mrf.mxu0
        %3052 = vmatprep.mubr.f32.mxu0 0.0
        %3053 = vmatmul.mubr.f32.gmra.mxu0 %v2895
        %v3054 = vpop.f32.mrf.mxu0
        %v3055 = vadd.f32 %v2981, %v3054
        %v3056 = vpop.f32.mrf.mxu0
        %3057 = vdwg.mxu0
        %3059 = vrot.lane.b32.xlu0 %v2877, 120
        %v3060 = vpop.permute.xlu0 %3059
        %3062 = vrot.lane.b32.xlu0 %v2877, 112
        %v3063 = vpop.permute.xlu0 %3062
        %3065 = vrot.lane.b32.xlu0 %v2877, 104
        %v3066 = vpop.permute.xlu0 %3065
        %v3068 = vcombine.low %v2877, %v3063
        %v3069 = vcombine.high %v2877, %v3063
        %v3071 = vunpack.c.l.s4 1983009808
        %v3072 = vunpack.c.0.s8 %v3071
        %v3073 = vlaneseq
        %v3074 = vshrl.u32 %v3073, 7
        %v3075 = vsub.s32 %v3072, %v3074
        %v3076 = vrot.slane %v3068, %v3075
        %v3078 = vunpack.c.l.s4 1983009808
        %v3079 = vunpack.c.0.s8 %v3078
        %v3080 = vlaneseq
        %v3081 = vshrl.u32 %v3080, 7
        %v3082 = vsub.s32 %v3079, %v3081
        %v3083 = vrot.slane %v3069, %v3082
        %v3084 = vcombine.low %v3060, %v3066
        %v3085 = vcombine.high %v3060, %v3066
        %v3087 = vunpack.c.l.s4 1983009808
        %v3088 = vunpack.c.0.s8 %v3087
        %v3089 = vlaneseq
        %v3090 = vshrl.u32 %v3089, 7
        %v3091 = vsub.s32 %v3088, %v3090
        %v3092 = vrot.slane %v3084, %v3091
        %v3094 = vunpack.c.l.s4 1983009808
        %v3095 = vunpack.c.0.s8 %v3094
        %v3096 = vlaneseq
        %v3097 = vshrl.u32 %v3096, 7
        %v3098 = vsub.s32 %v3095, %v3097
        %v3099 = vrot.slane %v3085, %v3098
        %v3100 = vcombine.low %v3076, %v3092
        %v3101 = vcombine.high %v3076, %v3092
        %v3103 = vunpack.c.l.s4 1934713408
        %v3104 = vunpack.c.0.s8 %v3103
        %v3105 = vlaneseq
        %v3106 = vshrl.u32 %v3105, 7
        %v3107 = vsub.s32 %v3104, %v3106
        %v3108 = vrot.slane %v3100, %v3107
        %v3110 = vunpack.c.l.s4 1934713408
        %v3111 = vunpack.c.0.s8 %v3110
        %v3112 = vlaneseq
        %v3113 = vshrl.u32 %v3112, 7
        %v3114 = vsub.s32 %v3111, %v3113
        %v3115 = vrot.slane %v3101, %v3114
        %v3116 = vcombine.low %v3083, %v3099
        %v3117 = vcombine.high %v3083, %v3099
        %v3119 = vunpack.c.l.s4 1934713408
        %v3120 = vunpack.c.0.s8 %v3119
        %v3121 = vlaneseq
        %v3122 = vshrl.u32 %v3121, 7
        %v3123 = vsub.s32 %v3120, %v3122
        %v3124 = vrot.slane %v3116, %v3123
        %v3126 = vunpack.c.l.s4 1934713408
        %v3127 = vunpack.c.0.s8 %v3126
        %v3128 = vlaneseq
        %v3129 = vshrl.u32 %v3128, 7
        %v3130 = vsub.s32 %v3127, %v3129
        %v3131 = vrot.slane %v3117, %v3130
        %v3132 = vcombine.high %v3108, 0.0
        %v3133 = vcombine.high %v3115, 0.0
        %v3134 = vcombine.high %v3124, 0.0
        %v3135 = vcombine.high %v3131, 0.0
        %v3136 = vcombine.low %v3108, %v3115
        %v3138 = vunpack.c.l.s4 1983009808
        %v3139 = vunpack.c.0.s8 %v3138
        %v3140 = vlaneseq
        %v3141 = vshrl.u32 %v3140, 7
        %v3142 = vsub.s32 %v3139, %v3141
        %v3143 = vrot.slane %v3136, %v3142
        %v3144 = vcombine.low %v3132, %v3133
        %v3146 = vunpack.c.l.s4 1983009808
        %v3147 = vunpack.c.0.s8 %v3146
        %v3148 = vlaneseq
        %v3149 = vshrl.u32 %v3148, 7
        %v3150 = vsub.s32 %v3147, %v3149
        %v3151 = vrot.slane %v3144, %v3150
        %v3152 = vcombine.low %v3124, %v3131
        %v3154 = vunpack.c.l.s4 1983009808
        %v3155 = vunpack.c.0.s8 %v3154
        %v3156 = vlaneseq
        %v3157 = vshrl.u32 %v3156, 7
        %v3158 = vsub.s32 %v3155, %v3157
        %v3159 = vrot.slane %v3152, %v3158
        %v3160 = vcombine.low %v3134, %v3135
        %v3162 = vunpack.c.l.s4 1983009808
        %v3163 = vunpack.c.0.s8 %v3162
        %v3164 = vlaneseq
        %v3165 = vshrl.u32 %v3164, 7
        %v3166 = vsub.s32 %v3163, %v3165
        %v3167 = vrot.slane %v3160, %v3166
        %v3168 = vcombine.low %v3143, %v3151
        %v3169 = vcombine.high %v3143, %v3151
        %v3171 = vunpack.c.l.s4 1934713408
        %v3172 = vunpack.c.0.s8 %v3171
        %v3173 = vlaneseq
        %v3174 = vshrl.u32 %v3173, 7
        %v3175 = vsub.s32 %v3172, %v3174
        %v3176 = vrot.slane %v3168, %v3175
        %v3178 = vunpack.c.l.s4 1934713408
        %v3179 = vunpack.c.0.s8 %v3178
        %v3180 = vlaneseq
        %v3181 = vshrl.u32 %v3180, 7
        %v3182 = vsub.s32 %v3179, %v3181
        %v3183 = vrot.slane %v3169, %v3182
        %v3184 = vcombine.low %v3159, %v3167
        %v3185 = vcombine.high %v3159, %v3167
        %v3187 = vunpack.c.l.s4 1934713408
        %v3188 = vunpack.c.0.s8 %v3187
        %v3189 = vlaneseq
        %v3190 = vshrl.u32 %v3189, 7
        %v3191 = vsub.s32 %v3188, %v3190
        %v3192 = vrot.slane %v3184, %v3191
        %v3194 = vunpack.c.l.s4 1934713408
        %v3195 = vunpack.c.0.s8 %v3194
        %v3196 = vlaneseq
        %v3197 = vshrl.u32 %v3196, 7
        %v3198 = vsub.s32 %v3195, %v3197
        %v3199 = vrot.slane %v3185, %v3198
        %v3200 = vcombine.low %v3176, %v3192
        %v3201 = vcombine.high %v3176, %v3192
        %v3202 = vcombine.low %v3183, %v3199
        %v3203 = vcombine.high %v3183, %v3199
        %3206 = vrot.lane.b32.xlu0 %v2964, 120
        %v3207 = vpop.permute.xlu0 %3206
        %3208 = vrot.lane.b32.xlu0 %v2969, 120
        %v3209 = vpop.permute.xlu0 %3208
        %3212 = vrot.lane.b32.xlu0 %v2964, 112
        %v3213 = vpop.permute.xlu0 %3212
        %3214 = vrot.lane.b32.xlu0 %v2969, 112
        %v3215 = vpop.permute.xlu0 %3214
        %3218 = vrot.lane.b32.xlu0 %v2964, 104
        %v3219 = vpop.permute.xlu0 %3218
        %3220 = vrot.lane.b32.xlu0 %v2969, 104
        %v3221 = vpop.permute.xlu0 %3220
        %v3224 = vcombine.low %v2964, %v3213
        %v3225 = vcombine.high %v2964, %v3213
        %v3227 = vunpack.c.l.s4 1983009808
        %v3228 = vunpack.c.0.s8 %v3227
        %v3229 = vlaneseq
        %v3230 = vshrl.u32 %v3229, 7
        %v3231 = vsub.s32 %v3228, %v3230
        %v3232 = vrot.slane %v3224, %v3231
        %v3234 = vunpack.c.l.s4 1983009808
        %v3235 = vunpack.c.0.s8 %v3234
        %v3236 = vlaneseq
        %v3237 = vshrl.u32 %v3236, 7
        %v3238 = vsub.s32 %v3235, %v3237
        %v3239 = vrot.slane %v3225, %v3238
        %v3240 = vcombine.low %v3207, %v3219
        %v3241 = vcombine.high %v3207, %v3219
        %v3243 = vunpack.c.l.s4 1983009808
        %v3244 = vunpack.c.0.s8 %v3243
        %v3245 = vlaneseq
        %v3246 = vshrl.u32 %v3245, 7
        %v3247 = vsub.s32 %v3244, %v3246
        %v3248 = vrot.slane %v3240, %v3247
        %v3250 = vunpack.c.l.s4 1983009808
        %v3251 = vunpack.c.0.s8 %v3250
        %v3252 = vlaneseq
        %v3253 = vshrl.u32 %v3252, 7
        %v3254 = vsub.s32 %v3251, %v3253
        %v3255 = vrot.slane %v3241, %v3254
        %v3256 = vcombine.low %v3232, %v3248
        %v3257 = vcombine.high %v3232, %v3248
        %v3259 = vunpack.c.l.s4 1934713408
        %v3260 = vunpack.c.0.s8 %v3259
        %v3261 = vlaneseq
        %v3262 = vshrl.u32 %v3261, 7
        %v3263 = vsub.s32 %v3260, %v3262
        %v3264 = vrot.slane %v3256, %v3263
        %v3266 = vunpack.c.l.s4 1934713408
        %v3267 = vunpack.c.0.s8 %v3266
        %v3268 = vlaneseq
        %v3269 = vshrl.u32 %v3268, 7
        %v3270 = vsub.s32 %v3267, %v3269
        %v3271 = vrot.slane %v3257, %v3270
        %v3272 = vcombine.low %v3239, %v3255
        %v3273 = vcombine.high %v3239, %v3255
        %v3275 = vunpack.c.l.s4 1934713408
        %v3276 = vunpack.c.0.s8 %v3275
        %v3277 = vlaneseq
        %v3278 = vshrl.u32 %v3277, 7
        %v3279 = vsub.s32 %v3276, %v3278
        %v3280 = vrot.slane %v3272, %v3279
        %v3282 = vunpack.c.l.s4 1934713408
        %v3283 = vunpack.c.0.s8 %v3282
        %v3284 = vlaneseq
        %v3285 = vshrl.u32 %v3284, 7
        %v3286 = vsub.s32 %v3283, %v3285
        %v3287 = vrot.slane %v3273, %v3286
        %v3288 = vcombine.high %v3264, 0.0
        %v3289 = vcombine.high %v3271, 0.0
        %v3290 = vcombine.high %v3280, 0.0
        %v3291 = vcombine.high %v3287, 0.0
        %v3292 = vcombine.low %v2969, %v3215
        %v3293 = vcombine.high %v2969, %v3215
        %v3295 = vunpack.c.l.s4 1983009808
        %v3296 = vunpack.c.0.s8 %v3295
        %v3297 = vlaneseq
        %v3298 = vshrl.u32 %v3297, 7
        %v3299 = vsub.s32 %v3296, %v3298
        %v3300 = vrot.slane %v3292, %v3299
        %v3302 = vunpack.c.l.s4 1983009808
        %v3303 = vunpack.c.0.s8 %v3302
        %v3304 = vlaneseq
        %v3305 = vshrl.u32 %v3304, 7
        %v3306 = vsub.s32 %v3303, %v3305
        %v3307 = vrot.slane %v3293, %v3306
        %v3308 = vcombine.low %v3209, %v3221
        %v3309 = vcombine.high %v3209, %v3221
        %v3311 = vunpack.c.l.s4 1983009808
        %v3312 = vunpack.c.0.s8 %v3311
        %v3313 = vlaneseq
        %v3314 = vshrl.u32 %v3313, 7
        %v3315 = vsub.s32 %v3312, %v3314
        %v3316 = vrot.slane %v3308, %v3315
        %v3318 = vunpack.c.l.s4 1983009808
        %v3319 = vunpack.c.0.s8 %v3318
        %v3320 = vlaneseq
        %v3321 = vshrl.u32 %v3320, 7
        %v3322 = vsub.s32 %v3319, %v3321
        %v3323 = vrot.slane %v3309, %v3322
        %v3324 = vcombine.low %v3300, %v3316
        %v3325 = vcombine.high %v3300, %v3316
        %v3327 = vunpack.c.l.s4 1934713408
        %v3328 = vunpack.c.0.s8 %v3327
        %v3329 = vlaneseq
        %v3330 = vshrl.u32 %v3329, 7
        %v3331 = vsub.s32 %v3328, %v3330
        %v3332 = vrot.slane %v3324, %v3331
        %v3334 = vunpack.c.l.s4 1934713408
        %v3335 = vunpack.c.0.s8 %v3334
        %v3336 = vlaneseq
        %v3337 = vshrl.u32 %v3336, 7
        %v3338 = vsub.s32 %v3335, %v3337
        %v3339 = vrot.slane %v3325, %v3338
        %v3340 = vcombine.low %v3307, %v3323
        %v3341 = vcombine.high %v3307, %v3323
        %v3343 = vunpack.c.l.s4 1934713408
        %v3344 = vunpack.c.0.s8 %v3343
        %v3345 = vlaneseq
        %v3346 = vshrl.u32 %v3345, 7
        %v3347 = vsub.s32 %v3344, %v3346
        %v3348 = vrot.slane %v3340, %v3347
        %v3350 = vunpack.c.l.s4 1934713408
        %v3351 = vunpack.c.0.s8 %v3350
        %v3352 = vlaneseq
        %v3353 = vshrl.u32 %v3352, 7
        %v3354 = vsub.s32 %v3351, %v3353
        %v3355 = vrot.slane %v3341, %v3354
        %v3356 = vcombine.high %v3332, 0.0
        %v3357 = vcombine.high %v3339, 0.0
        %v3358 = vcombine.high %v3348, 0.0
        %v3359 = vcombine.high %v3355, 0.0
        %v3360 = vcombine.low %v3264, %v3271
        %v3362 = vunpack.c.l.s4 1983009808
        %v3363 = vunpack.c.0.s8 %v3362
        %v3364 = vlaneseq
        %v3365 = vshrl.u32 %v3364, 7
        %v3366 = vsub.s32 %v3363, %v3365
        %v3367 = vrot.slane %v3360, %v3366
        %v3368 = vcombine.low %v3288, %v3289
        %v3370 = vunpack.c.l.s4 1983009808
        %v3371 = vunpack.c.0.s8 %v3370
        %v3372 = vlaneseq
        %v3373 = vshrl.u32 %v3372, 7
        %v3374 = vsub.s32 %v3371, %v3373
        %v3375 = vrot.slane %v3368, %v3374
        %v3376 = vcombine.low %v3280, %v3287
        %v3378 = vunpack.c.l.s4 1983009808
        %v3379 = vunpack.c.0.s8 %v3378
        %v3380 = vlaneseq
        %v3381 = vshrl.u32 %v3380, 7
        %v3382 = vsub.s32 %v3379, %v3381
        %v3383 = vrot.slane %v3376, %v3382
        %v3384 = vcombine.low %v3290, %v3291
        %v3386 = vunpack.c.l.s4 1983009808
        %v3387 = vunpack.c.0.s8 %v3386
        %v3388 = vlaneseq
        %v3389 = vshrl.u32 %v3388, 7
        %v3390 = vsub.s32 %v3387, %v3389
        %v3391 = vrot.slane %v3384, %v3390
        %v3392 = vcombine.low %v3367, %v3375
        %v3393 = vcombine.high %v3367, %v3375
        %v3395 = vunpack.c.l.s4 1934713408
        %v3396 = vunpack.c.0.s8 %v3395
        %v3397 = vlaneseq
        %v3398 = vshrl.u32 %v3397, 7
        %v3399 = vsub.s32 %v3396, %v3398
        %v3400 = vrot.slane %v3392, %v3399
        %v3402 = vunpack.c.l.s4 1934713408
        %v3403 = vunpack.c.0.s8 %v3402
        %v3404 = vlaneseq
        %v3405 = vshrl.u32 %v3404, 7
        %v3406 = vsub.s32 %v3403, %v3405
        %v3407 = vrot.slane %v3393, %v3406
        %v3408 = vcombine.low %v3383, %v3391
        %v3409 = vcombine.high %v3383, %v3391
        %v3411 = vunpack.c.l.s4 1934713408
        %v3412 = vunpack.c.0.s8 %v3411
        %v3413 = vlaneseq
        %v3414 = vshrl.u32 %v3413, 7
        %v3415 = vsub.s32 %v3412, %v3414
        %v3416 = vrot.slane %v3408, %v3415
        %v3418 = vunpack.c.l.s4 1934713408
        %v3419 = vunpack.c.0.s8 %v3418
        %v3420 = vlaneseq
        %v3421 = vshrl.u32 %v3420, 7
        %v3422 = vsub.s32 %v3419, %v3421
        %v3423 = vrot.slane %v3409, %v3422
        %v3424 = vcombine.low %v3400, %v3416
        %v3425 = vcombine.high %v3400, %v3416
        %v3426 = vcombine.low %v3407, %v3423
        %v3427 = vcombine.high %v3407, %v3423
        %v3428 = vcombine.low %v3332, %v3339
        %v3430 = vunpack.c.l.s4 1983009808
        %v3431 = vunpack.c.0.s8 %v3430
        %v3432 = vlaneseq
        %v3433 = vshrl.u32 %v3432, 7
        %v3434 = vsub.s32 %v3431, %v3433
        %v3435 = vrot.slane %v3428, %v3434
        %v3436 = vcombine.low %v3356, %v3357
        %v3438 = vunpack.c.l.s4 1983009808
        %v3439 = vunpack.c.0.s8 %v3438
        %v3440 = vlaneseq
        %v3441 = vshrl.u32 %v3440, 7
        %v3442 = vsub.s32 %v3439, %v3441
        %v3443 = vrot.slane %v3436, %v3442
        %v3444 = vcombine.low %v3348, %v3355
        %v3446 = vunpack.c.l.s4 1983009808
        %v3447 = vunpack.c.0.s8 %v3446
        %v3448 = vlaneseq
        %v3449 = vshrl.u32 %v3448, 7
        %v3450 = vsub.s32 %v3447, %v3449
        %v3451 = vrot.slane %v3444, %v3450
        %v3452 = vcombine.low %v3358, %v3359
        %v3454 = vunpack.c.l.s4 1983009808
        %v3455 = vunpack.c.0.s8 %v3454
        %v3456 = vlaneseq
        %v3457 = vshrl.u32 %v3456, 7
        %v3458 = vsub.s32 %v3455, %v3457
        %v3459 = vrot.slane %v3452, %v3458
        %v3460 = vcombine.low %v3435, %v3443
        %v3461 = vcombine.high %v3435, %v3443
        %v3463 = vunpack.c.l.s4 1934713408
        %v3464 = vunpack.c.0.s8 %v3463
        %v3465 = vlaneseq
        %v3466 = vshrl.u32 %v3465, 7
        %v3467 = vsub.s32 %v3464, %v3466
        %v3468 = vrot.slane %v3460, %v3467
        %v3470 = vunpack.c.l.s4 1934713408
        %v3471 = vunpack.c.0.s8 %v3470
        %v3472 = vlaneseq
        %v3473 = vshrl.u32 %v3472, 7
        %v3474 = vsub.s32 %v3471, %v3473
        %v3475 = vrot.slane %v3461, %v3474
        %v3476 = vcombine.low %v3451, %v3459
        %v3477 = vcombine.high %v3451, %v3459
        %v3479 = vunpack.c.l.s4 1934713408
        %v3480 = vunpack.c.0.s8 %v3479
        %v3481 = vlaneseq
        %v3482 = vshrl.u32 %v3481, 7
        %v3483 = vsub.s32 %v3480, %v3482
        %v3484 = vrot.slane %v3476, %v3483
        %v3486 = vunpack.c.l.s4 1934713408
        %v3487 = vunpack.c.0.s8 %v3486
        %v3488 = vlaneseq
        %v3489 = vshrl.u32 %v3488, 7
        %v3490 = vsub.s32 %v3487, %v3489
        %v3491 = vrot.slane %v3477, %v3490
        %v3492 = vcombine.low %v3468, %v3484
        %v3493 = vcombine.high %v3468, %v3484
        %v3494 = vcombine.low %v3475, %v3491
        %v3495 = vcombine.high %v3475, %v3491
        %3498 = vrot.lane.b32.xlu0 %v3050, 120
        %v3499 = vpop.permute.xlu0 %3498
        %3500 = vrot.lane.b32.xlu0 %v3055, 120
        %v3501 = vpop.permute.xlu0 %3500
        %3504 = vrot.lane.b32.xlu0 %v3050, 112
        %v3505 = vpop.permute.xlu0 %3504
        %3506 = vrot.lane.b32.xlu0 %v3055, 112
        %v3507 = vpop.permute.xlu0 %3506
        %3510 = vrot.lane.b32.xlu0 %v3050, 104
        %v3511 = vpop.permute.xlu0 %3510
        %3512 = vrot.lane.b32.xlu0 %v3055, 104
        %v3513 = vpop.permute.xlu0 %3512
        %v3516 = vcombine.low %v3050, %v3505
        %v3517 = vcombine.high %v3050, %v3505
        %v3519 = vunpack.c.l.s4 1983009808
        %v3520 = vunpack.c.0.s8 %v3519
        %v3521 = vlaneseq
        %v3522 = vshrl.u32 %v3521, 7
        %v3523 = vsub.s32 %v3520, %v3522
        %v3524 = vrot.slane %v3516, %v3523
        %v3526 = vunpack.c.l.s4 1983009808
        %v3527 = vunpack.c.0.s8 %v3526
        %v3528 = vlaneseq
        %v3529 = vshrl.u32 %v3528, 7
        %v3530 = vsub.s32 %v3527, %v3529
        %v3531 = vrot.slane %v3517, %v3530
        %v3532 = vcombine.low %v3499, %v3511
        %v3533 = vcombine.high %v3499, %v3511
        %v3535 = vunpack.c.l.s4 1983009808
        %v3536 = vunpack.c.0.s8 %v3535
        %v3537 = vlaneseq
        %v3538 = vshrl.u32 %v3537, 7
        %v3539 = vsub.s32 %v3536, %v3538
        %v3540 = vrot.slane %v3532, %v3539
        %v3542 = vunpack.c.l.s4 1983009808
        %v3543 = vunpack.c.0.s8 %v3542
        %v3544 = vlaneseq
        %v3545 = vshrl.u32 %v3544, 7
        %v3546 = vsub.s32 %v3543, %v3545
        %v3547 = vrot.slane %v3533, %v3546
        %v3548 = vcombine.low %v3524, %v3540
        %v3549 = vcombine.high %v3524, %v3540
        %v3551 = vunpack.c.l.s4 1934713408
        %v3552 = vunpack.c.0.s8 %v3551
        %v3553 = vlaneseq
        %v3554 = vshrl.u32 %v3553, 7
        %v3555 = vsub.s32 %v3552, %v3554
        %v3556 = vrot.slane %v3548, %v3555
        %v3558 = vunpack.c.l.s4 1934713408
        %v3559 = vunpack.c.0.s8 %v3558
        %v3560 = vlaneseq
        %v3561 = vshrl.u32 %v3560, 7
        %v3562 = vsub.s32 %v3559, %v3561
        %v3563 = vrot.slane %v3549, %v3562
        %v3564 = vcombine.low %v3531, %v3547
        %v3565 = vcombine.high %v3531, %v3547
        %v3567 = vunpack.c.l.s4 1934713408
        %v3568 = vunpack.c.0.s8 %v3567
        %v3569 = vlaneseq
        %v3570 = vshrl.u32 %v3569, 7
        %v3571 = vsub.s32 %v3568, %v3570
        %v3572 = vrot.slane %v3564, %v3571
        %v3574 = vunpack.c.l.s4 1934713408
        %v3575 = vunpack.c.0.s8 %v3574
        %v3576 = vlaneseq
        %v3577 = vshrl.u32 %v3576, 7
        %v3578 = vsub.s32 %v3575, %v3577
        %v3579 = vrot.slane %v3565, %v3578
        %v3580 = vcombine.high %v3556, 0.0
        %v3581 = vcombine.high %v3563, 0.0
        %v3582 = vcombine.high %v3572, 0.0
        %v3583 = vcombine.high %v3579, 0.0
        %v3584 = vcombine.low %v3055, %v3507
        %v3585 = vcombine.high %v3055, %v3507
        %v3587 = vunpack.c.l.s4 1983009808
        %v3588 = vunpack.c.0.s8 %v3587
        %v3589 = vlaneseq
        %v3590 = vshrl.u32 %v3589, 7
        %v3591 = vsub.s32 %v3588, %v3590
        %v3592 = vrot.slane %v3584, %v3591
        %v3594 = vunpack.c.l.s4 1983009808
        %v3595 = vunpack.c.0.s8 %v3594
        %v3596 = vlaneseq
        %v3597 = vshrl.u32 %v3596, 7
        %v3598 = vsub.s32 %v3595, %v3597
        %v3599 = vrot.slane %v3585, %v3598
        %v3600 = vcombine.low %v3501, %v3513
        %v3601 = vcombine.high %v3501, %v3513
        %v3603 = vunpack.c.l.s4 1983009808
        %v3604 = vunpack.c.0.s8 %v3603
        %v3605 = vlaneseq
        %v3606 = vshrl.u32 %v3605, 7
        %v3607 = vsub.s32 %v3604, %v3606
        %v3608 = vrot.slane %v3600, %v3607
        %v3610 = vunpack.c.l.s4 1983009808
        %v3611 = vunpack.c.0.s8 %v3610
        %v3612 = vlaneseq
        %v3613 = vshrl.u32 %v3612, 7
        %v3614 = vsub.s32 %v3611, %v3613
        %v3615 = vrot.slane %v3601, %v3614
        %v3616 = vcombine.low %v3592, %v3608
        %v3617 = vcombine.high %v3592, %v3608
        %v3619 = vunpack.c.l.s4 1934713408
        %v3620 = vunpack.c.0.s8 %v3619
        %v3621 = vlaneseq
        %v3622 = vshrl.u32 %v3621, 7
        %v3623 = vsub.s32 %v3620, %v3622
        %v3624 = vrot.slane %v3616, %v3623
        %v3626 = vunpack.c.l.s4 1934713408
        %v3627 = vunpack.c.0.s8 %v3626
        %v3628 = vlaneseq
        %v3629 = vshrl.u32 %v3628, 7
        %v3630 = vsub.s32 %v3627, %v3629
        %v3631 = vrot.slane %v3617, %v3630
        %v3632 = vcombine.low %v3599, %v3615
        %v3633 = vcombine.high %v3599, %v3615
        %v3635 = vunpack.c.l.s4 1934713408
        %v3636 = vunpack.c.0.s8 %v3635
        %v3637 = vlaneseq
        %v3638 = vshrl.u32 %v3637, 7
        %v3639 = vsub.s32 %v3636, %v3638
        %v3640 = vrot.slane %v3632, %v3639
        %v3642 = vunpack.c.l.s4 1934713408
        %v3643 = vunpack.c.0.s8 %v3642
        %v3644 = vlaneseq
        %v3645 = vshrl.u32 %v3644, 7
        %v3646 = vsub.s32 %v3643, %v3645
        %v3647 = vrot.slane %v3633, %v3646
        %v3648 = vcombine.high %v3624, 0.0
        %v3649 = vcombine.high %v3631, 0.0
        %v3650 = vcombine.high %v3640, 0.0
        %v3651 = vcombine.high %v3647, 0.0
        %v3652 = vcombine.low %v3556, %v3563
        %v3654 = vunpack.c.l.s4 1983009808
        %v3655 = vunpack.c.0.s8 %v3654
        %v3656 = vlaneseq
        %v3657 = vshrl.u32 %v3656, 7
        %v3658 = vsub.s32 %v3655, %v3657
        %v3659 = vrot.slane %v3652, %v3658
        %v3660 = vcombine.low %v3580, %v3581
        %v3662 = vunpack.c.l.s4 1983009808
        %v3663 = vunpack.c.0.s8 %v3662
        %v3664 = vlaneseq
        %v3665 = vshrl.u32 %v3664, 7
        %v3666 = vsub.s32 %v3663, %v3665
        %v3667 = vrot.slane %v3660, %v3666
        %v3668 = vcombine.low %v3572, %v3579
        %v3670 = vunpack.c.l.s4 1983009808
        %v3671 = vunpack.c.0.s8 %v3670
        %v3672 = vlaneseq
        %v3673 = vshrl.u32 %v3672, 7
        %v3674 = vsub.s32 %v3671, %v3673
        %v3675 = vrot.slane %v3668, %v3674
        %v3676 = vcombine.low %v3582, %v3583
        %v3678 = vunpack.c.l.s4 1983009808
        %v3679 = vunpack.c.0.s8 %v3678
        %v3680 = vlaneseq
        %v3681 = vshrl.u32 %v3680, 7
        %v3682 = vsub.s32 %v3679, %v3681
        %v3683 = vrot.slane %v3676, %v3682
        %v3684 = vcombine.low %v3659, %v3667
        %v3685 = vcombine.high %v3659, %v3667
        %v3687 = vunpack.c.l.s4 1934713408
        %v3688 = vunpack.c.0.s8 %v3687
        %v3689 = vlaneseq
        %v3690 = vshrl.u32 %v3689, 7
        %v3691 = vsub.s32 %v3688, %v3690
        %v3692 = vrot.slane %v3684, %v3691
        %v3694 = vunpack.c.l.s4 1934713408
        %v3695 = vunpack.c.0.s8 %v3694
        %v3696 = vlaneseq
        %v3697 = vshrl.u32 %v3696, 7
        %v3698 = vsub.s32 %v3695, %v3697
        %v3699 = vrot.slane %v3685, %v3698
        %v3700 = vcombine.low %v3675, %v3683
        %v3701 = vcombine.high %v3675, %v3683
        %v3703 = vunpack.c.l.s4 1934713408
        %v3704 = vunpack.c.0.s8 %v3703
        %v3705 = vlaneseq
        %v3706 = vshrl.u32 %v3705, 7
        %v3707 = vsub.s32 %v3704, %v3706
        %v3708 = vrot.slane %v3700, %v3707
        %v3710 = vunpack.c.l.s4 1934713408
        %v3711 = vunpack.c.0.s8 %v3710
        %v3712 = vlaneseq
        %v3713 = vshrl.u32 %v3712, 7
        %v3714 = vsub.s32 %v3711, %v3713
        %v3715 = vrot.slane %v3701, %v3714
        %v3716 = vcombine.low %v3692, %v3708
        %v3717 = vcombine.high %v3692, %v3708
        %v3718 = vcombine.low %v3699, %v3715
        %v3719 = vcombine.high %v3699, %v3715
        %v3720 = vcombine.low %v3624, %v3631
        %v3722 = vunpack.c.l.s4 1983009808
        %v3723 = vunpack.c.0.s8 %v3722
        %v3724 = vlaneseq
        %v3725 = vshrl.u32 %v3724, 7
        %v3726 = vsub.s32 %v3723, %v3725
        %v3727 = vrot.slane %v3720, %v3726
        %v3728 = vcombine.low %v3648, %v3649
        %v3730 = vunpack.c.l.s4 1983009808
        %v3731 = vunpack.c.0.s8 %v3730
        %v3732 = vlaneseq
        %v3733 = vshrl.u32 %v3732, 7
        %v3734 = vsub.s32 %v3731, %v3733
        %v3735 = vrot.slane %v3728, %v3734
        %v3736 = vcombine.low %v3640, %v3647
        %v3738 = vunpack.c.l.s4 1983009808
        %v3739 = vunpack.c.0.s8 %v3738
        %v3740 = vlaneseq
        %v3741 = vshrl.u32 %v3740, 7
        %v3742 = vsub.s32 %v3739, %v3741
        %v3743 = vrot.slane %v3736, %v3742
        %v3744 = vcombine.low %v3650, %v3651
        %v3746 = vunpack.c.l.s4 1983009808
        %v3747 = vunpack.c.0.s8 %v3746
        %v3748 = vlaneseq
        %v3749 = vshrl.u32 %v3748, 7
        %v3750 = vsub.s32 %v3747, %v3749
        %v3751 = vrot.slane %v3744, %v3750
        %v3752 = vcombine.low %v3727, %v3735
        %v3753 = vcombine.high %v3727, %v3735
        %v3755 = vunpack.c.l.s4 1934713408
        %v3756 = vunpack.c.0.s8 %v3755
        %v3757 = vlaneseq
        %v3758 = vshrl.u32 %v3757, 7
        %v3759 = vsub.s32 %v3756, %v3758
        %v3760 = vrot.slane %v3752, %v3759
        %v3762 = vunpack.c.l.s4 1934713408
        %v3763 = vunpack.c.0.s8 %v3762
        %v3764 = vlaneseq
        %v3765 = vshrl.u32 %v3764, 7
        %v3766 = vsub.s32 %v3763, %v3765
        %v3767 = vrot.slane %v3753, %v3766
        %v3768 = vcombine.low %v3743, %v3751
        %v3769 = vcombine.high %v3743, %v3751
        %v3771 = vunpack.c.l.s4 1934713408
        %v3772 = vunpack.c.0.s8 %v3771
        %v3773 = vlaneseq
        %v3774 = vshrl.u32 %v3773, 7
        %v3775 = vsub.s32 %v3772, %v3774
        %v3776 = vrot.slane %v3768, %v3775
        %v3778 = vunpack.c.l.s4 1934713408
        %v3779 = vunpack.c.0.s8 %v3778
        %v3780 = vlaneseq
        %v3781 = vshrl.u32 %v3780, 7
        %v3782 = vsub.s32 %v3779, %v3781
        %v3783 = vrot.slane %v3769, %v3782
        %v3784 = vcombine.low %v3760, %v3776
        %v3785 = vcombine.high %v3760, %v3776
        %v3786 = vcombine.low %v3767, %v3783
        %v3787 = vcombine.high %v3767, %v3783
        %v3789 = vsel %vm1878, %v3200, 0
        %v3792 = vsel %vm1878, %v3424, 0
        %v3795 = vsel %vm1878, %v3492, 0
        %3797 = vmatprep.subr.mxu0 0.0
        %3798 = vmatpush1.xpose.msra.mxu0 0.0
        %3799 = vmatprep.subr.mxu0 0.0
        %3800 = vmatpush1.xpose.msra.mxu0 0.0
        %3801 = vmatprep.subr.mxu0 0.0
        %3802 = vmatpush1.xpose.msra.mxu0 0.0
        %3803 = vmatprep.subr.mxu0 0.0
        %3804 = vmatpush1.xpose.msra.mxu0 0.0
        %3805 = vmatprep.subr.mxu0 0.0
        %3806 = vmatpush1.xpose.msra.mxu0 0.0
        %3807 = vmatprep.subr.mxu0 0.0
        %3808 = vmatpush1.xpose.msra.mxu0 0.0
        %3809 = vmatprep.subr.mxu0 0.0
        %3810 = vmatpush1.xpose.msra.mxu0 0.0
        %3811 = vmatprep.subr.mxu0 0.0
        %3812 = vmatpush1.xpose.msra.mxu0 0.0
        %3813 = vmatprep.subr.mxu0 0.0
        %3814 = vmatpush1.xpose.msra.mxu0 0.0
        %3815 = vmatprep.subr.mxu0 0.0
        %3816 = vmatpush1.xpose.msra.mxu0 0.0
        %3817 = vmatprep.subr.mxu0 0.0
        %3818 = vmatpush1.xpose.msra.mxu0 0.0
        %3819 = vmatprep.subr.mxu0 0.0
        %3820 = vmatpush1.xpose.msra.mxu0 0.0
        %3821 = vmatprep.subr.mxu0 0.0
        %3822 = vmatpush1.xpose.msra.mxu0 0.0
        %3823 = vmatprep.subr.mxu0 0.0
        %3824 = vmatpush1.xpose.msra.mxu0 0.0
        %3825 = vmatprep.subr.mxu0 0.0
        %3826 = vmatpush1.xpose.msra.mxu0 %v3795
        %3827 = vmatprep.subr.mxu0 0.0
        %3828 = vmatpush1.xpose.msra.mxu0 %v3792
        %3829 = vmatprep.subr.mxu0 0.0
        %3830 = vmatpush2.xpose.msra.mxu0 0.0
        %3831 = vmatprep.subr.mxu0 0.0
        %3832 = vmatpush2.xpose.msra.mxu0 0.0
        %3833 = vmatprep.subr.mxu0 0.0
        %3834 = vmatpush2.xpose.msra.mxu0 0.0
        %3835 = vmatprep.subr.mxu0 0.0
        %3836 = vmatpush2.xpose.msra.mxu0 0.0
        %3837 = vmatprep.subr.mxu0 0.0
        %3838 = vmatpush2.xpose.msra.mxu0 0.0
        %3839 = vmatprep.subr.mxu0 0.0
        %3840 = vmatpush2.xpose.msra.mxu0 0.0
        %3841 = vmatprep.subr.mxu0 0.0
        %3842 = vmatpush2.xpose.msra.mxu0 0.0
        %3843 = vmatprep.subr.mxu0 0.0
        %3844 = vmatpush2.xpose.msra.mxu0 0.0
        %3845 = vmatprep.subr.mxu0 0.0
        %3846 = vmatpush2.xpose.msra.mxu0 0.0
        %3847 = vmatprep.subr.mxu0 0.0
        %3848 = vmatpush2.xpose.msra.mxu0 0.0
        %3849 = vmatprep.subr.mxu0 0.0
        %3850 = vmatpush2.xpose.msra.mxu0 0.0
        %3851 = vmatprep.subr.mxu0 0.0
        %3852 = vmatpush2.xpose.msra.mxu0 0.0
        %3853 = vmatprep.subr.mxu0 0.0
        %3854 = vmatpush2.xpose.msra.mxu0 0.0
        %3855 = vmatprep.subr.mxu0 0.0
        %3856 = vmatpush2.xpose.msra.mxu0 0.0
        %3857 = vmatprep.subr.mxu0 0.0
        %3858 = vmatpush2.xpose.msra.mxu0 0.0
        %3859 = vmatprep.subr.mxu0 0.0
        %3860 = vmatpush2.xpose.msra.mxu0 0.0
        %3861 = vmatprep.mubr.f32.mxu0 0.0
        %3862 = vmatmul.mubr.f32.gmra.mxu0 %v3789
        %v3863 = vpop.f32.mrf.mxu0
        %v3864 = vadd.f32 0.0, %v3863
        %v3865 = vpop.f32.mrf.mxu0
        %3866 = vdwg.mxu0
        %v3868 = vsel %vm1878, %v3201, 0
        %v3871 = vsel %vm1878, %v3425, 0
        %v3874 = vsel %vm1878, %v3493, 0
        %3876 = vmatprep.subr.mxu0 0.0
        %3877 = vmatpush1.xpose.msra.mxu0 0.0
        %3878 = vmatprep.subr.mxu0 0.0
        %3879 = vmatpush1.xpose.msra.mxu0 0.0
        %3880 = vmatprep.subr.mxu0 0.0
        %3881 = vmatpush1.xpose.msra.mxu0 0.0
        %3882 = vmatprep.subr.mxu0 0.0
        %3883 = vmatpush1.xpose.msra.mxu0 0.0
        %3884 = vmatprep.subr.mxu0 0.0
        %3885 = vmatpush1.xpose.msra.mxu0 0.0
        %3886 = vmatprep.subr.mxu0 0.0
        %3887 = vmatpush1.xpose.msra.mxu0 0.0
        %3888 = vmatprep.subr.mxu0 0.0
        %3889 = vmatpush1.xpose.msra.mxu0 0.0
        %3890 = vmatprep.subr.mxu0 0.0
        %3891 = vmatpush1.xpose.msra.mxu0 0.0
        %3892 = vmatprep.subr.mxu0 0.0
        %3893 = vmatpush1.xpose.msra.mxu0 0.0
        %3894 = vmatprep.subr.mxu0 0.0
        %3895 = vmatpush1.xpose.msra.mxu0 0.0
        %3896 = vmatprep.subr.mxu0 0.0
        %3897 = vmatpush1.xpose.msra.mxu0 0.0
        %3898 = vmatprep.subr.mxu0 0.0
        %3899 = vmatpush1.xpose.msra.mxu0 0.0
        %3900 = vmatprep.subr.mxu0 0.0
        %3901 = vmatpush1.xpose.msra.mxu0 0.0
        %3902 = vmatprep.subr.mxu0 0.0
        %3903 = vmatpush1.xpose.msra.mxu0 0.0
        %3904 = vmatprep.subr.mxu0 0.0
        %3905 = vmatpush1.xpose.msra.mxu0 %v3874
        %3906 = vmatprep.subr.mxu0 0.0
        %3907 = vmatpush1.xpose.msra.mxu0 %v3871
        %3908 = vmatprep.subr.mxu0 0.0
        %3909 = vmatpush2.xpose.msra.mxu0 0.0
        %3910 = vmatprep.subr.mxu0 0.0
        %3911 = vmatpush2.xpose.msra.mxu0 0.0
        %3912 = vmatprep.subr.mxu0 0.0
        %3913 = vmatpush2.xpose.msra.mxu0 0.0
        %3914 = vmatprep.subr.mxu0 0.0
        %3915 = vmatpush2.xpose.msra.mxu0 0.0
        %3916 = vmatprep.subr.mxu0 0.0
        %3917 = vmatpush2.xpose.msra.mxu0 0.0
        %3918 = vmatprep.subr.mxu0 0.0
        %3919 = vmatpush2.xpose.msra.mxu0 0.0
        %3920 = vmatprep.subr.mxu0 0.0
        %3921 = vmatpush2.xpose.msra.mxu0 0.0
        %3922 = vmatprep.subr.mxu0 0.0
        %3923 = vmatpush2.xpose.msra.mxu0 0.0
        %3924 = vmatprep.subr.mxu0 0.0
        %3925 = vmatpush2.xpose.msra.mxu0 0.0
        %3926 = vmatprep.subr.mxu0 0.0
        %3927 = vmatpush2.xpose.msra.mxu0 0.0
        %3928 = vmatprep.subr.mxu0 0.0
        %3929 = vmatpush2.xpose.msra.mxu0 0.0
        %3930 = vmatprep.subr.mxu0 0.0
        %3931 = vmatpush2.xpose.msra.mxu0 0.0
        %3932 = vmatprep.subr.mxu0 0.0
        %3933 = vmatpush2.xpose.msra.mxu0 0.0
        %3934 = vmatprep.subr.mxu0 0.0
        %3935 = vmatpush2.xpose.msra.mxu0 0.0
        %3936 = vmatprep.subr.mxu0 0.0
        %3937 = vmatpush2.xpose.msra.mxu0 0.0
        %3938 = vmatprep.subr.mxu0 0.0
        %3939 = vmatpush2.xpose.msra.mxu0 0.0
        %3940 = vmatprep.mubr.f32.mxu0 0.0
        %3941 = vmatmul.mubr.f32.gmra.mxu0 %v3868
        %v3942 = vpop.f32.mrf.mxu0
        %v3943 = vadd.f32 0.0, %v3942
        %v3944 = vpop.f32.mrf.mxu0
        %3945 = vdwg.mxu0
        %v3947 = vsel %vm1878, %v3202, 0
        %v3950 = vsel %vm1878, %v3426, 0
        %v3953 = vsel %vm1878, %v3494, 0
        %3955 = vmatprep.subr.mxu0 0.0
        %3956 = vmatpush1.xpose.msra.mxu0 0.0
        %3957 = vmatprep.subr.mxu0 0.0
        %3958 = vmatpush1.xpose.msra.mxu0 0.0
        %3959 = vmatprep.subr.mxu0 0.0
        %3960 = vmatpush1.xpose.msra.mxu0 0.0
        %3961 = vmatprep.subr.mxu0 0.0
        %3962 = vmatpush1.xpose.msra.mxu0 0.0
        %3963 = vmatprep.subr.mxu0 0.0
        %3964 = vmatpush1.xpose.msra.mxu0 0.0
        %3965 = vmatprep.subr.mxu0 0.0
        %3966 = vmatpush1.xpose.msra.mxu0 0.0
        %3967 = vmatprep.subr.mxu0 0.0
        %3968 = vmatpush1.xpose.msra.mxu0 0.0
        %3969 = vmatprep.subr.mxu0 0.0
        %3970 = vmatpush1.xpose.msra.mxu0 0.0
        %3971 = vmatprep.subr.mxu0 0.0
        %3972 = vmatpush1.xpose.msra.mxu0 0.0
        %3973 = vmatprep.subr.mxu0 0.0
        %3974 = vmatpush1.xpose.msra.mxu0 0.0
        %3975 = vmatprep.subr.mxu0 0.0
        %3976 = vmatpush1.xpose.msra.mxu0 0.0
        %3977 = vmatprep.subr.mxu0 0.0
        %3978 = vmatpush1.xpose.msra.mxu0 0.0
        %3979 = vmatprep.subr.mxu0 0.0
        %3980 = vmatpush1.xpose.msra.mxu0 0.0
        %3981 = vmatprep.subr.mxu0 0.0
        %3982 = vmatpush1.xpose.msra.mxu0 0.0
        %3983 = vmatprep.subr.mxu0 0.0
        %3984 = vmatpush1.xpose.msra.mxu0 %v3953
        %3985 = vmatprep.subr.mxu0 0.0
        %3986 = vmatpush1.xpose.msra.mxu0 %v3950
        %3987 = vmatprep.subr.mxu0 0.0
        %3988 = vmatpush2.xpose.msra.mxu0 0.0
        %3989 = vmatprep.subr.mxu0 0.0
        %3990 = vmatpush2.xpose.msra.mxu0 0.0
        %3991 = vmatprep.subr.mxu0 0.0
        %3992 = vmatpush2.xpose.msra.mxu0 0.0
        %3993 = vmatprep.subr.mxu0 0.0
        %3994 = vmatpush2.xpose.msra.mxu0 0.0
        %3995 = vmatprep.subr.mxu0 0.0
        %3996 = vmatpush2.xpose.msra.mxu0 0.0
        %3997 = vmatprep.subr.mxu0 0.0
        %3998 = vmatpush2.xpose.msra.mxu0 0.0
        %3999 = vmatprep.subr.mxu0 0.0
        %4000 = vmatpush2.xpose.msra.mxu0 0.0
        %4001 = vmatprep.subr.mxu0 0.0
        %4002 = vmatpush2.xpose.msra.mxu0 0.0
        %4003 = vmatprep.subr.mxu0 0.0
        %4004 = vmatpush2.xpose.msra.mxu0 0.0
        %4005 = vmatprep.subr.mxu0 0.0
        %4006 = vmatpush2.xpose.msra.mxu0 0.0
        %4007 = vmatprep.subr.mxu0 0.0
        %4008 = vmatpush2.xpose.msra.mxu0 0.0
        %4009 = vmatprep.subr.mxu0 0.0
        %4010 = vmatpush2.xpose.msra.mxu0 0.0
        %4011 = vmatprep.subr.mxu0 0.0
        %4012 = vmatpush2.xpose.msra.mxu0 0.0
        %4013 = vmatprep.subr.mxu0 0.0
        %4014 = vmatpush2.xpose.msra.mxu0 0.0
        %4015 = vmatprep.subr.mxu0 0.0
        %4016 = vmatpush2.xpose.msra.mxu0 0.0
        %4017 = vmatprep.subr.mxu0 0.0
        %4018 = vmatpush2.xpose.msra.mxu0 0.0
        %4019 = vmatprep.mubr.f32.mxu0 0.0
        %4020 = vmatmul.mubr.f32.gmra.mxu0 %v3947
        %v4021 = vpop.f32.mrf.mxu0
        %v4022 = vadd.f32 0.0, %v4021
        %v4023 = vpop.f32.mrf.mxu0
        %4024 = vdwg.mxu0
        %v4026 = vsel %vm1878, %v3203, 0
        %v4029 = vsel %vm1878, %v3427, 0
        %v4032 = vsel %vm1878, %v3495, 0
        %4034 = vmatprep.subr.mxu0 0.0
        %4035 = vmatpush1.xpose.msra.mxu0 0.0
        %4036 = vmatprep.subr.mxu0 0.0
        %4037 = vmatpush1.xpose.msra.mxu0 0.0
        %4038 = vmatprep.subr.mxu0 0.0
        %4039 = vmatpush1.xpose.msra.mxu0 0.0
        %4040 = vmatprep.subr.mxu0 0.0
        %4041 = vmatpush1.xpose.msra.mxu0 0.0
        %4042 = vmatprep.subr.mxu0 0.0
        %4043 = vmatpush1.xpose.msra.mxu0 0.0
        %4044 = vmatprep.subr.mxu0 0.0
        %4045 = vmatpush1.xpose.msra.mxu0 0.0
        %4046 = vmatprep.subr.mxu0 0.0
        %4047 = vmatpush1.xpose.msra.mxu0 0.0
        %4048 = vmatprep.subr.mxu0 0.0
        %4049 = vmatpush1.xpose.msra.mxu0 0.0
        %4050 = vmatprep.subr.mxu0 0.0
        %4051 = vmatpush1.xpose.msra.mxu0 0.0
        %4052 = vmatprep.subr.mxu0 0.0
        %4053 = vmatpush1.xpose.msra.mxu0 0.0
        %4054 = vmatprep.subr.mxu0 0.0
        %4055 = vmatpush1.xpose.msra.mxu0 0.0
        %4056 = vmatprep.subr.mxu0 0.0
        %4057 = vmatpush1.xpose.msra.mxu0 0.0
        %4058 = vmatprep.subr.mxu0 0.0
        %4059 = vmatpush1.xpose.msra.mxu0 0.0
        %4060 = vmatprep.subr.mxu0 0.0
        %4061 = vmatpush1.xpose.msra.mxu0 0.0
        %4062 = vmatprep.subr.mxu0 0.0
        %4063 = vmatpush1.xpose.msra.mxu0 %v4032
        %4064 = vmatprep.subr.mxu0 0.0
        %4065 = vmatpush1.xpose.msra.mxu0 %v4029
        %4066 = vmatprep.subr.mxu0 0.0
        %4067 = vmatpush2.xpose.msra.mxu0 0.0
        %4068 = vmatprep.subr.mxu0 0.0
        %4069 = vmatpush2.xpose.msra.mxu0 0.0
        %4070 = vmatprep.subr.mxu0 0.0
        %4071 = vmatpush2.xpose.msra.mxu0 0.0
        %4072 = vmatprep.subr.mxu0 0.0
        %4073 = vmatpush2.xpose.msra.mxu0 0.0
        %4074 = vmatprep.subr.mxu0 0.0
        %4075 = vmatpush2.xpose.msra.mxu0 0.0
        %4076 = vmatprep.subr.mxu0 0.0
        %4077 = vmatpush2.xpose.msra.mxu0 0.0
        %4078 = vmatprep.subr.mxu0 0.0
        %4079 = vmatpush2.xpose.msra.mxu0 0.0
        %4080 = vmatprep.subr.mxu0 0.0
        %4081 = vmatpush2.xpose.msra.mxu0 0.0
        %4082 = vmatprep.subr.mxu0 0.0
        %4083 = vmatpush2.xpose.msra.mxu0 0.0
        %4084 = vmatprep.subr.mxu0 0.0
        %4085 = vmatpush2.xpose.msra.mxu0 0.0
        %4086 = vmatprep.subr.mxu0 0.0
        %4087 = vmatpush2.xpose.msra.mxu0 0.0
        %4088 = vmatprep.subr.mxu0 0.0
        %4089 = vmatpush2.xpose.msra.mxu0 0.0
        %4090 = vmatprep.subr.mxu0 0.0
        %4091 = vmatpush2.xpose.msra.mxu0 0.0
        %4092 = vmatprep.subr.mxu0 0.0
        %4093 = vmatpush2.xpose.msra.mxu0 0.0
        %4094 = vmatprep.subr.mxu0 0.0
        %4095 = vmatpush2.xpose.msra.mxu0 0.0
        %4096 = vmatprep.subr.mxu0 0.0
        %4097 = vmatpush2.xpose.msra.mxu0 0.0
        %4098 = vmatprep.mubr.f32.mxu0 0.0
        %4099 = vmatmul.mubr.f32.gmra.mxu0 %v4026
        %v4100 = vpop.f32.mrf.mxu0
        %v4101 = vadd.f32 0.0, %v4100
        %v4102 = vpop.f32.mrf.mxu0
        %4103 = vdwg.mxu0
        %v4104 = vsel %vm1192, 16843009, 0
        %v4105 = vunpack.c.0.s8 %v4104
        %vm4106 = vcmp.ne.s32.totalorder %v4105, 0
        %v4107 = vsel %vm4106, 1, 0
        %vm4108 = vcmp.eq.s32.totalorder %v4107, 1
        %v4109 = vsel %vm4108, %v3864, -1e+30
        %v4110 = vsel %vm4108, %v3943, -1e+30
        %v4111 = vsel %vm4108, %v4022, -1e+30
        %v4112 = vsel %vm4108, %v4101, -1e+30
        %v4113 = vsel %vm2677, %v4109, -inf
        %4114 = vmax.xlane.f32.xlu0 %v4113
        %v4115 = vpop.xlane.xlu0 %4114
        %v4116 = vsel %vm2677, %v4110, -inf
        %4117 = vmax.xlane.f32.xlu0 %v4116
        %v4118 = vpop.xlane.xlu0 %4117
        %v4119 = vsel %vm2677, %v4111, -inf
        %4120 = vmax.xlane.f32.xlu0 %v4119
        %v4121 = vpop.xlane.xlu0 %4120
        %v4122 = vsel %vm2677, %v4112, -inf
        %4123 = vmax.xlane.f32.xlu0 %v4122
        %v4124 = vpop.xlane.xlu0 %4123
        %v4125 = vsub.f32 %v4109, %v4115
        %v4126 = vsub.f32 %v4110, %v4118
        %v4127 = vsub.f32 %v4111, %v4121
        %v4128 = vsub.f32 %v4112, %v4124
        %v4129 = vmul.f32 %v4125, 1.442695
        %v4130 = vpow.pop %v4129
        %v4131 = vmul.f32 %v4126, 1.442695
        %v4132 = vpow.pop %v4131
        %v4133 = vmul.f32 %v4127, 1.442695
        %v4134 = vpow.pop %v4133
        %v4135 = vmul.f32 %v4128, 1.442695
        %v4136 = vpow.pop %v4135
        %v4137 = vsel %vm2677, %v4130, 0.0
        %4138 = vadd.xlane.f32.xlu0 %v4137
        %v4139 = vpop.xlane.xlu0 %4138
        %v4140 = vsel %vm2677, %v4132, 0.0
        %4141 = vadd.xlane.f32.xlu0 %v4140
        %v4142 = vpop.xlane.xlu0 %4141
        %v4143 = vsel %vm2677, %v4134, 0.0
        %4144 = vadd.xlane.f32.xlu0 %v4143
        %v4145 = vpop.xlane.xlu0 %4144
        %v4146 = vsel %vm2677, %v4136, 0.0
        %4147 = vadd.xlane.f32.xlu0 %v4146
        %v4148 = vpop.xlane.xlu0 %4147
        %v4149 = vrcp.pop %v4139
        %v4150 = vmul.f32 %v4130, %v4149
        %v4151 = vrcp.pop %v4142
        %v4152 = vmul.f32 %v4132, %v4151
        %v4153 = vrcp.pop %v4145
        %v4154 = vmul.f32 %v4134, %v4153
        %v4155 = vrcp.pop %v4148
        %v4156 = vmul.f32 %v4136, %v4155
        %v4158 = vsel %vm2677, %v4150, 0
        %4160 = vmatprep.subr.mxu0 0.0
        %4161 = vmatpush1.msra.mxu0 0.0
        %4162 = vmatprep.subr.mxu0 0.0
        %4163 = vmatpush1.msra.mxu0 0.0
        %4164 = vmatprep.subr.mxu0 0.0
        %4165 = vmatpush1.msra.mxu0 0.0
        %4166 = vmatprep.subr.mxu0 0.0
        %4167 = vmatpush1.msra.mxu0 0.0
        %4168 = vmatprep.subr.mxu0 0.0
        %4169 = vmatpush1.msra.mxu0 0.0
        %4170 = vmatprep.subr.mxu0 0.0
        %4171 = vmatpush1.msra.mxu0 0.0
        %4172 = vmatprep.subr.mxu0 0.0
        %4173 = vmatpush1.msra.mxu0 0.0
        %4174 = vmatprep.subr.mxu0 0.0
        %4175 = vmatpush1.msra.mxu0 0.0
        %4176 = vmatprep.subr.mxu0 0.0
        %4177 = vmatpush1.msra.mxu0 0.0
        %4178 = vmatprep.subr.mxu0 0.0
        %4179 = vmatpush1.msra.mxu0 0.0
        %4180 = vmatprep.subr.mxu0 0.0
        %4181 = vmatpush1.msra.mxu0 0.0
        %4182 = vmatprep.subr.mxu0 0.0
        %4183 = vmatpush1.msra.mxu0 0.0
        %4184 = vmatprep.subr.mxu0 0.0
        %4185 = vmatpush1.msra.mxu0 0.0
        %4186 = vmatprep.subr.mxu0 0.0
        %4187 = vmatpush1.msra.mxu0 0.0
        %4188 = vmatprep.subr.mxu0 0.0
        %4189 = vmatpush1.msra.mxu0 %v3784
        %4190 = vmatprep.subr.mxu0 0.0
        %4191 = vmatpush1.msra.mxu0 %v3716
        %4192 = vmatprep.subr.mxu0 0.0
        %4193 = vmatpush2.msra.mxu0 0.0
        %4194 = vmatprep.subr.mxu0 0.0
        %4195 = vmatpush2.msra.mxu0 0.0
        %4196 = vmatprep.subr.mxu0 0.0
        %4197 = vmatpush2.msra.mxu0 0.0
        %4198 = vmatprep.subr.mxu0 0.0
        %4199 = vmatpush2.msra.mxu0 0.0
        %4200 = vmatprep.subr.mxu0 0.0
        %4201 = vmatpush2.msra.mxu0 0.0
        %4202 = vmatprep.subr.mxu0 0.0
        %4203 = vmatpush2.msra.mxu0 0.0
        %4204 = vmatprep.subr.mxu0 0.0
        %4205 = vmatpush2.msra.mxu0 0.0
        %4206 = vmatprep.subr.mxu0 0.0
        %4207 = vmatpush2.msra.mxu0 0.0
        %4208 = vmatprep.subr.mxu0 0.0
        %4209 = vmatpush2.msra.mxu0 0.0
        %4210 = vmatprep.subr.mxu0 0.0
        %4211 = vmatpush2.msra.mxu0 0.0
        %4212 = vmatprep.subr.mxu0 0.0
        %4213 = vmatpush2.msra.mxu0 0.0
        %4214 = vmatprep.subr.mxu0 0.0
        %4215 = vmatpush2.msra.mxu0 0.0
        %4216 = vmatprep.subr.mxu0 0.0
        %4217 = vmatpush2.msra.mxu0 0.0
        %4218 = vmatprep.subr.mxu0 0.0
        %4219 = vmatpush2.msra.mxu0 0.0
        %4220 = vmatprep.subr.mxu0 0.0
        %4221 = vmatpush2.msra.mxu0 0.0
        %4222 = vmatprep.subr.mxu0 0.0
        %4223 = vmatpush2.msra.mxu0 0.0
        %4224 = vmatprep.mubr.f32.mxu0 0.0
        %4225 = vmatmul.mubr.f32.gmra.mxu0 %v4158
        %v4226 = vpop.f32.mrf.mxu0
        %v4227 = vadd.f32 0.0, %v4226
        %v4228 = vpop.f32.mrf.mxu0
        %4229 = vdwg.mxu0
        %v4231 = vsel %vm2677, %v4152, 0
        %4233 = vmatprep.subr.mxu0 0.0
        %4234 = vmatpush1.msra.mxu0 0.0
        %4235 = vmatprep.subr.mxu0 0.0
        %4236 = vmatpush1.msra.mxu0 0.0
        %4237 = vmatprep.subr.mxu0 0.0
        %4238 = vmatpush1.msra.mxu0 0.0
        %4239 = vmatprep.subr.mxu0 0.0
        %4240 = vmatpush1.msra.mxu0 0.0
        %4241 = vmatprep.subr.mxu0 0.0
        %4242 = vmatpush1.msra.mxu0 0.0
        %4243 = vmatprep.subr.mxu0 0.0
        %4244 = vmatpush1.msra.mxu0 0.0
        %4245 = vmatprep.subr.mxu0 0.0
        %4246 = vmatpush1.msra.mxu0 0.0
        %4247 = vmatprep.subr.mxu0 0.0
        %4248 = vmatpush1.msra.mxu0 0.0
        %4249 = vmatprep.subr.mxu0 0.0
        %4250 = vmatpush1.msra.mxu0 0.0
        %4251 = vmatprep.subr.mxu0 0.0
        %4252 = vmatpush1.msra.mxu0 0.0
        %4253 = vmatprep.subr.mxu0 0.0
        %4254 = vmatpush1.msra.mxu0 0.0
        %4255 = vmatprep.subr.mxu0 0.0
        %4256 = vmatpush1.msra.mxu0 0.0
        %4257 = vmatprep.subr.mxu0 0.0
        %4258 = vmatpush1.msra.mxu0 0.0
        %4259 = vmatprep.subr.mxu0 0.0
        %4260 = vmatpush1.msra.mxu0 0.0
        %4261 = vmatprep.subr.mxu0 0.0
        %4262 = vmatpush1.msra.mxu0 %v3785
        %4263 = vmatprep.subr.mxu0 0.0
        %4264 = vmatpush1.msra.mxu0 %v3717
        %4265 = vmatprep.subr.mxu0 0.0
        %4266 = vmatpush2.msra.mxu0 0.0
        %4267 = vmatprep.subr.mxu0 0.0
        %4268 = vmatpush2.msra.mxu0 0.0
        %4269 = vmatprep.subr.mxu0 0.0
        %4270 = vmatpush2.msra.mxu0 0.0
        %4271 = vmatprep.subr.mxu0 0.0
        %4272 = vmatpush2.msra.mxu0 0.0
        %4273 = vmatprep.subr.mxu0 0.0
        %4274 = vmatpush2.msra.mxu0 0.0
        %4275 = vmatprep.subr.mxu0 0.0
        %4276 = vmatpush2.msra.mxu0 0.0
        %4277 = vmatprep.subr.mxu0 0.0
        %4278 = vmatpush2.msra.mxu0 0.0
        %4279 = vmatprep.subr.mxu0 0.0
        %4280 = vmatpush2.msra.mxu0 0.0
        %4281 = vmatprep.subr.mxu0 0.0
        %4282 = vmatpush2.msra.mxu0 0.0
        %4283 = vmatprep.subr.mxu0 0.0
        %4284 = vmatpush2.msra.mxu0 0.0
        %4285 = vmatprep.subr.mxu0 0.0
        %4286 = vmatpush2.msra.mxu0 0.0
        %4287 = vmatprep.subr.mxu0 0.0
        %4288 = vmatpush2.msra.mxu0 0.0
        %4289 = vmatprep.subr.mxu0 0.0
        %4290 = vmatpush2.msra.mxu0 0.0
        %4291 = vmatprep.subr.mxu0 0.0
        %4292 = vmatpush2.msra.mxu0 0.0
        %4293 = vmatprep.subr.mxu0 0.0
        %4294 = vmatpush2.msra.mxu0 0.0
        %4295 = vmatprep.subr.mxu0 0.0
        %4296 = vmatpush2.msra.mxu0 0.0
        %4297 = vmatprep.mubr.f32.mxu0 0.0
        %4298 = vmatmul.mubr.f32.gmra.mxu0 %v4231
        %v4299 = vpop.f32.mrf.mxu0
        %v4300 = vadd.f32 0.0, %v4299
        %v4301 = vpop.f32.mrf.mxu0
        %4302 = vdwg.mxu0
        %v4304 = vsel %vm2677, %v4154, 0
        %4306 = vmatprep.subr.mxu0 0.0
        %4307 = vmatpush1.msra.mxu0 0.0
        %4308 = vmatprep.subr.mxu0 0.0
        %4309 = vmatpush1.msra.mxu0 0.0
        %4310 = vmatprep.subr.mxu0 0.0
        %4311 = vmatpush1.msra.mxu0 0.0
        %4312 = vmatprep.subr.mxu0 0.0
        %4313 = vmatpush1.msra.mxu0 0.0
        %4314 = vmatprep.subr.mxu0 0.0
        %4315 = vmatpush1.msra.mxu0 0.0
        %4316 = vmatprep.subr.mxu0 0.0
        %4317 = vmatpush1.msra.mxu0 0.0
        %4318 = vmatprep.subr.mxu0 0.0
        %4319 = vmatpush1.msra.mxu0 0.0
        %4320 = vmatprep.subr.mxu0 0.0
        %4321 = vmatpush1.msra.mxu0 0.0
        %4322 = vmatprep.subr.mxu0 0.0
        %4323 = vmatpush1.msra.mxu0 0.0
        %4324 = vmatprep.subr.mxu0 0.0
        %4325 = vmatpush1.msra.mxu0 0.0
        %4326 = vmatprep.subr.mxu0 0.0
        %4327 = vmatpush1.msra.mxu0 0.0
        %4328 = vmatprep.subr.mxu0 0.0
        %4329 = vmatpush1.msra.mxu0 0.0
        %4330 = vmatprep.subr.mxu0 0.0
        %4331 = vmatpush1.msra.mxu0 0.0
        %4332 = vmatprep.subr.mxu0 0.0
        %4333 = vmatpush1.msra.mxu0 0.0
        %4334 = vmatprep.subr.mxu0 0.0
        %4335 = vmatpush1.msra.mxu0 %v3786
        %4336 = vmatprep.subr.mxu0 0.0
        %4337 = vmatpush1.msra.mxu0 %v3718
        %4338 = vmatprep.subr.mxu0 0.0
        %4339 = vmatpush2.msra.mxu0 0.0
        %4340 = vmatprep.subr.mxu0 0.0
        %4341 = vmatpush2.msra.mxu0 0.0
        %4342 = vmatprep.subr.mxu0 0.0
        %4343 = vmatpush2.msra.mxu0 0.0
        %4344 = vmatprep.subr.mxu0 0.0
        %4345 = vmatpush2.msra.mxu0 0.0
        %4346 = vmatprep.subr.mxu0 0.0
        %4347 = vmatpush2.msra.mxu0 0.0
        %4348 = vmatprep.subr.mxu0 0.0
        %4349 = vmatpush2.msra.mxu0 0.0
        %4350 = vmatprep.subr.mxu0 0.0
        %4351 = vmatpush2.msra.mxu0 0.0
        %4352 = vmatprep.subr.mxu0 0.0
        %4353 = vmatpush2.msra.mxu0 0.0
        %4354 = vmatprep.subr.mxu0 0.0
        %4355 = vmatpush2.msra.mxu0 0.0
        %4356 = vmatprep.subr.mxu0 0.0
        %4357 = vmatpush2.msra.mxu0 0.0
        %4358 = vmatprep.subr.mxu0 0.0
        %4359 = vmatpush2.msra.mxu0 0.0
        %4360 = vmatprep.subr.mxu0 0.0
        %4361 = vmatpush2.msra.mxu0 0.0
        %4362 = vmatprep.subr.mxu0 0.0
        %4363 = vmatpush2.msra.mxu0 0.0
        %4364 = vmatprep.subr.mxu0 0.0
        %4365 = vmatpush2.msra.mxu0 0.0
        %4366 = vmatprep.subr.mxu0 0.0
        %4367 = vmatpush2.msra.mxu0 0.0
        %4368 = vmatprep.subr.mxu0 0.0
        %4369 = vmatpush2.msra.mxu0 0.0
        %4370 = vmatprep.mubr.f32.mxu0 0.0
        %4371 = vmatmul.mubr.f32.gmra.mxu0 %v4304
        %v4372 = vpop.f32.mrf.mxu0
        %v4373 = vadd.f32 0.0, %v4372
        %v4374 = vpop.f32.mrf.mxu0
        %4375 = vdwg.mxu0
        %v4377 = vsel %vm2677, %v4156, 0
        %4379 = vmatprep.subr.mxu0 0.0
        %4380 = vmatpush1.msra.mxu0 0.0
        %4381 = vmatprep.subr.mxu0 0.0
        %4382 = vmatpush1.msra.mxu0 0.0
        %4383 = vmatprep.subr.mxu0 0.0
        %4384 = vmatpush1.msra.mxu0 0.0
        %4385 = vmatprep.subr.mxu0 0.0
        %4386 = vmatpush1.msra.mxu0 0.0
        %4387 = vmatprep.subr.mxu0 0.0
        %4388 = vmatpush1.msra.mxu0 0.0
        %4389 = vmatprep.subr.mxu0 0.0
        %4390 = vmatpush1.msra.mxu0 0.0
        %4391 = vmatprep.subr.mxu0 0.0
        %4392 = vmatpush1.msra.mxu0 0.0
        %4393 = vmatprep.subr.mxu0 0.0
        %4394 = vmatpush1.msra.mxu0 0.0
        %4395 = vmatprep.subr.mxu0 0.0
        %4396 = vmatpush1.msra.mxu0 0.0
        %4397 = vmatprep.subr.mxu0 0.0
        %4398 = vmatpush1.msra.mxu0 0.0
        %4399 = vmatprep.subr.mxu0 0.0
        %4400 = vmatpush1.msra.mxu0 0.0
        %4401 = vmatprep.subr.mxu0 0.0
        %4402 = vmatpush1.msra.mxu0 0.0
        %4403 = vmatprep.subr.mxu0 0.0
        %4404 = vmatpush1.msra.mxu0 0.0
        %4405 = vmatprep.subr.mxu0 0.0
        %4406 = vmatpush1.msra.mxu0 0.0
        %4407 = vmatprep.subr.mxu0 0.0
        %4408 = vmatpush1.msra.mxu0 %v3787
        %4409 = vmatprep.subr.mxu0 0.0
        %4410 = vmatpush1.msra.mxu0 %v3719
        %4411 = vmatprep.subr.mxu0 0.0
        %4412 = vmatpush2.msra.mxu0 0.0
        %4413 = vmatprep.subr.mxu0 0.0
        %4414 = vmatpush2.msra.mxu0 0.0
        %4415 = vmatprep.subr.mxu0 0.0
        %4416 = vmatpush2.msra.mxu0 0.0
        %4417 = vmatprep.subr.mxu0 0.0
        %4418 = vmatpush2.msra.mxu0 0.0
        %4419 = vmatprep.subr.mxu0 0.0
        %4420 = vmatpush2.msra.mxu0 0.0
        %4421 = vmatprep.subr.mxu0 0.0
        %4422 = vmatpush2.msra.mxu0 0.0
        %4423 = vmatprep.subr.mxu0 0.0
        %4424 = vmatpush2.msra.mxu0 0.0
        %4425 = vmatprep.subr.mxu0 0.0
        %4426 = vmatpush2.msra.mxu0 0.0
        %4427 = vmatprep.subr.mxu0 0.0
        %4428 = vmatpush2.msra.mxu0 0.0
        %4429 = vmatprep.subr.mxu0 0.0
        %4430 = vmatpush2.msra.mxu0 0.0
        %4431 = vmatprep.subr.mxu0 0.0
        %4432 = vmatpush2.msra.mxu0 0.0
        %4433 = vmatprep.subr.mxu0 0.0
        %4434 = vmatpush2.msra.mxu0 0.0
        %4435 = vmatprep.subr.mxu0 0.0
        %4436 = vmatpush2.msra.mxu0 0.0
        %4437 = vmatprep.subr.mxu0 0.0
        %4438 = vmatpush2.msra.mxu0 0.0
        %4439 = vmatprep.subr.mxu0 0.0
        %4440 = vmatpush2.msra.mxu0 0.0
        %4441 = vmatprep.subr.mxu0 0.0
        %4442 = vmatpush2.msra.mxu0 0.0
        %4443 = vmatprep.mubr.f32.mxu0 0.0
        %4444 = vmatmul.mubr.f32.gmra.mxu0 %v4377
        %v4445 = vpop.f32.mrf.mxu0
        %v4446 = vadd.f32 0.0, %v4445
        %v4447 = vpop.f32.mrf.mxu0
        %4448 = vdwg.mxu0
        %v4449 = vcombine.low %v4227, %v4373
        %v4450 = vcombine.high %v4227, %v4373
        %v4452 = vunpack.c.l.s4 1983009808
        %v4453 = vunpack.c.0.s8 %v4452
        %v4454 = vlaneseq
        %v4455 = vshrl.u32 %v4454, 7
        %v4456 = vsub.s32 %v4453, %v4455
        %v4457 = vrot.slane %v4449, %v4456
        %v4459 = vunpack.c.l.s4 1983009808
        %v4460 = vunpack.c.0.s8 %v4459
        %v4461 = vlaneseq
        %v4462 = vshrl.u32 %v4461, 7
        %v4463 = vsub.s32 %v4460, %v4462
        %v4464 = vrot.slane %v4450, %v4463
        %v4465 = vcombine.low %v4300, %v4446
        %v4466 = vcombine.high %v4300, %v4446
        %v4468 = vunpack.c.l.s4 1983009808
        %v4469 = vunpack.c.0.s8 %v4468
        %v4470 = vlaneseq
        %v4471 = vshrl.u32 %v4470, 7
        %v4472 = vsub.s32 %v4469, %v4471
        %v4473 = vrot.slane %v4465, %v4472
        %v4475 = vunpack.c.l.s4 1983009808
        %v4476 = vunpack.c.0.s8 %v4475
        %v4477 = vlaneseq
        %v4478 = vshrl.u32 %v4477, 7
        %v4479 = vsub.s32 %v4476, %v4478
        %v4480 = vrot.slane %v4466, %v4479
        %v4481 = vcombine.low %v4457, %v4473
        %v4482 = vcombine.high %v4457, %v4473
        %v4484 = vunpack.c.l.s4 1934713408
        %v4485 = vunpack.c.0.s8 %v4484
        %v4486 = vlaneseq
        %v4487 = vshrl.u32 %v4486, 7
        %v4488 = vsub.s32 %v4485, %v4487
        %v4489 = vrot.slane %v4481, %v4488
        %v4491 = vunpack.c.l.s4 1934713408
        %v4492 = vunpack.c.0.s8 %v4491
        %v4493 = vlaneseq
        %v4494 = vshrl.u32 %v4493, 7
        %v4495 = vsub.s32 %v4492, %v4494
        %v4496 = vrot.slane %v4482, %v4495
        %v4497 = vcombine.low %v4464, %v4480
        %v4498 = vcombine.high %v4464, %v4480
        %v4500 = vunpack.c.l.s4 1934713408
        %v4501 = vunpack.c.0.s8 %v4500
        %v4502 = vlaneseq
        %v4503 = vshrl.u32 %v4502, 7
        %v4504 = vsub.s32 %v4501, %v4503
        %v4505 = vrot.slane %v4497, %v4504
        %v4507 = vunpack.c.l.s4 1934713408
        %v4508 = vunpack.c.0.s8 %v4507
        %v4509 = vlaneseq
        %v4510 = vshrl.u32 %v4509, 7
        %v4511 = vsub.s32 %v4508, %v4510
        %v4512 = vrot.slane %v4498, %v4511
        %v4513 = vcombine.high %v4489, 0.0
        %v4514 = vcombine.high %v4496, 0.0
        %v4515 = vcombine.high %v4505, 0.0
        %v4516 = vcombine.high %v4512, 0.0
        %v4517 = vcombine.low %v4489, %v4496
        %v4519 = vunpack.c.l.s4 1983009808
        %v4520 = vunpack.c.0.s8 %v4519
        %v4521 = vlaneseq
        %v4522 = vshrl.u32 %v4521, 7
        %v4523 = vsub.s32 %v4520, %v4522
        %v4524 = vrot.slane %v4517, %v4523
        %v4525 = vcombine.low %v4513, %v4514
        %v4527 = vunpack.c.l.s4 1983009808
        %v4528 = vunpack.c.0.s8 %v4527
        %v4529 = vlaneseq
        %v4530 = vshrl.u32 %v4529, 7
        %v4531 = vsub.s32 %v4528, %v4530
        %v4532 = vrot.slane %v4525, %v4531
        %v4533 = vcombine.low %v4505, %v4512
        %v4535 = vunpack.c.l.s4 1983009808
        %v4536 = vunpack.c.0.s8 %v4535
        %v4537 = vlaneseq
        %v4538 = vshrl.u32 %v4537, 7
        %v4539 = vsub.s32 %v4536, %v4538
        %v4540 = vrot.slane %v4533, %v4539
        %v4541 = vcombine.low %v4515, %v4516
        %v4543 = vunpack.c.l.s4 1983009808
        %v4544 = vunpack.c.0.s8 %v4543
        %v4545 = vlaneseq
        %v4546 = vshrl.u32 %v4545, 7
        %v4547 = vsub.s32 %v4544, %v4546
        %v4548 = vrot.slane %v4541, %v4547
        %v4549 = vcombine.low %v4524, %v4532
        %v4550 = vcombine.high %v4524, %v4532
        %v4552 = vunpack.c.l.s4 1934713408
        %v4553 = vunpack.c.0.s8 %v4552
        %v4554 = vlaneseq
        %v4555 = vshrl.u32 %v4554, 7
        %v4556 = vsub.s32 %v4553, %v4555
        %v4557 = vrot.slane %v4549, %v4556
        %v4559 = vunpack.c.l.s4 1934713408
        %v4560 = vunpack.c.0.s8 %v4559
        %v4561 = vlaneseq
        %v4562 = vshrl.u32 %v4561, 7
        %v4563 = vsub.s32 %v4560, %v4562
        %v4564 = vrot.slane %v4550, %v4563
        %v4565 = vcombine.low %v4540, %v4548
        %v4566 = vcombine.high %v4540, %v4548
        %v4568 = vunpack.c.l.s4 1934713408
        %v4569 = vunpack.c.0.s8 %v4568
        %v4570 = vlaneseq
        %v4571 = vshrl.u32 %v4570, 7
        %v4572 = vsub.s32 %v4569, %v4571
        %v4573 = vrot.slane %v4565, %v4572
        %v4575 = vunpack.c.l.s4 1934713408
        %v4576 = vunpack.c.0.s8 %v4575
        %v4577 = vlaneseq
        %v4578 = vshrl.u32 %v4577, 7
        %v4579 = vsub.s32 %v4576, %v4578
        %v4580 = vrot.slane %v4566, %v4579
        %v4581 = vcombine.low %v4557, %v4573
        %v4582 = vcombine.high %v4557, %v4573
        %v4583 = vcombine.low %v4564, %v4580
        %v4584 = vcombine.high %v4564, %v4580
        %4586 = vrot.lane.b32.xlu0 %v4582, 8
        %v4587 = vpop.permute.xlu0 %4586
        %4590 = vrot.lane.b32.xlu0 %v4583, 16
        %v4591 = vpop.permute.xlu0 %4590
        %4594 = vrot.lane.b32.xlu0 %v4584, 24
        %v4595 = vpop.permute.xlu0 %4594
        %v4597 = vsel %vm1878, %v4581, %v4587
        %v4598 = vsel %vm2677, %v4597, %v4591
        %v4599 = vsel %vm2679, %v4598, %v4595
        %v4600 = vld [vmem:[#allocation19] sm:$0xff]
        %v4601 = vld [vmem:[#allocation19 + $0x8] sm:$0xff]
        %v4602 = vld [vmem:[#allocation19 + $0x10] sm:$0xff]
        %v4603 = vld [vmem:[#allocation19 + $0x18] sm:$0xff]
        %v4604 = vld [vmem:[#allocation20] sm:$0x1]
        %v4606 = vlaneseq
        %v4607 = vshrl.u32 %v4606, 7
        %v4608 = vsub.s32 0, %v4607
        %v4609 = vrot.slane %v4604, %v4608
        %v4612 = vsel %vm1204, %v4599, 0
        %4614 = vmatprep.subr.mxu0 0.0
        %4615 = vmatpush1.msra.mxu0 0.0
        %4616 = vmatprep.subr.mxu0 0.0
        %4617 = vmatpush1.msra.mxu0 0.0
        %4618 = vmatprep.subr.mxu0 0.0
        %4619 = vmatpush1.msra.mxu0 0.0
        %4620 = vmatprep.subr.mxu0 0.0
        %4621 = vmatpush1.msra.mxu0 0.0
        %4622 = vmatprep.subr.mxu0 0.0
        %4623 = vmatpush1.msra.mxu0 0.0
        %4624 = vmatprep.subr.mxu0 0.0
        %4625 = vmatpush1.msra.mxu0 0.0
        %4626 = vmatprep.subr.mxu0 0.0
        %4627 = vmatpush1.msra.mxu0 0.0
        %4628 = vmatprep.subr.mxu0 0.0
        %4629 = vmatpush1.msra.mxu0 0.0
        %4630 = vmatprep.subr.mxu0 0.0
        %4631 = vmatpush1.msra.mxu0 0.0
        %4632 = vmatprep.subr.mxu0 0.0
        %4633 = vmatpush1.msra.mxu0 0.0
        %4634 = vmatprep.subr.mxu0 0.0
        %4635 = vmatpush1.msra.mxu0 0.0
        %4636 = vmatprep.subr.mxu0 0.0
        %4637 = vmatpush1.msra.mxu0 0.0
        %4638 = vmatprep.subr.mxu0 0.0
        %4639 = vmatpush1.msra.mxu0 %v4603
        %4640 = vmatprep.subr.mxu0 0.0
        %4641 = vmatpush1.msra.mxu0 %v4602
        %4642 = vmatprep.subr.mxu0 0.0
        %4643 = vmatpush1.msra.mxu0 %v4601
        %4644 = vmatprep.subr.mxu0 0.0
        %4645 = vmatpush1.msra.mxu0 %v4600
        %4646 = vmatprep.subr.mxu0 0.0
        %4647 = vmatpush2.msra.mxu0 0.0
        %4648 = vmatprep.subr.mxu0 0.0
        %4649 = vmatpush2.msra.mxu0 0.0
        %4650 = vmatprep.subr.mxu0 0.0
        %4651 = vmatpush2.msra.mxu0 0.0
        %4652 = vmatprep.subr.mxu0 0.0
        %4653 = vmatpush2.msra.mxu0 0.0
        %4654 = vmatprep.subr.mxu0 0.0
        %4655 = vmatpush2.msra.mxu0 0.0
        %4656 = vmatprep.subr.mxu0 0.0
        %4657 = vmatpush2.msra.mxu0 0.0
        %4658 = vmatprep.subr.mxu0 0.0
        %4659 = vmatpush2.msra.mxu0 0.0
        %4660 = vmatprep.subr.mxu0 0.0
        %4661 = vmatpush2.msra.mxu0 0.0
        %4662 = vmatprep.subr.mxu0 0.0
        %4663 = vmatpush2.msra.mxu0 0.0
        %4664 = vmatprep.subr.mxu0 0.0
        %4665 = vmatpush2.msra.mxu0 0.0
        %4666 = vmatprep.subr.mxu0 0.0
        %4667 = vmatpush2.msra.mxu0 0.0
        %4668 = vmatprep.subr.mxu0 0.0
        %4669 = vmatpush2.msra.mxu0 0.0
        %4670 = vmatprep.subr.mxu0 0.0
        %4671 = vmatpush2.msra.mxu0 0.0
        %4672 = vmatprep.subr.mxu0 0.0
        %4673 = vmatpush2.msra.mxu0 0.0
        %4674 = vmatprep.subr.mxu0 0.0
        %4675 = vmatpush2.msra.mxu0 0.0
        %4676 = vmatprep.subr.mxu0 0.0
        %4677 = vmatpush2.msra.mxu0 0.0
        %4678 = vmatprep.mubr.f32.mxu0 0.0
        %4679 = vmatmul.mubr.f32.gmra.mxu0 %v4612
        %v4680 = vpop.f32.mrf.mxu0
        %v4681 = vadd.f32 %v4609, %v4680
        %v4682 = vpop.f32.mrf.mxu0
        %4683 = vdwg.mxu0
        %v4684 = vadd.f32 %v2795, %v4681
        %v4685 = vsel %vm1204, %v4684, 0.0
        %4686 = vadd.xlane.f32.xlu0 %v4685
        %v4687 = vpop.xlane.xlu0 %4686
        %v4688 = vmul.f32 %v4687, %v2769
        %v4689 = vsub.f32 %v4684, %v4688
        %v4690 = vmul.f32 %v4689, %v4689
        %v4691 = vsel %vm1204, %v4690, 0.0
        %4692 = vadd.xlane.f32.xlu0 %v4691
        %v4693 = vpop.xlane.xlu0 %4692
        %v4694 = vmul.f32 %v4693, %v2769
        %v4695 = vadd.f32 %v4694, 1e-05
        %v4696 = vrsqrt.pop %v4695
        %v4697 = vmul.f32 %v4689, %v4696
        %v4698 = vld [vmem:[%s53] sm:$0x1]
        %v4700 = vlaneseq
        %v4701 = vshrl.u32 %v4700, 7
        %v4702 = vsub.s32 0, %v4701
        %v4703 = vrot.slane %v4698, %v4702
        %v4705 = vmul.f32 %v4697, %v4703
        %v4706 = vld [vmem:[%s55] sm:$0x1]
        %v4708 = vlaneseq
        %v4709 = vshrl.u32 %v4708, 7
        %v4710 = vsub.s32 0, %v4709
        %v4711 = vrot.slane %v4706, %v4710
        %v4713 = vadd.f32 %v4705, %v4711
        %v4714 = vld [vmem:[#allocation22] sm:$0xff]
        %v4715 = vld [vmem:[#allocation22 + $0x8] sm:$0xff]
        %v4716 = vld [vmem:[#allocation22 + $0x10] sm:$0xff]
        %v4717 = vld [vmem:[#allocation22 + $0x18] sm:$0xff]
        %v4718 = vld [vmem:[#allocation23] sm:$0x1]
        %v4720 = vlaneseq
        %v4721 = vshrl.u32 %v4720, 7
        %v4722 = vsub.s32 0, %v4721
        %v4723 = vrot.slane %v4718, %v4722
        %v4726 = vsel %vm1204, %v4713, 0
        %4728 = vmatprep.subr.mxu0 0.0
        %4729 = vmatpush1.msra.mxu0 0.0
        %4730 = vmatprep.subr.mxu0 0.0
        %4731 = vmatpush1.msra.mxu0 0.0
        %4732 = vmatprep.subr.mxu0 0.0
        %4733 = vmatpush1.msra.mxu0 0.0
        %4734 = vmatprep.subr.mxu0 0.0
        %4735 = vmatpush1.msra.mxu0 0.0
        %4736 = vmatprep.subr.mxu0 0.0
        %4737 = vmatpush1.msra.mxu0 0.0
        %4738 = vmatprep.subr.mxu0 0.0
        %4739 = vmatpush1.msra.mxu0 0.0
        %4740 = vmatprep.subr.mxu0 0.0
        %4741 = vmatpush1.msra.mxu0 0.0
        %4742 = vmatprep.subr.mxu0 0.0
        %4743 = vmatpush1.msra.mxu0 0.0
        %4744 = vmatprep.subr.mxu0 0.0
        %4745 = vmatpush1.msra.mxu0 0.0
        %4746 = vmatprep.subr.mxu0 0.0
        %4747 = vmatpush1.msra.mxu0 0.0
        %4748 = vmatprep.subr.mxu0 0.0
        %4749 = vmatpush1.msra.mxu0 0.0
        %4750 = vmatprep.subr.mxu0 0.0
        %4751 = vmatpush1.msra.mxu0 0.0
        %4752 = vmatprep.subr.mxu0 0.0
        %4753 = vmatpush1.msra.mxu0 %v4717
        %4754 = vmatprep.subr.mxu0 0.0
        %4755 = vmatpush1.msra.mxu0 %v4716
        %4756 = vmatprep.subr.mxu0 0.0
        %4757 = vmatpush1.msra.mxu0 %v4715
        %4758 = vmatprep.subr.mxu0 0.0
        %4759 = vmatpush1.msra.mxu0 %v4714
        %4760 = vmatprep.subr.mxu0 0.0
        %4761 = vmatpush2.msra.mxu0 0.0
        %4762 = vmatprep.subr.mxu0 0.0
        %4763 = vmatpush2.msra.mxu0 0.0
        %4764 = vmatprep.subr.mxu0 0.0
        %4765 = vmatpush2.msra.mxu0 0.0
        %4766 = vmatprep.subr.mxu0 0.0
        %4767 = vmatpush2.msra.mxu0 0.0
        %4768 = vmatprep.subr.mxu0 0.0
        %4769 = vmatpush2.msra.mxu0 0.0
        %4770 = vmatprep.subr.mxu0 0.0
        %4771 = vmatpush2.msra.mxu0 0.0
        %4772 = vmatprep.subr.mxu0 0.0
        %4773 = vmatpush2.msra.mxu0 0.0
        %4774 = vmatprep.subr.mxu0 0.0
        %4775 = vmatpush2.msra.mxu0 0.0
        %4776 = vmatprep.subr.mxu0 0.0
        %4777 = vmatpush2.msra.mxu0 0.0
        %4778 = vmatprep.subr.mxu0 0.0
        %4779 = vmatpush2.msra.mxu0 0.0
        %4780 = vmatprep.subr.mxu0 0.0
        %4781 = vmatpush2.msra.mxu0 0.0
        %4782 = vmatprep.subr.mxu0 0.0
        %4783 = vmatpush2.msra.mxu0 0.0
        %4784 = vmatprep.subr.mxu0 0.0
        %4785 = vmatpush2.msra.mxu0 0.0
        %4786 = vmatprep.subr.mxu0 0.0
        %4787 = vmatpush2.msra.mxu0 0.0
        %4788 = vmatprep.subr.mxu0 0.0
        %4789 = vmatpush2.msra.mxu0 0.0
        %4790 = vmatprep.subr.mxu0 0.0
        %4791 = vmatpush2.msra.mxu0 0.0
        %4792 = vmatprep.mubr.f32.mxu0 0.0
        %4793 = vmatmul.mubr.f32.gmra.mxu0 %v4726
        %v4794 = vpop.f32.mrf.mxu0
        %v4795 = vadd.f32 %v4723, %v4794
        %v4796 = vpop.f32.mrf.mxu0
        %4797 = vdwg.mxu0
        %v4798 = vmax.f32 %v4795, 0.0
        %v4799 = vld [vmem:[%s45] sm:$0xff]
        %v4800 = vld [vmem:[%s45 + $0x8] sm:$0xff]
        %v4801 = vld [vmem:[%s45 + $0x10] sm:$0xff]
        %v4802 = vld [vmem:[%s45 + $0x18] sm:$0xff]
        %v4803 = vld [vmem:[%s45 + $0x20] sm:$0xff]
        %v4804 = vld [vmem:[%s45 + $0x28] sm:$0xff]
        %v4805 = vld [vmem:[%s45 + $0x30] sm:$0xff]
        %v4806 = vld [vmem:[%s45 + $0x38] sm:$0xff]
        %v4807 = vld [vmem:[%s47] sm:$0x1]
        %v4809 = vlaneseq
        %v4810 = vshrl.u32 %v4809, 7
        %v4811 = vsub.s32 0, %v4810
        %v4812 = vrot.slane %v4807, %v4811
        %vm4814 = vcmask 523264
        %v4816 = vsel %vm4814, %v4798, 0
        %4818 = vmatprep.subr.mxu0 0.0
        %4819 = vmatpush1.msra.mxu0 0.0
        %4820 = vmatprep.subr.mxu0 0.0
        %4821 = vmatpush1.msra.mxu0 0.0
        %4822 = vmatprep.subr.mxu0 0.0
        %4823 = vmatpush1.msra.mxu0 0.0
        %4824 = vmatprep.subr.mxu0 0.0
        %4825 = vmatpush1.msra.mxu0 0.0
        %4826 = vmatprep.subr.mxu0 0.0
        %4827 = vmatpush1.msra.mxu0 0.0
        %4828 = vmatprep.subr.mxu0 0.0
        %4829 = vmatpush1.msra.mxu0 0.0
        %4830 = vmatprep.subr.mxu0 0.0
        %4831 = vmatpush1.msra.mxu0 0.0
        %4832 = vmatprep.subr.mxu0 0.0
        %4833 = vmatpush1.msra.mxu0 0.0
        %4834 = vmatprep.subr.mxu0 0.0
        %4835 = vmatpush1.msra.mxu0 %v4806
        %4836 = vmatprep.subr.mxu0 0.0
        %4837 = vmatpush1.msra.mxu0 %v4805
        %4838 = vmatprep.subr.mxu0 0.0
        %4839 = vmatpush1.msra.mxu0 %v4804
        %4840 = vmatprep.subr.mxu0 0.0
        %4841 = vmatpush1.msra.mxu0 %v4803
        %4842 = vmatprep.subr.mxu0 0.0
        %4843 = vmatpush1.msra.mxu0 %v4802
        %4844 = vmatprep.subr.mxu0 0.0
        %4845 = vmatpush1.msra.mxu0 %v4801
        %4846 = vmatprep.subr.mxu0 0.0
        %4847 = vmatpush1.msra.mxu0 %v4800
        %4848 = vmatprep.subr.mxu0 0.0
        %4849 = vmatpush1.msra.mxu0 %v4799
        %4850 = vmatprep.subr.mxu0 0.0
        %4851 = vmatpush2.msra.mxu0 0.0
        %4852 = vmatprep.subr.mxu0 0.0
        %4853 = vmatpush2.msra.mxu0 0.0
        %4854 = vmatprep.subr.mxu0 0.0
        %4855 = vmatpush2.msra.mxu0 0.0
        %4856 = vmatprep.subr.mxu0 0.0
        %4857 = vmatpush2.msra.mxu0 0.0
        %4858 = vmatprep.subr.mxu0 0.0
        %4859 = vmatpush2.msra.mxu0 0.0
        %4860 = vmatprep.subr.mxu0 0.0
        %4861 = vmatpush2.msra.mxu0 0.0
        %4862 = vmatprep.subr.mxu0 0.0
        %4863 = vmatpush2.msra.mxu0 0.0
        %4864 = vmatprep.subr.mxu0 0.0
        %4865 = vmatpush2.msra.mxu0 0.0
        %4866 = vmatprep.subr.mxu0 0.0
        %4867 = vmatpush2.msra.mxu0 0.0
        %4868 = vmatprep.subr.mxu0 0.0
        %4869 = vmatpush2.msra.mxu0 0.0
        %4870 = vmatprep.subr.mxu0 0.0
        %4871 = vmatpush2.msra.mxu0 0.0
        %4872 = vmatprep.subr.mxu0 0.0
        %4873 = vmatpush2.msra.mxu0 0.0
        %4874 = vmatprep.subr.mxu0 0.0
        %4875 = vmatpush2.msra.mxu0 0.0
        %4876 = vmatprep.subr.mxu0 0.0
        %4877 = vmatpush2.msra.mxu0 0.0
        %4878 = vmatprep.subr.mxu0 0.0
        %4879 = vmatpush2.msra.mxu0 0.0
        %4880 = vmatprep.subr.mxu0 0.0
        %4881 = vmatpush2.msra.mxu0 0.0
        %4882 = vmatprep.mubr.f32.mxu0 0.0
        %4883 = vmatmul.mubr.f32.gmra.mxu0 %v4816
        %v4884 = vpop.f32.mrf.mxu0
        %v4885 = vadd.f32 %v4812, %v4884
        %v4886 = vpop.f32.mrf.mxu0
        %4887 = vdwg.mxu0
        %v4888 = vadd.f32 %v4713, %v4885
        %v4889 = vsel %vm1204, %v4888, 0.0
        %4890 = vadd.xlane.f32.xlu0 %v4889
        %v4891 = vpop.xlane.xlu0 %4890
        %v4892 = vmul.f32 %v4891, %v2769
        %v4893 = vsub.f32 %v4888, %v4892
        %v4894 = vmul.f32 %v4893, %v4893
        %v4895 = vsel %vm1204, %v4894, 0.0
        %4896 = vadd.xlane.f32.xlu0 %v4895
        %v4897 = vpop.xlane.xlu0 %4896
        %v4898 = vmul.f32 %v4897, %v2769
        %v4899 = vadd.f32 %v4898, 1e-05
        %v4900 = vrsqrt.pop %v4899
        %v4901 = vmul.f32 %v4893, %v4900
        %v4902 = vld [vmem:[%s57] sm:$0x1]
        %v4904 = vlaneseq
        %v4905 = vshrl.u32 %v4904, 7
        %v4906 = vsub.s32 0, %v4905
        %v4907 = vrot.slane %v4902, %v4906
        %v4909 = vmul.f32 %v4901, %v4907
        %v4910 = vld [vmem:[%s59] sm:$0x1]
        %v4912 = vlaneseq
        %v4913 = vshrl.u32 %v4912, 7
        %v4914 = vsub.s32 0, %v4913
        %v4915 = vrot.slane %v4910, %v4914
        %v4917 = vadd.f32 %v4909, %v4915
        %4918 = vst.msk [vmem:[%s1174] sm:$0xff] %vm1204, %v4917
        %s4919 = sand.u32 %s745, 1
        %s4920 = scalar_lea.sflag [#allocation4], %s4919
        %s4921 = sand.u32 %s745, 1
        %s4922 = smul.addr %s4921, 8
        %s4923 = scalar_lea.vmem [#allocation25], %s4922
        // Predicated region
        $region197: #{tpu_custom_call.1} parent=139 // pred_check
          %p4924 = pneg %p755
        $region198: #{tpu_custom_call.1} parent=139 // pred_check_branch
          %4926 = sbr.rel (%p4924) target = $region200
        $region199: #{tpu_custom_call.1} parent=139 // pred_region
          %s4928 = ssub.s32 128, 128
          %4929 = vsyncadd %s4920, %s4928
          %s4930 = smul.addr %s87, 128
          %s4931 = scalar_lea.hbm %s61, %s4930
          %s4933 = sshll.u32 %s4923, 4
          %s4934 = int_to_ptr.vmem [resolvable:$true] %s4933
          %4936 = dma.vmem_to_hbm [thread:$0]  %s4934, 128, %s4931, %s4920
        $region200: #{tpu_custom_call.1} parent=139 // pred_fallthru
          _
      $region140: #{tpu_custom_call.1} parent=5 // pred_fallthru
        _
      %p4937 = scmp.le.s32.totalorder 2, %s82
      // Predicated region
      $region201: #{tpu_custom_call.1} parent=5 // pred_check
        %p4938 = pneg %p4937
      $region202: #{tpu_custom_call.1} parent=5 // pred_check_branch
        %4940 = sbr.rel (%p4938) target = $region204
      $region203: #{tpu_custom_call.1} parent=5 // pred_region
        %s4941 = ssub.s32 %s82, 2
        // Predicated region
        $region205: #{tpu_custom_call.1} parent=203 // pred_check
          %p4942 = pneg %p761
        $region206: #{tpu_custom_call.1} parent=203 // pred_check_branch
          %4944 = sbr.rel (%p4942) target = $region208
        $region207: #{tpu_custom_call.1} parent=203 // pred_region
          %s4945 = sand.u32 %s746, 1
          %s4946 = scalar_lea.sflag [#allocation4], %s4945
          %s4947 = sand.u32 %s746, 1
          %s4948 = smul.addr %s4947, 8
          %s4949 = scalar_lea.vmem [#allocation25], %s4948
          %4950 = dma.done %s4946, 128
        $region208: #{tpu_custom_call.1} parent=203 // pred_fallthru
          _
      $region204: #{tpu_custom_call.1} parent=5 // pred_fallthru
        _
    $region6: #{tpu_custom_call.1} parent=1 // loop_footer
      %s86 = sadd.s32 1, %s82
    $region7: #{tpu_custom_call.1} parent=1 // loop_footer_branch
      %81 = sbr.rel target = $region3
    $region8: #{tpu_custom_call.1} parent=1 // loop_exit
      _
    %4951 = vsyncpa [#allocation3], 1
    %s4952 = scalar_lea.sflag [#allocation3], 1
    %4953 = vsyncpa %s4952, 1
    %4954 = vsyncpa [#allocation6], 1
    %s4955 = scalar_lea.sflag [#allocation6], 1
    %4956 = vsyncpa %s4955, 1
    %4957 = vsyncpa [#allocation9], 1
    %4958 = vsyncpa [#allocation12], 1
    %4959 = vsyncpa [#allocation15], 1
    %4960 = vsyncpa [#allocation18], 1
    %4961 = vsyncpa [#allocation21], 1
    %4962 = vsyncpa [#allocation24], 1
    %4963 = vsyncpa [#allocation4], 1
    %s4964 = scalar_lea.sflag [#allocation4], 1
    %4965 = vsyncpa %s4964, 1

</llo_original>
